<compile_context>
chip_gen: v5e
topology: v5e:2x2
jax: 0.10.0
libtpu: 0.0.40
codegen_flags: <defaults>
</compile_context>

<pallas_src>
import functools

import jax
import jax.numpy as jnp
from jax.experimental import pallas as pl
from jax.experimental.pallas import tpu as pltpu

# logical (unpadded) feature sizes of the PyTorch module
D_IN, H1, H2, H3 = 9, 80, 300, 768
D_DEC, N_HEADS = 12, 9

# padded sizes used inside the kernel
P_IN = 16            # input lanes (9 -> 16, matches bf16 sublane tile)
P_H1 = 128           # 80  -> 128
P_H2 = 384           # 300 -> 384
P_H3 = 768           # 768 (already lane aligned)
P_DO = 256           # fused [dec(12)->128 | ops(9)->128] output lanes
OPS_OFF = 128        # ops columns start here inside the fused output


def _round_up(n, m):
    return (n + m - 1) // m * m


# ---------------------------------------------------------------------------
# kernel
# ---------------------------------------------------------------------------
def _autoencoder_kernel(x_ref,
                        ew1, eb1, ew2, eb2, ew3, eb3,
                        dw1, db1, dw2, db2, dwc, dbc,
                        enc_ref, do_ref):
    mm_dtype = ew1.dtype  # bf16 matmul operands; f32 accumulation on the VPU

    def dense(h, w_ref, b_ref, relu):
        y = jnp.dot(h.astype(mm_dtype), w_ref[...],
                    preferred_element_type=jnp.float32) + b_ref[...]
        return jnp.maximum(y, 0.0) if relu else y

    x = x_ref[...]                                   # (tile_b, 16) bf16

    # encoder: Linear(9,80) ReLU Linear(80,300) ReLU Linear(300,768)
    h = dense(x, ew1, eb1, relu=True)
    h = dense(h, ew2, eb2, relu=True)
    enc = dense(h, ew3, eb3, relu=False)             # f32
    enc_ref[...] = enc.astype(enc_ref.dtype)         # bf16 writeback

    # decoder trunk: Linear(768,300) ReLU Linear(300,80) ReLU
    d = dense(enc, dw1, db1, relu=True)
    d = dense(d, dw2, db2, relu=True)

    # fused final Linear(80,12) + nine Linear(12,1) heads -> one 256-lane store
    do_ref[...] = dense(d, dwc, dbc, relu=False)


# ---------------------------------------------------------------------------
# parameters
# ---------------------------------------------------------------------------
def init_params(key):
    """Synthetic parameters with the shapes the nn.Module implies
    (weights stored [in, out], biases [1, out])."""
    dims_enc = [(D_IN, H1), (H1, H2), (H2, H3)]
    dims_dec = [(H3, H2), (H2, H1), (H1, D_DEC)]
    params = {}

    def linear(key, fan_in, fan_out):
        kw, kb = jax.random.split(key)
        bound = 1.0 / jnp.sqrt(fan_in)
        w = jax.random.uniform(kw, (fan_in, fan_out), jnp.float32, -bound, bound)
        b = jax.random.uniform(kb, (1, fan_out), jnp.float32, -bound, bound)
        return w, b

    keys = jax.random.split(key, 3 + 3 + N_HEADS)
    for i, (fi, fo) in enumerate(dims_enc):
        params[f"ew{i+1}"], params[f"eb{i+1}"] = linear(keys[i], fi, fo)
    for i, (fi, fo) in enumerate(dims_dec):
        params[f"dw{i+1}"], params[f"db{i+1}"] = linear(keys[3 + i], fi, fo)

    head_w, head_b = [], []
    for i in range(N_HEADS):
        w, b = linear(keys[6 + i], D_DEC, 1)
        head_w.append(w)
        head_b.append(b)
    params["opw"] = jnp.concatenate(head_w, axis=1)   # [12, 9]
    params["opb"] = jnp.concatenate(head_b, axis=1)   # [1, 9]
    return params


def _pad2d(a, rows, cols):
    r, c = a.shape
    return jnp.pad(a, ((0, rows - r), (0, cols - c)))


def prepare_params(params, matmul_dtype=jnp.bfloat16):
    """Zero-pad weights/biases to lane multiples, fuse the final decoder
    Linear(80,12) with the nine Linear(12,1) heads (exact: no ReLU between
    them), cast weights to the matmul dtype; biases stay f32."""
    dw3, db3 = params["dw3"], params["db3"]          # (80,12), (1,12)
    opw, opb = params["opw"], params["opb"]          # (12, 9), (1, 9)
    w_ops = dw3 @ opw                                # (80, 9)
    b_ops = db3 @ opw + opb                          # (1, 9)
    dwc = jnp.concatenate([_pad2d(dw3, H1, OPS_OFF),
                           _pad2d(w_ops, H1, P_DO - OPS_OFF)], axis=1)  # (80,256)
    dbc = jnp.concatenate([_pad2d(db3, 1, OPS_OFF),
                           _pad2d(b_ops, 1, P_DO - OPS_OFF)], axis=1)   # (1,256)

    weights = {
        "ew1": _pad2d(params["ew1"], P_IN, P_H1),
        "ew2": _pad2d(params["ew2"], P_H1, P_H2),
        "ew3": _pad2d(params["ew3"], P_H2, P_H3),
        "dw1": _pad2d(params["dw1"], P_H3, P_H2),
        "dw2": _pad2d(params["dw2"], P_H2, P_H1),
        "dwc": _pad2d(dwc, P_H1, P_DO),
    }
    biases = {
        "eb1": _pad2d(params["eb1"], 1, P_H1),
        "eb2": _pad2d(params["eb2"], 1, P_H2),
        "eb3": _pad2d(params["eb3"], 1, P_H3),
        "db1": _pad2d(params["db1"], 1, P_H2),
        "db2": _pad2d(params["db2"], 1, P_H1),
        "dbc": dbc,
    }
    out = {k: v.astype(matmul_dtype) for k, v in weights.items()}
    out.update({k: v.astype(jnp.float32) for k, v in biases.items()})
    return out


_ARG_ORDER = ("ew1", "eb1", "ew2", "eb2", "ew3", "eb3",
              "dw1", "db1", "dw2", "db2", "dwc", "dbc")


# ---------------------------------------------------------------------------
# pallas_call wrapper
# ---------------------------------------------------------------------------
@functools.partial(jax.jit, static_argnames=("tile_b", "single_buffer_weights"))
def _autoencoder_call(x_pad, padded_params, *, tile_b, single_buffer_weights):
    bp = x_pad.shape[0]
    grid = (bp // tile_b,)
    w_args = [padded_params[k] for k in _ARG_ORDER]

    def batch_spec(feat):
        return pl.BlockSpec((tile_b, feat), lambda i: (i, 0))

    def resident_spec(arr):
        # constant block index -> stays VMEM-resident across all grid steps;
        # single-buffer it so the weights are not duplicated in VMEM.
        if single_buffer_weights:
            return pl.BlockSpec(arr.shape, lambda i: (0, 0),
                                pipeline_mode=pl.Buffered(1))
        return pl.BlockSpec(arr.shape, lambda i: (0, 0))

    in_specs = [batch_spec(P_IN)] + [resident_spec(a) for a in w_args]
    out_specs = (batch_spec(P_H3), batch_spec(P_DO))
    out_shape = (jax.ShapeDtypeStruct((bp, P_H3), jnp.bfloat16),   # enc (bf16)
                 jax.ShapeDtypeStruct((bp, P_DO), jnp.float32))    # [dec|ops]

    macs_per_row = (P_IN * P_H1 + P_H1 * P_H2 + P_H2 * P_H3 +
                    P_H3 * P_H2 + P_H2 * P_H1 + P_H1 * P_DO)
    weight_bytes = sum(int(a.size) * a.dtype.itemsize for a in w_args)
    cost = pl.CostEstimate(
        flops=2 * bp * macs_per_row,
        transcendentals=0,
        bytes_accessed=(bp * P_IN * 2 + weight_bytes +
                        bp * P_H3 * 2 + bp * P_DO * 4))

    return pl.pallas_call(
        _autoencoder_kernel,
        out_shape=out_shape,
        grid=grid,
        in_specs=in_specs,
        out_specs=out_specs,
        compiler_params=pltpu.CompilerParams(
            dimension_semantics=("parallel",),
            vmem_limit_bytes=48 * 1024 * 1024),
        cost_estimate=cost,
    )(x_pad, *w_args)


def _pick_tile_b(batch, max_tile=1024):
    bp8 = _round_up(max(batch, 1), 8)
    if bp8 <= max_tile:
        # batch fits one tile; if it is big enough, split it in two grid
        # steps so both v7x TensorCores get work on the "parallel" axis
        if bp8 >= 512:
            return _round_up((bp8 + 1) // 2, 8)
        return bp8
    return max_tile


def autoencoder_forward(x, padded_params, max_tile_b=1024):
    """x: [B, 9] f32.  Returns the 11-tuple matching the PyTorch forward."""
    B = x.shape[0]
    tile_b = _pick_tile_b(B, max_tile_b)
    bp = _round_up(B, tile_b)

    x_pad = jnp.zeros((bp, P_IN), jnp.bfloat16)
    x_pad = x_pad.at[:B, :D_IN].set(x.astype(jnp.bfloat16))

    try:
        enc, do = _autoencoder_call(x_pad, padded_params,
                                    tile_b=tile_b, single_buffer_weights=True)
    except Exception:
        # pl.Buffered(1) unsupported on this JAX build -> default buffering
        enc, do = _autoencoder_call(x_pad, padded_params,
                                    tile_b=tile_b, single_buffer_weights=False)

    enc = enc[:B].astype(jnp.float32)
    dec = do[:B, :D_DEC]
    ops = do[:B, OPS_OFF:OPS_OFF + N_HEADS]
    return (enc, dec) + tuple(ops[:, i:i + 1] for i in range(N_HEADS))


# ---------------------------------------------------------------------------
# pure-JAX reference (mirrors the PyTorch forward in f32)
# ---------------------------------------------------------------------------
def reference_forward(x, params):
    relu = lambda v: jnp.maximum(v, 0.0)
    h = relu(x @ params["ew1"] + params["eb1"])
    h = relu(h @ params["ew2"] + params["eb2"])
    enc = h @ params["ew3"] + params["eb3"]
    d = relu(enc @ params["dw1"] + params["db1"])
    d = relu(d @ params["dw2"] + params["db2"])
    dec = d @ params["dw3"] + params["db3"]
    ops = dec @ params["opw"] + params["opb"]
    return (enc, dec) + tuple(ops[:, i:i + 1] for i in range(N_HEADS))


if __name__ == "__main__":
    key = jax.random.PRNGKey(0)
    k_x, k_p = jax.random.split(key)

    B = 8
    x = jax.random.normal(k_x, (B, D_IN), jnp.float32)
    raw_params = init_params(k_p)
    padded_params = prepare_params(raw_params, matmul_dtype=jnp.bfloat16)

    outs = autoencoder_forward(x, padded_params)
    outs = jax.block_until_ready(outs)

    refs = reference_forward(x, raw_params)
    for o, r in zip(outs, refs):
        assert o.shape == r.shape, (o.shape, r.shape)
        # bf16 MXU operands + bf16 enc writeback vs f32 reference
        assert jnp.allclose(o, r, atol=2e-2, rtol=2e-2), \
            float(jnp.max(jnp.abs(o - r)))

    print("KERNEL_OK")
</pallas_src>

<mosaic_0001>
module attributes {stable_mosaic.version = 11 : i64} {
  func.func @_autoencoder_kernel(%arg0: i32, %arg1: memref<8x16xbf16, #tpu.memory_space<vmem>>, %arg2: memref<16x128xbf16, #tpu.memory_space<vmem>>, %arg3: memref<1x128xf32, #tpu.memory_space<vmem>>, %arg4: memref<128x384xbf16, #tpu.memory_space<vmem>>, %arg5: memref<1x384xf32, #tpu.memory_space<vmem>>, %arg6: memref<384x768xbf16, #tpu.memory_space<vmem>>, %arg7: memref<1x768xf32, #tpu.memory_space<vmem>>, %arg8: memref<768x384xbf16, #tpu.memory_space<vmem>>, %arg9: memref<1x384xf32, #tpu.memory_space<vmem>>, %arg10: memref<384x128xbf16, #tpu.memory_space<vmem>>, %arg11: memref<1x128xf32, #tpu.memory_space<vmem>>, %arg12: memref<128x256xbf16, #tpu.memory_space<vmem>>, %arg13: memref<1x256xf32, #tpu.memory_space<vmem>>, %arg14: memref<8x768xbf16, #tpu.memory_space<vmem>>, %arg15: memref<8x256xf32, #tpu.memory_space<vmem>>) attributes {dimension_semantics = [#tpu.dimension_semantics<parallel>], iteration_bounds = array<i64: 1>, scalar_prefetch = 0 : i64, scratch_operands = 0 : i64, tpu.core_type = #tpu.core_type<tc>, window_params = [{transform_indices = @transform_0, window_bounds = array<i64: 8, 16>}, {pipeline_mode = #tpu.pipeline_mode<synchronous>, transform_indices = @transform_1, window_bounds = array<i64: 16, 128>}, {pipeline_mode = #tpu.pipeline_mode<synchronous>, transform_indices = @transform_2, window_bounds = array<i64: 1, 128>}, {pipeline_mode = #tpu.pipeline_mode<synchronous>, transform_indices = @transform_3, window_bounds = array<i64: 128, 384>}, {pipeline_mode = #tpu.pipeline_mode<synchronous>, transform_indices = @transform_4, window_bounds = array<i64: 1, 384>}, {pipeline_mode = #tpu.pipeline_mode<synchronous>, transform_indices = @transform_5, window_bounds = array<i64: 384, 768>}, {pipeline_mode = #tpu.pipeline_mode<synchronous>, transform_indices = @transform_6, window_bounds = array<i64: 1, 768>}, {pipeline_mode = #tpu.pipeline_mode<synchronous>, transform_indices = @transform_7, window_bounds = array<i64: 768, 384>}, {pipeline_mode = #tpu.pipeline_mode<synchronous>, transform_indices = @transform_8, window_bounds = array<i64: 1, 384>}, {pipeline_mode = #tpu.pipeline_mode<synchronous>, transform_indices = @transform_9, window_bounds = array<i64: 384, 128>}, {pipeline_mode = #tpu.pipeline_mode<synchronous>, transform_indices = @transform_10, window_bounds = array<i64: 1, 128>}, {pipeline_mode = #tpu.pipeline_mode<synchronous>, transform_indices = @transform_11, window_bounds = array<i64: 128, 256>}, {pipeline_mode = #tpu.pipeline_mode<synchronous>, transform_indices = @transform_12, window_bounds = array<i64: 1, 256>}, {transform_indices = @transform_13, window_bounds = array<i64: 8, 768>}, {transform_indices = @transform_14, window_bounds = array<i64: 8, 256>}]} {
    %c0 = arith.constant 0 : index
    %c0_0 = arith.constant 0 : index
    %0 = vector.load %arg1[%c0, %c0_0] : memref<8x16xbf16, #tpu.memory_space<vmem>>, vector<8x16xbf16>
    %c0_1 = arith.constant 0 : index
    %c0_2 = arith.constant 0 : index
    %1 = vector.load %arg2[%c0_1, %c0_2] : memref<16x128xbf16, #tpu.memory_space<vmem>>, vector<16x128xbf16>
    %cst = arith.constant dense<0.000000e+00> : vector<8x128xf32>
    %2 = tpu.matmul %0, %1, %cst {dimension_numbers = #tpu.dot_dimension_numbers<[1], [0], [0], [1], [0, 0, 1, 1], [], []>} : vector<8x16xbf16>, vector<16x128xbf16>, vector<8x128xf32> -> vector<8x128xf32>
    %c0_3 = arith.constant 0 : index
    %c0_4 = arith.constant 0 : index
    %3 = vector.load %arg3[%c0_3, %c0_4] : memref<1x128xf32, #tpu.memory_space<vmem>>, vector<1x128xf32>
    %4 = vector.broadcast %3 : vector<1x128xf32> to vector<8x128xf32>
    %5 = arith.addf %2, %4 : vector<8x128xf32>
    %cst_5 = arith.constant 0.000000e+00 : f32
    %6 = vector.broadcast %cst_5 : f32 to vector<8x128xf32>
    %7 = arith.maximumf %5, %6 : vector<8x128xf32>
    %8 = arith.truncf %7 : vector<8x128xf32> to vector<8x128xbf16>
    %c0_6 = arith.constant 0 : index
    %c0_7 = arith.constant 0 : index
    %9 = vector.load %arg4[%c0_6, %c0_7] : memref<128x384xbf16, #tpu.memory_space<vmem>>, vector<128x384xbf16>
    %cst_8 = arith.constant dense<0.000000e+00> : vector<8x384xf32>
    %10 = tpu.matmul %8, %9, %cst_8 {dimension_numbers = #tpu.dot_dimension_numbers<[1], [0], [0], [1], [0, 0, 1, 1], [], []>} : vector<8x128xbf16>, vector<128x384xbf16>, vector<8x384xf32> -> vector<8x384xf32>
    %c0_9 = arith.constant 0 : index
    %c0_10 = arith.constant 0 : index
    %11 = vector.load %arg5[%c0_9, %c0_10] : memref<1x384xf32, #tpu.memory_space<vmem>>, vector<1x384xf32>
    %12 = vector.broadcast %11 : vector<1x384xf32> to vector<8x384xf32>
    %13 = arith.addf %10, %12 : vector<8x384xf32>
    %cst_11 = arith.constant 0.000000e+00 : f32
    %14 = vector.broadcast %cst_11 : f32 to vector<8x384xf32>
    %15 = arith.maximumf %13, %14 : vector<8x384xf32>
    %16 = arith.truncf %15 : vector<8x384xf32> to vector<8x384xbf16>
    %c0_12 = arith.constant 0 : index
    %c0_13 = arith.constant 0 : index
    %17 = vector.load %arg6[%c0_12, %c0_13] : memref<384x768xbf16, #tpu.memory_space<vmem>>, vector<384x768xbf16>
    %cst_14 = arith.constant dense<0.000000e+00> : vector<8x768xf32>
    %18 = tpu.matmul %16, %17, %cst_14 {dimension_numbers = #tpu.dot_dimension_numbers<[1], [0], [0], [1], [0, 0, 1, 1], [], []>} : vector<8x384xbf16>, vector<384x768xbf16>, vector<8x768xf32> -> vector<8x768xf32>
    %c0_15 = arith.constant 0 : index
    %c0_16 = arith.constant 0 : index
    %19 = vector.load %arg7[%c0_15, %c0_16] : memref<1x768xf32, #tpu.memory_space<vmem>>, vector<1x768xf32>
    %20 = vector.broadcast %19 : vector<1x768xf32> to vector<8x768xf32>
    %21 = arith.addf %18, %20 : vector<8x768xf32>
    %22 = arith.truncf %21 : vector<8x768xf32> to vector<8x768xbf16>
    %c0_17 = arith.constant 0 : index
    %c0_18 = arith.constant 0 : index
    %23 = vector.load %arg14[%c0_17, %c0_18] : memref<8x768xbf16, #tpu.memory_space<vmem>>, vector<8x768xbf16>
    tpu.vector_store %arg14[%c0_17, %c0_18], %22 {strides = array<i32>} : memref<8x768xbf16, #tpu.memory_space<vmem>>, vector<8x768xbf16>,
    %24 = arith.truncf %21 : vector<8x768xf32> to vector<8x768xbf16>
    %c0_19 = arith.constant 0 : index
    %c0_20 = arith.constant 0 : index
    %25 = vector.load %arg8[%c0_19, %c0_20] : memref<768x384xbf16, #tpu.memory_space<vmem>>, vector<768x384xbf16>
    %cst_21 = arith.constant dense<0.000000e+00> : vector<8x384xf32>
    %26 = tpu.matmul %24, %25, %cst_21 {dimension_numbers = #tpu.dot_dimension_numbers<[1], [0], [0], [1], [0, 0, 1, 1], [], []>} : vector<8x768xbf16>, vector<768x384xbf16>, vector<8x384xf32> -> vector<8x384xf32>
    %c0_22 = arith.constant 0 : index
    %c0_23 = arith.constant 0 : index
    %27 = vector.load %arg9[%c0_22, %c0_23] : memref<1x384xf32, #tpu.memory_space<vmem>>, vector<1x384xf32>
    %28 = vector.broadcast %27 : vector<1x384xf32> to vector<8x384xf32>
    %29 = arith.addf %26, %28 : vector<8x384xf32>
    %cst_24 = arith.constant 0.000000e+00 : f32
    %30 = vector.broadcast %cst_24 : f32 to vector<8x384xf32>
    %31 = arith.maximumf %29, %30 : vector<8x384xf32>
    %32 = arith.truncf %31 : vector<8x384xf32> to vector<8x384xbf16>
    %c0_25 = arith.constant 0 : index
    %c0_26 = arith.constant 0 : index
    %33 = vector.load %arg10[%c0_25, %c0_26] : memref<384x128xbf16, #tpu.memory_space<vmem>>, vector<384x128xbf16>
    %cst_27 = arith.constant dense<0.000000e+00> : vector<8x128xf32>
    %34 = tpu.matmul %32, %33, %cst_27 {dimension_numbers = #tpu.dot_dimension_numbers<[1], [0], [0], [1], [0, 0, 1, 1], [], []>} : vector<8x384xbf16>, vector<384x128xbf16>, vector<8x128xf32> -> vector<8x128xf32>
    %c0_28 = arith.constant 0 : index
    %c0_29 = arith.constant 0 : index
    %35 = vector.load %arg11[%c0_28, %c0_29] : memref<1x128xf32, #tpu.memory_space<vmem>>, vector<1x128xf32>
    %36 = vector.broadcast %35 : vector<1x128xf32> to vector<8x128xf32>
    %37 = arith.addf %34, %36 : vector<8x128xf32>
    %cst_30 = arith.constant 0.000000e+00 : f32
    %38 = vector.broadcast %cst_30 : f32 to vector<8x128xf32>
    %39 = arith.maximumf %37, %38 : vector<8x128xf32>
    %40 = arith.truncf %39 : vector<8x128xf32> to vector<8x128xbf16>
    %c0_31 = arith.constant 0 : index
    %c0_32 = arith.constant 0 : index
    %41 = vector.load %arg12[%c0_31, %c0_32] : memref<128x256xbf16, #tpu.memory_space<vmem>>, vector<128x256xbf16>
    %cst_33 = arith.constant dense<0.000000e+00> : vector<8x256xf32>
    %42 = tpu.matmul %40, %41, %cst_33 {dimension_numbers = #tpu.dot_dimension_numbers<[1], [0], [0], [1], [0, 0, 1, 1], [], []>} : vector<8x128xbf16>, vector<128x256xbf16>, vector<8x256xf32> -> vector<8x256xf32>
    %c0_34 = arith.constant 0 : index
    %c0_35 = arith.constant 0 : index
    %43 = vector.load %arg13[%c0_34, %c0_35] : memref<1x256xf32, #tpu.memory_space<vmem>>, vector<1x256xf32>
    %44 = vector.broadcast %43 : vector<1x256xf32> to vector<8x256xf32>
    %45 = arith.addf %42, %44 : vector<8x256xf32>
    %c0_36 = arith.constant 0 : index
    %c0_37 = arith.constant 0 : index
    %46 = vector.load %arg15[%c0_36, %c0_37] : memref<8x256xf32, #tpu.memory_space<vmem>>, vector<8x256xf32>
    tpu.vector_store %arg15[%c0_36, %c0_37], %45 {strides = array<i32>} : memref<8x256xf32, #tpu.memory_space<vmem>>, vector<8x256xf32>,
    return
  }
  func.func @transform_0(%arg0: i32) -> (i32, i32) {
    %c0_i32 = arith.constant 0 : i32
    %c0_i32_0 = arith.constant 0 : i32
    return %arg0, %c0_i32 : i32, i32
  }
  func.func @transform_1(%arg0: i32) -> (i32, i32) {
    %c0_i32 = arith.constant 0 : i32
    %c0_i32_0 = arith.constant 0 : i32
    %c0_i32_1 = arith.constant 0 : i32
    return %c0_i32, %c0_i32_0 : i32, i32
  }
  func.func @transform_2(%arg0: i32) -> (i32, i32) {
    %c0_i32 = arith.constant 0 : i32
    %c0_i32_0 = arith.constant 0 : i32
    %c0_i32_1 = arith.constant 0 : i32
    return %c0_i32, %c0_i32_0 : i32, i32
  }
  func.func @transform_3(%arg0: i32) -> (i32, i32) {
    %c0_i32 = arith.constant 0 : i32
    %c0_i32_0 = arith.constant 0 : i32
    %c0_i32_1 = arith.constant 0 : i32
    return %c0_i32, %c0_i32_0 : i32, i32
  }
  func.func @transform_4(%arg0: i32) -> (i32, i32) {
    %c0_i32 = arith.constant 0 : i32
    %c0_i32_0 = arith.constant 0 : i32
    %c0_i32_1 = arith.constant 0 : i32
    return %c0_i32, %c0_i32_0 : i32, i32
  }
  func.func @transform_5(%arg0: i32) -> (i32, i32) {
    %c0_i32 = arith.constant 0 : i32
    %c0_i32_0 = arith.constant 0 : i32
    %c0_i32_1 = arith.constant 0 : i32
    return %c0_i32, %c0_i32_0 : i32, i32
  }
  func.func @transform_6(%arg0: i32) -> (i32, i32) {
    %c0_i32 = arith.constant 0 : i32
    %c0_i32_0 = arith.constant 0 : i32
    %c0_i32_1 = arith.constant 0 : i32
    return %c0_i32, %c0_i32_0 : i32, i32
  }
  func.func @transform_7(%arg0: i32) -> (i32, i32) {
    %c0_i32 = arith.constant 0 : i32
    %c0_i32_0 = arith.constant 0 : i32
    %c0_i32_1 = arith.constant 0 : i32
    return %c0_i32, %c0_i32_0 : i32, i32
  }
  func.func @transform_8(%arg0: i32) -> (i32, i32) {
    %c0_i32 = arith.constant 0 : i32
    %c0_i32_0 = arith.constant 0 : i32
    %c0_i32_1 = arith.constant 0 : i32
    return %c0_i32, %c0_i32_0 : i32, i32
  }
  func.func @transform_9(%arg0: i32) -> (i32, i32) {
    %c0_i32 = arith.constant 0 : i32
    %c0_i32_0 = arith.constant 0 : i32
    %c0_i32_1 = arith.constant 0 : i32
    return %c0_i32, %c0_i32_0 : i32, i32
  }
  func.func @transform_10(%arg0: i32) -> (i32, i32) {
    %c0_i32 = arith.constant 0 : i32
    %c0_i32_0 = arith.constant 0 : i32
    %c0_i32_1 = arith.constant 0 : i32
    return %c0_i32, %c0_i32_0 : i32, i32
  }
  func.func @transform_11(%arg0: i32) -> (i32, i32) {
    %c0_i32 = arith.constant 0 : i32
    %c0_i32_0 = arith.constant 0 : i32
    %c0_i32_1 = arith.constant 0 : i32
    return %c0_i32, %c0_i32_0 : i32, i32
  }
  func.func @transform_12(%arg0: i32) -> (i32, i32) {
    %c0_i32 = arith.constant 0 : i32
    %c0_i32_0 = arith.constant 0 : i32
    %c0_i32_1 = arith.constant 0 : i32
    return %c0_i32, %c0_i32_0 : i32, i32
  }
  func.func @transform_13(%arg0: i32) -> (i32, i32) {
    %c0_i32 = arith.constant 0 : i32
    %c0_i32_0 = arith.constant 0 : i32
    return %arg0, %c0_i32 : i32, i32
  }
  func.func @transform_14(%arg0: i32) -> (i32, i32) {
    %c0_i32 = arith.constant 0 : i32
    %c0_i32_0 = arith.constant 0 : i32
    return %arg0, %c0_i32 : i32, i32
  }
}

module attributes {stable_mosaic.version = 11 : i64} {
  func.func @_autoencoder_kernel(%arg0: i32, %arg1: memref<8x16xbf16, #tpu.memory_space<vmem>>, %arg2: memref<16x128xbf16, #tpu.memory_space<vmem>>, %arg3: memref<1x128xf32, #tpu.memory_space<vmem>>, %arg4: memref<128x384xbf16, #tpu.memory_space<vmem>>, %arg5: memref<1x384xf32, #tpu.memory_space<vmem>>, %arg6: memref<384x768xbf16, #tpu.memory_space<vmem>>, %arg7: memref<1x768xf32, #tpu.memory_space<vmem>>, %arg8: memref<768x384xbf16, #tpu.memory_space<vmem>>, %arg9: memref<1x384xf32, #tpu.memory_space<vmem>>, %arg10: memref<384x128xbf16, #tpu.memory_space<vmem>>, %arg11: memref<1x128xf32, #tpu.memory_space<vmem>>, %arg12: memref<128x256xbf16, #tpu.memory_space<vmem>>, %arg13: memref<1x256xf32, #tpu.memory_space<vmem>>, %arg14: memref<8x768xbf16, #tpu.memory_space<vmem>>, %arg15: memref<8x256xf32, #tpu.memory_space<vmem>>) attributes {dimension_semantics = [#tpu.dimension_semantics<parallel>], iteration_bounds = array<i64: 1>, scalar_prefetch = 0 : i64, scratch_operands = 0 : i64, tpu.core_type = #tpu.core_type<tc>, window_params = [{transform_indices = @transform_0, window_bounds = array<i64: 8, 16>}, {pipeline_mode = #tpu.pipeline_mode<synchronous>, transform_indices = @transform_1, window_bounds = array<i64: 16, 128>}, {pipeline_mode = #tpu.pipeline_mode<synchronous>, transform_indices = @transform_2, window_bounds = array<i64: 1, 128>}, {pipeline_mode = #tpu.pipeline_mode<synchronous>, transform_indices = @transform_3, window_bounds = array<i64: 128, 384>}, {pipeline_mode = #tpu.pipeline_mode<synchronous>, transform_indices = @transform_4, window_bounds = array<i64: 1, 384>}, {pipeline_mode = #tpu.pipeline_mode<synchronous>, transform_indices = @transform_5, window_bounds = array<i64: 384, 768>}, {pipeline_mode = #tpu.pipeline_mode<synchronous>, transform_indices = @transform_6, window_bounds = array<i64: 1, 768>}, {pipeline_mode = #tpu.pipeline_mode<synchronous>, transform_indices = @transform_7, window_bounds = array<i64: 768, 384>}, {pipeline_mode = #tpu.pipeline_mode<synchronous>, transform_indices = @transform_8, window_bounds = array<i64: 1, 384>}, {pipeline_mode = #tpu.pipeline_mode<synchronous>, transform_indices = @transform_9, window_bounds = array<i64: 384, 128>}, {pipeline_mode = #tpu.pipeline_mode<synchronous>, transform_indices = @transform_10, window_bounds = array<i64: 1, 128>}, {pipeline_mode = #tpu.pipeline_mode<synchronous>, transform_indices = @transform_11, window_bounds = array<i64: 128, 256>}, {pipeline_mode = #tpu.pipeline_mode<synchronous>, transform_indices = @transform_12, window_bounds = array<i64: 1, 256>}, {transform_indices = @transform_13, window_bounds = array<i64: 8, 768>}, {transform_indices = @transform_14, window_bounds = array<i64: 8, 256>}]} {
    %c0 = arith.constant 0 : index
    %c0_0 = arith.constant 0 : index
    %0 = vector.load %arg1[%c0, %c0_0] : memref<8x16xbf16, #tpu.memory_space<vmem>>, vector<8x16xbf16>
    %c0_1 = arith.constant 0 : index
    %c0_2 = arith.constant 0 : index
    %1 = vector.load %arg2[%c0_1, %c0_2] : memref<16x128xbf16, #tpu.memory_space<vmem>>, vector<16x128xbf16>
    %cst = arith.constant dense<0.000000e+00> : vector<8x128xf32>
    %2 = tpu.matmul %0, %1, %cst {dimension_numbers = #tpu.dot_dimension_numbers<[1], [0], [0], [1], [0, 0, 1, 1], [], []>} : vector<8x16xbf16>, vector<16x128xbf16>, vector<8x128xf32> -> vector<8x128xf32>
    %c0_3 = arith.constant 0 : index
    %c0_4 = arith.constant 0 : index
    %3 = vector.load %arg3[%c0_3, %c0_4] : memref<1x128xf32, #tpu.memory_space<vmem>>, vector<1x128xf32>
    %4 = vector.broadcast %3 : vector<1x128xf32> to vector<8x128xf32>
    %5 = arith.addf %2, %4 : vector<8x128xf32>
    %cst_5 = arith.constant 0.000000e+00 : f32
    %6 = vector.broadcast %cst_5 : f32 to vector<8x128xf32>
    %7 = arith.maximumf %5, %6 : vector<8x128xf32>
    %8 = arith.truncf %7 : vector<8x128xf32> to vector<8x128xbf16>
    %c0_6 = arith.constant 0 : index
    %c0_7 = arith.constant 0 : index
    %9 = vector.load %arg4[%c0_6, %c0_7] : memref<128x384xbf16, #tpu.memory_space<vmem>>, vector<128x384xbf16>
    %cst_8 = arith.constant dense<0.000000e+00> : vector<8x384xf32>
    %10 = tpu.matmul %8, %9, %cst_8 {dimension_numbers = #tpu.dot_dimension_numbers<[1], [0], [0], [1], [0, 0, 1, 1], [], []>} : vector<8x128xbf16>, vector<128x384xbf16>, vector<8x384xf32> -> vector<8x384xf32>
    %c0_9 = arith.constant 0 : index
    %c0_10 = arith.constant 0 : index
    %11 = vector.load %arg5[%c0_9, %c0_10] : memref<1x384xf32, #tpu.memory_space<vmem>>, vector<1x384xf32>
    %12 = vector.broadcast %11 : vector<1x384xf32> to vector<8x384xf32>
    %13 = arith.addf %10, %12 : vector<8x384xf32>
    %cst_11 = arith.constant 0.000000e+00 : f32
    %14 = vector.broadcast %cst_11 : f32 to vector<8x384xf32>
    %15 = arith.maximumf %13, %14 : vector<8x384xf32>
    %16 = arith.truncf %15 : vector<8x384xf32> to vector<8x384xbf16>
    %c0_12 = arith.constant 0 : index
    %c0_13 = arith.constant 0 : index
    %17 = vector.load %arg6[%c0_12, %c0_13] : memref<384x768xbf16, #tpu.memory_space<vmem>>, vector<384x768xbf16>
    %cst_14 = arith.constant dense<0.000000e+00> : vector<8x768xf32>
    %18 = tpu.matmul %16, %17, %cst_14 {dimension_numbers = #tpu.dot_dimension_numbers<[1], [0], [0], [1], [0, 0, 1, 1], [], []>} : vector<8x384xbf16>, vector<384x768xbf16>, vector<8x768xf32> -> vector<8x768xf32>
    %c0_15 = arith.constant 0 : index
    %c0_16 = arith.constant 0 : index
    %19 = vector.load %arg7[%c0_15, %c0_16] : memref<1x768xf32, #tpu.memory_space<vmem>>, vector<1x768xf32>
    %20 = vector.broadcast %19 : vector<1x768xf32> to vector<8x768xf32>
    %21 = arith.addf %18, %20 : vector<8x768xf32>
    %22 = arith.truncf %21 : vector<8x768xf32> to vector<8x768xbf16>
    %c0_17 = arith.constant 0 : index
    %c0_18 = arith.constant 0 : index
    %23 = vector.load %arg14[%c0_17, %c0_18] : memref<8x768xbf16, #tpu.memory_space<vmem>>, vector<8x768xbf16>
    tpu.vector_store %arg14[%c0_17, %c0_18], %22 {strides = array<i32>} : memref<8x768xbf16, #tpu.memory_space<vmem>>, vector<8x768xbf16>,
    %24 = arith.truncf %21 : vector<8x768xf32> to vector<8x768xbf16>
    %c0_19 = arith.constant 0 : index
    %c0_20 = arith.constant 0 : index
    %25 = vector.load %arg8[%c0_19, %c0_20] : memref<768x384xbf16, #tpu.memory_space<vmem>>, vector<768x384xbf16>
    %cst_21 = arith.constant dense<0.000000e+00> : vector<8x384xf32>
    %26 = tpu.matmul %24, %25, %cst_21 {dimension_numbers = #tpu.dot_dimension_numbers<[1], [0], [0], [1], [0, 0, 1, 1], [], []>} : vector<8x768xbf16>, vector<768x384xbf16>, vector<8x384xf32> -> vector<8x384xf32>
    %c0_22 = arith.constant 0 : index
    %c0_23 = arith.constant 0 : index
    %27 = vector.load %arg9[%c0_22, %c0_23] : memref<1x384xf32, #tpu.memory_space<vmem>>, vector<1x384xf32>
    %28 = vector.broadcast %27 : vector<1x384xf32> to vector<8x384xf32>
    %29 = arith.addf %26, %28 : vector<8x384xf32>
    %cst_24 = arith.constant 0.000000e+00 : f32
    %30 = vector.broadcast %cst_24 : f32 to vector<8x384xf32>
    %31 = arith.maximumf %29, %30 : vector<8x384xf32>
    %32 = arith.truncf %31 : vector<8x384xf32> to vector<8x384xbf16>
    %c0_25 = arith.constant 0 : index
    %c0_26 = arith.constant 0 : index
    %33 = vector.load %arg10[%c0_25, %c0_26] : memref<384x128xbf16, #tpu.memory_space<vmem>>, vector<384x128xbf16>
    %cst_27 = arith.constant dense<0.000000e+00> : vector<8x128xf32>
    %34 = tpu.matmul %32, %33, %cst_27 {dimension_numbers = #tpu.dot_dimension_numbers<[1], [0], [0], [1], [0, 0, 1, 1], [], []>} : vector<8x384xbf16>, vector<384x128xbf16>, vector<8x128xf32> -> vector<8x128xf32>
    %c0_28 = arith.constant 0 : index
    %c0_29 = arith.constant 0 : index
    %35 = vector.load %arg11[%c0_28, %c0_29] : memref<1x128xf32, #tpu.memory_space<vmem>>, vector<1x128xf32>
    %36 = vector.broadcast %35 : vector<1x128xf32> to vector<8x128xf32>
    %37 = arith.addf %34, %36 : vector<8x128xf32>
    %cst_30 = arith.constant 0.000000e+00 : f32
    %38 = vector.broadcast %cst_30 : f32 to vector<8x128xf32>
    %39 = arith.maximumf %37, %38 : vector<8x128xf32>
    %40 = arith.truncf %39 : vector<8x128xf32> to vector<8x128xbf16>
    %c0_31 = arith.constant 0 : index
    %c0_32 = arith.constant 0 : index
    %41 = vector.load %arg12[%c0_31, %c0_32] : memref<128x256xbf16, #tpu.memory_space<vmem>>, vector<128x256xbf16>
    %cst_33 = arith.constant dense<0.000000e+00> : vector<8x256xf32>
    %42 = tpu.matmul %40, %41, %cst_33 {dimension_numbers = #tpu.dot_dimension_numbers<[1], [0], [0], [1], [0, 0, 1, 1], [], []>} : vector<8x128xbf16>, vector<128x256xbf16>, vector<8x256xf32> -> vector<8x256xf32>
    %c0_34 = arith.constant 0 : index
    %c0_35 = arith.constant 0 : index
    %43 = vector.load %arg13[%c0_34, %c0_35] : memref<1x256xf32, #tpu.memory_space<vmem>>, vector<1x256xf32>
    %44 = vector.broadcast %43 : vector<1x256xf32> to vector<8x256xf32>
    %45 = arith.addf %42, %44 : vector<8x256xf32>
    %c0_36 = arith.constant 0 : index
    %c0_37 = arith.constant 0 : index
    %46 = vector.load %arg15[%c0_36, %c0_37] : memref<8x256xf32, #tpu.memory_space<vmem>>, vector<8x256xf32>
    tpu.vector_store %arg15[%c0_36, %c0_37], %45 {strides = array<i32>} : memref<8x256xf32, #tpu.memory_space<vmem>>, vector<8x256xf32>,
    return
  }
  func.func @transform_0(%arg0: i32) -> (i32, i32) {
    %c0_i32 = arith.constant 0 : i32
    %c0_i32_0 = arith.constant 0 : i32
    return %arg0, %c0_i32 : i32, i32
  }
  func.func @transform_1(%arg0: i32) -> (i32, i32) {
    %c0_i32 = arith.constant 0 : i32
    %c0_i32_0 = arith.constant 0 : i32
    %c0_i32_1 = arith.constant 0 : i32
    return %c0_i32, %c0_i32_0 : i32, i32
  }
  func.func @transform_2(%arg0: i32) -> (i32, i32) {
    %c0_i32 = arith.constant 0 : i32
    %c0_i32_0 = arith.constant 0 : i32
    %c0_i32_1 = arith.constant 0 : i32
    return %c0_i32, %c0_i32_0 : i32, i32
  }
  func.func @transform_3(%arg0: i32) -> (i32, i32) {
    %c0_i32 = arith.constant 0 : i32
    %c0_i32_0 = arith.constant 0 : i32
    %c0_i32_1 = arith.constant 0 : i32
    return %c0_i32, %c0_i32_0 : i32, i32
  }
  func.func @transform_4(%arg0: i32) -> (i32, i32) {
    %c0_i32 = arith.constant 0 : i32
    %c0_i32_0 = arith.constant 0 : i32
    %c0_i32_1 = arith.constant 0 : i32
    return %c0_i32, %c0_i32_0 : i32, i32
  }
  func.func @transform_5(%arg0: i32) -> (i32, i32) {
    %c0_i32 = arith.constant 0 : i32
    %c0_i32_0 = arith.constant 0 : i32
    %c0_i32_1 = arith.constant 0 : i32
    return %c0_i32, %c0_i32_0 : i32, i32
  }
  func.func @transform_6(%arg0: i32) -> (i32, i32) {
    %c0_i32 = arith.constant 0 : i32
    %c0_i32_0 = arith.constant 0 : i32
    %c0_i32_1 = arith.constant 0 : i32
    return %c0_i32, %c0_i32_0 : i32, i32
  }
  func.func @transform_7(%arg0: i32) -> (i32, i32) {
    %c0_i32 = arith.constant 0 : i32
    %c0_i32_0 = arith.constant 0 : i32
    %c0_i32_1 = arith.constant 0 : i32
    return %c0_i32, %c0_i32_0 : i32, i32
  }
  func.func @transform_8(%arg0: i32) -> (i32, i32) {
    %c0_i32 = arith.constant 0 : i32
    %c0_i32_0 = arith.constant 0 : i32
    %c0_i32_1 = arith.constant 0 : i32
    return %c0_i32, %c0_i32_0 : i32, i32
  }
  func.func @transform_9(%arg0: i32) -> (i32, i32) {
    %c0_i32 = arith.constant 0 : i32
    %c0_i32_0 = arith.constant 0 : i32
    %c0_i32_1 = arith.constant 0 : i32
    return %c0_i32, %c0_i32_0 : i32, i32
  }
  func.func @transform_10(%arg0: i32) -> (i32, i32) {
    %c0_i32 = arith.constant 0 : i32
    %c0_i32_0 = arith.constant 0 : i32
    %c0_i32_1 = arith.constant 0 : i32
    return %c0_i32, %c0_i32_0 : i32, i32
  }
  func.func @transform_11(%arg0: i32) -> (i32, i32) {
    %c0_i32 = arith.constant 0 : i32
    %c0_i32_0 = arith.constant 0 : i32
    %c0_i32_1 = arith.constant 0 : i32
    return %c0_i32, %c0_i32_0 : i32, i32
  }
  func.func @transform_12(%arg0: i32) -> (i32, i32) {
    %c0_i32 = arith.constant 0 : i32
    %c0_i32_0 = arith.constant 0 : i32
    %c0_i32_1 = arith.constant 0 : i32
    return %c0_i32, %c0_i32_0 : i32, i32
  }
  func.func @transform_13(%arg0: i32) -> (i32, i32) {
    %c0_i32 = arith.constant 0 : i32
    %c0_i32_0 = arith.constant 0 : i32
    return %arg0, %c0_i32 : i32, i32
  }
  func.func @transform_14(%arg0: i32) -> (i32, i32) {
    %c0_i32 = arith.constant 0 : i32
    %c0_i32_0 = arith.constant 0 : i32
    return %arg0, %c0_i32 : i32, i32
  }
}

</mosaic_0001>

<llo_original>
// kernel: _autoencoder_call.1
$region0: #{_autoencoder_call.1}
  #allocation0 [shape = 'u32[]', space=smem, size = 0x4, offset = 0x4, fixed_abs, tag = 'smem constant byte address 0x4 - core index']
  #allocation1 [shape = 'u32[72,128]{1,0:T(1,128)}', space=vmem, size = 0x9000, scoped, tag = 'internal scratch']
  %s0 = inlined_call_operand.hbm [shape: bf16[8,16], index: 0, kind: input, shape index: {}]
  %s1 = inlined_call_operand.vmem [shape: bf16[16,128], index: 1, kind: input, shape index: {}]
  %s2 = inlined_call_operand.vmem [shape: f32[1,128], index: 2, kind: input, shape index: {}]
  %s3 = inlined_call_operand.hbm [shape: bf16[128,384], index: 3, kind: input, shape index: {}]
  %s4 = inlined_call_operand.hbm [shape: f32[1,384], index: 4, kind: input, shape index: {}]
  %s5 = inlined_call_operand.hbm [shape: bf16[384,768], index: 5, kind: input, shape index: {}]
  %s6 = inlined_call_operand.hbm [shape: f32[1,768], index: 6, kind: input, shape index: {}]
  %s7 = inlined_call_operand.hbm [shape: bf16[768,384], index: 7, kind: input, shape index: {}]
  %s8 = inlined_call_operand.hbm [shape: f32[1,384], index: 8, kind: input, shape index: {}]
  %s9 = inlined_call_operand.hbm [shape: bf16[384,128], index: 9, kind: input, shape index: {}]
  %s10 = inlined_call_operand.hbm [shape: f32[1,128], index: 10, kind: input, shape index: {}]
  %s11 = inlined_call_operand.hbm [shape: bf16[128,256], index: 11, kind: input, shape index: {}]
  %s12 = inlined_call_operand.hbm [shape: f32[1,256], index: 12, kind: input, shape index: {}]
  %s13 = inlined_call_operand.hbm [shape: bf16[8,768], index: 13, kind: output, shape index: {0}]
  %s14 = inlined_call_operand.hbm [shape: f32[8,256], index: 14, kind: output, shape index: {1}]
  %15 = xla_tuple %s13, %s14
  %s16 = sld [smem:[#allocation0]]
  $region114: #{_autoencoder_call.1} parent=0
    _
  %s18 = ssub.s32 1, %s16
  %s19 = scalar_select 0, %s18, %s16
  $region1: #{_autoencoder_call.1} parent=0
    #allocation2 [shape = 'u8[2048]{0}', space=vmem, size = 0x800, scoped, tag = 'input window, operand 0, single buffered']
    #allocation3 [shape = 's32[1]{0}', space=sflag, size = 0x4, scoped, tag = 'scoped memory for _autoencoder_call.1']
    #allocation4 [shape = 's32[1]{0}', space=sflag, size = 0x4, scoped, tag = 'scoped memory for _autoencoder_call.1']
    #allocation5 [shape = 'u8[98304]{0}', space=vmem, size = 0x18000, scoped, tag = 'input window, operand 3, single buffered']
    #allocation6 [shape = 's32[1]{0}', space=sflag, size = 0x4, scoped, tag = 'scoped memory for _autoencoder_call.1']
    #allocation7 [shape = 'u8[1536]{0}', space=vmem, size = 0x800, scoped, tag = 'input window, operand 4, single buffered']
    #allocation8 [shape = 'u8[589824]{0}', space=vmem, size = 0x90000, scoped, tag = 'input window, operand 5, single buffered']
    #allocation9 [shape = 's32[1]{0}', space=sflag, size = 0x4, scoped, tag = 'scoped memory for _autoencoder_call.1']
    #allocation10 [shape = 'u8[3072]{0}', space=vmem, size = 0xc00, scoped, tag = 'input window, operand 6, single buffered']
    #allocation11 [shape = 'u8[589824]{0}', space=vmem, size = 0x90000, scoped, tag = 'input window, operand 7, single buffered']
    #allocation12 [shape = 's32[1]{0}', space=sflag, size = 0x4, scoped, tag = 'scoped memory for _autoencoder_call.1']
    #allocation13 [shape = 'u8[1536]{0}', space=vmem, size = 0x800, scoped, tag = 'input window, operand 8, single buffered']
    #allocation14 [shape = 'u8[98304]{0}', space=vmem, size = 0x18000, scoped, tag = 'input window, operand 9, single buffered']
    #allocation15 [shape = 's32[1]{0}', space=sflag, size = 0x4, scoped, tag = 'scoped memory for _autoencoder_call.1']
    #allocation16 [shape = 'u8[512]{0}', space=vmem, size = 0x400, scoped, tag = 'input window, operand 10, single buffered']
    #allocation17 [shape = 'u8[65536]{0}', space=vmem, size = 0x10000, scoped, tag = 'input window, operand 11, single buffered']
    #allocation18 [shape = 's32[1]{0}', space=sflag, size = 0x4, scoped, tag = 'scoped memory for _autoencoder_call.1']
    #allocation19 [shape = 'u8[1024]{0}', space=vmem, size = 0x400, scoped, tag = 'input window, operand 12, single buffered']
    #allocation20 [shape = 'u8[12288]{0}', space=vmem, size = 0x3000, scoped, tag = 'output window, operand 0, single buffered']
    #allocation21 [shape = 'u8[8192]{0}', space=vmem, size = 0x2000, scoped, tag = 'output window, operand 1, single buffered']
    #allocation22 [shape = 's32[1]{0}', space=sflag, size = 0x4, scoped, tag = 'scoped memory for _autoencoder_call.1']
    %20 = vsyncpa [#allocation3], 0
    %21 = vsyncpa [#allocation6], 0
    %22 = vsyncpa [#allocation9], 0
    %23 = vsyncpa [#allocation12], 0
    %24 = vsyncpa [#allocation15], 0
    %25 = vsyncpa [#allocation18], 0
    %26 = vsyncpa [#allocation4], 0
    %27 = vsyncpa [#allocation22], 0
    // Predicated region
    $region2: #{_autoencoder_call.1} parent=1 // pred_check
      _
    $region3: #{_autoencoder_call.1} parent=1 // pred_check_branch
      %29 = sbr.rel (0) target = $region5
    $region4: #{_autoencoder_call.1} parent=1 // pred_region
      %31 = vsyncadd [#allocation3], 0
      %s33 = sshll.u32 %s0, 4
      %s34 = int_to_ptr.hbm [resolvable:$true] %s33
      %s35 = sshll.u32 [#allocation2], 4
      %s36 = int_to_ptr.vmem [resolvable:$true] %s35
      %38 = dma.hbm_to_vmem [thread:$0]  %s34, 64, %s36, [#allocation3]
    $region5: #{_autoencoder_call.1} parent=1 // pred_fallthru
      _
    // Predicated region
    $region6: #{_autoencoder_call.1} parent=1 // pred_check
      _
    $region7: #{_autoencoder_call.1} parent=1 // pred_check_branch
      %40 = sbr.rel (0) target = $region9
    $region8: #{_autoencoder_call.1} parent=1 // pred_region
      _
    $region9: #{_autoencoder_call.1} parent=1 // pred_fallthru
      _
    // Predicated region
    $region10: #{_autoencoder_call.1} parent=1 // pred_check
      _
    $region11: #{_autoencoder_call.1} parent=1 // pred_check_branch
      %42 = sbr.rel (0) target = $region13
    $region12: #{_autoencoder_call.1} parent=1 // pred_region
      _
    $region13: #{_autoencoder_call.1} parent=1 // pred_fallthru
      _
    // Predicated region
    $region14: #{_autoencoder_call.1} parent=1 // pred_check
      _
    $region15: #{_autoencoder_call.1} parent=1 // pred_check_branch
      %44 = sbr.rel (0) target = $region17
    $region16: #{_autoencoder_call.1} parent=1 // pred_region
      %46 = vsyncadd [#allocation6], 0
      %s47 = sshll.u32 %s3, 4
      %s48 = int_to_ptr.hbm [resolvable:$true] %s47
      %s49 = sshll.u32 [#allocation5], 4
      %s50 = int_to_ptr.vmem [resolvable:$true] %s49
      %55 = dma.hbm_to_vmem [thread:$0]  %s48, 3072, %s50, [#allocation6], 192, 192, 12
    $region17: #{_autoencoder_call.1} parent=1 // pred_fallthru
      _
    // Predicated region
    $region18: #{_autoencoder_call.1} parent=1 // pred_check
      _
    $region19: #{_autoencoder_call.1} parent=1 // pred_check_branch
      %57 = sbr.rel (0) target = $region21
    $region20: #{_autoencoder_call.1} parent=1 // pred_region
      %59 = vsyncadd [#allocation6], 0
      %s61 = sshll.u32 %s4, 4
      %s62 = int_to_ptr.hbm [resolvable:$true] %s61
      %s63 = sshll.u32 [#allocation7], 4
      %s64 = int_to_ptr.vmem [resolvable:$true] %s63
      %66 = dma.hbm_to_vmem [thread:$0]  %s62, 48, %s64, [#allocation6]
    $region21: #{_autoencoder_call.1} parent=1 // pred_fallthru
      _
    // Predicated region
    $region22: #{_autoencoder_call.1} parent=1 // pred_check
      _
    $region23: #{_autoencoder_call.1} parent=1 // pred_check_branch
      %68 = sbr.rel (0) target = $region25
    $region24: #{_autoencoder_call.1} parent=1 // pred_region
      %70 = vsyncadd [#allocation9], 0
      %s71 = sshll.u32 %s5, 4
      %s72 = int_to_ptr.hbm [resolvable:$true] %s71
      %s73 = sshll.u32 [#allocation8], 4
      %s74 = int_to_ptr.vmem [resolvable:$true] %s73
      %79 = dma.hbm_to_vmem [thread:$0]  %s72, 18432, %s74, [#allocation9], 384, 384, 24
    $region25: #{_autoencoder_call.1} parent=1 // pred_fallthru
      _
    // Predicated region
    $region26: #{_autoencoder_call.1} parent=1 // pred_check
      _
    $region27: #{_autoencoder_call.1} parent=1 // pred_check_branch
      %81 = sbr.rel (0) target = $region29
    $region28: #{_autoencoder_call.1} parent=1 // pred_region
      %83 = vsyncadd [#allocation9], 0
      %s85 = sshll.u32 %s6, 4
      %s86 = int_to_ptr.hbm [resolvable:$true] %s85
      %s87 = sshll.u32 [#allocation10], 4
      %s88 = int_to_ptr.vmem [resolvable:$true] %s87
      %90 = dma.hbm_to_vmem [thread:$0]  %s86, 96, %s88, [#allocation9]
    $region29: #{_autoencoder_call.1} parent=1 // pred_fallthru
      _
    // Predicated region
    $region30: #{_autoencoder_call.1} parent=1 // pred_check
      _
    $region31: #{_autoencoder_call.1} parent=1 // pred_check_branch
      %92 = sbr.rel (0) target = $region33
    $region32: #{_autoencoder_call.1} parent=1 // pred_region
      %94 = vsyncadd [#allocation12], 0
      %s95 = sshll.u32 %s7, 4
      %s96 = int_to_ptr.hbm [resolvable:$true] %s95
      %s97 = sshll.u32 [#allocation11], 4
      %s98 = int_to_ptr.vmem [resolvable:$true] %s97
      %103 = dma.hbm_to_vmem [thread:$0]  %s96, 18432, %s98, [#allocation12], 192, 192, 12
    $region33: #{_autoencoder_call.1} parent=1 // pred_fallthru
      _
    // Predicated region
    $region34: #{_autoencoder_call.1} parent=1 // pred_check
      _
    $region35: #{_autoencoder_call.1} parent=1 // pred_check_branch
      %105 = sbr.rel (0) target = $region37
    $region36: #{_autoencoder_call.1} parent=1 // pred_region
      %107 = vsyncadd [#allocation12], 0
      %s109 = sshll.u32 %s8, 4
      %s110 = int_to_ptr.hbm [resolvable:$true] %s109
      %s111 = sshll.u32 [#allocation13], 4
      %s112 = int_to_ptr.vmem [resolvable:$true] %s111
      %114 = dma.hbm_to_vmem [thread:$0]  %s110, 48, %s112, [#allocation12]
    $region37: #{_autoencoder_call.1} parent=1 // pred_fallthru
      _
    // Predicated region
    $region38: #{_autoencoder_call.1} parent=1 // pred_check
      _
    $region39: #{_autoencoder_call.1} parent=1 // pred_check_branch
      %116 = sbr.rel (0) target = $region41
    $region40: #{_autoencoder_call.1} parent=1 // pred_region
      %118 = vsyncadd [#allocation15], 0
      %s119 = sshll.u32 %s9, 4
      %s120 = int_to_ptr.hbm [resolvable:$true] %s119
      %s121 = sshll.u32 [#allocation14], 4
      %s122 = int_to_ptr.vmem [resolvable:$true] %s121
      %127 = dma.hbm_to_vmem [thread:$0]  %s120, 3072, %s122, [#allocation15], 64, 64, 4
    $region41: #{_autoencoder_call.1} parent=1 // pred_fallthru
      _
    // Predicated region
    $region42: #{_autoencoder_call.1} parent=1 // pred_check
      _
    $region43: #{_autoencoder_call.1} parent=1 // pred_check_branch
      %129 = sbr.rel (0) target = $region45
    $region44: #{_autoencoder_call.1} parent=1 // pred_region
      %131 = vsyncadd [#allocation15], 0
      %s133 = sshll.u32 %s10, 4
      %s134 = int_to_ptr.hbm [resolvable:$true] %s133
      %s135 = sshll.u32 [#allocation16], 4
      %s136 = int_to_ptr.vmem [resolvable:$true] %s135
      %138 = dma.hbm_to_vmem [thread:$0]  %s134, 16, %s136, [#allocation15]
    $region45: #{_autoencoder_call.1} parent=1 // pred_fallthru
      _
    // Predicated region
    $region46: #{_autoencoder_call.1} parent=1 // pred_check
      _
    $region47: #{_autoencoder_call.1} parent=1 // pred_check_branch
      %140 = sbr.rel (0) target = $region49
    $region48: #{_autoencoder_call.1} parent=1 // pred_region
      %142 = vsyncadd [#allocation18], 0
      %s143 = sshll.u32 %s11, 4
      %s144 = int_to_ptr.hbm [resolvable:$true] %s143
      %s145 = sshll.u32 [#allocation17], 4
      %s146 = int_to_ptr.vmem [resolvable:$true] %s145
      %151 = dma.hbm_to_vmem [thread:$0]  %s144, 2048, %s146, [#allocation18], 128, 128, 8
    $region49: #{_autoencoder_call.1} parent=1 // pred_fallthru
      _
    // Predicated region
    $region50: #{_autoencoder_call.1} parent=1 // pred_check
      _
    $region51: #{_autoencoder_call.1} parent=1 // pred_check_branch
      %153 = sbr.rel (0) target = $region53
    $region52: #{_autoencoder_call.1} parent=1 // pred_region
      %155 = vsyncadd [#allocation18], 0
      %s157 = sshll.u32 %s12, 4
      %s158 = int_to_ptr.hbm [resolvable:$true] %s157
      %s159 = sshll.u32 [#allocation19], 4
      %s160 = int_to_ptr.vmem [resolvable:$true] %s159
      %162 = dma.hbm_to_vmem [thread:$0]  %s158, 32, %s160, [#allocation18]
    $region53: #{_autoencoder_call.1} parent=1 // pred_fallthru
      _
    // Predicated region
    $region54: #{_autoencoder_call.1} parent=1 // pred_check
      _
    $region55: #{_autoencoder_call.1} parent=1 // pred_check_branch
      %164 = sbr.rel (0) target = $region57
    $region56: #{_autoencoder_call.1} parent=1 // pred_region
      %166 = dma.done [#allocation3], 64
    $region57: #{_autoencoder_call.1} parent=1 // pred_fallthru
      _
    // Predicated region
    $region58: #{_autoencoder_call.1} parent=1 // pred_check
      _
    $region59: #{_autoencoder_call.1} parent=1 // pred_check_branch
      %168 = sbr.rel (0) target = $region61
    $region60: #{_autoencoder_call.1} parent=1 // pred_region
      %170 = dma.done [#allocation6], 3072
    $region61: #{_autoencoder_call.1} parent=1 // pred_fallthru
      _
    // Predicated region
    $region62: #{_autoencoder_call.1} parent=1 // pred_check
      _
    $region63: #{_autoencoder_call.1} parent=1 // pred_check_branch
      %172 = sbr.rel (0) target = $region65
    $region64: #{_autoencoder_call.1} parent=1 // pred_region
      %174 = dma.done [#allocation6], 48
    $region65: #{_autoencoder_call.1} parent=1 // pred_fallthru
      _
    // Predicated region
    $region66: #{_autoencoder_call.1} parent=1 // pred_check
      _
    $region67: #{_autoencoder_call.1} parent=1 // pred_check_branch
      %176 = sbr.rel (0) target = $region69
    $region68: #{_autoencoder_call.1} parent=1 // pred_region
      %178 = dma.done [#allocation9], 18432
    $region69: #{_autoencoder_call.1} parent=1 // pred_fallthru
      _
    // Predicated region
    $region70: #{_autoencoder_call.1} parent=1 // pred_check
      _
    $region71: #{_autoencoder_call.1} parent=1 // pred_check_branch
      %180 = sbr.rel (0) target = $region73
    $region72: #{_autoencoder_call.1} parent=1 // pred_region
      %182 = dma.done [#allocation9], 96
    $region73: #{_autoencoder_call.1} parent=1 // pred_fallthru
      _
    // Predicated region
    $region74: #{_autoencoder_call.1} parent=1 // pred_check
      _
    $region75: #{_autoencoder_call.1} parent=1 // pred_check_branch
      %184 = sbr.rel (0) target = $region77
    $region76: #{_autoencoder_call.1} parent=1 // pred_region
      %186 = dma.done [#allocation12], 18432
    $region77: #{_autoencoder_call.1} parent=1 // pred_fallthru
      _
    // Predicated region
    $region78: #{_autoencoder_call.1} parent=1 // pred_check
      _
    $region79: #{_autoencoder_call.1} parent=1 // pred_check_branch
      %188 = sbr.rel (0) target = $region81
    $region80: #{_autoencoder_call.1} parent=1 // pred_region
      %190 = dma.done [#allocation12], 48
    $region81: #{_autoencoder_call.1} parent=1 // pred_fallthru
      _
    // Predicated region
    $region82: #{_autoencoder_call.1} parent=1 // pred_check
      _
    $region83: #{_autoencoder_call.1} parent=1 // pred_check_branch
      %192 = sbr.rel (0) target = $region85
    $region84: #{_autoencoder_call.1} parent=1 // pred_region
      %194 = dma.done [#allocation15], 3072
    $region85: #{_autoencoder_call.1} parent=1 // pred_fallthru
      _
    // Predicated region
    $region86: #{_autoencoder_call.1} parent=1 // pred_check
      _
    $region87: #{_autoencoder_call.1} parent=1 // pred_check_branch
      %196 = sbr.rel (0) target = $region89
    $region88: #{_autoencoder_call.1} parent=1 // pred_region
      %198 = dma.done [#allocation15], 16
    $region89: #{_autoencoder_call.1} parent=1 // pred_fallthru
      _
    // Predicated region
    $region90: #{_autoencoder_call.1} parent=1 // pred_check
      _
    $region91: #{_autoencoder_call.1} parent=1 // pred_check_branch
      %200 = sbr.rel (0) target = $region93
    $region92: #{_autoencoder_call.1} parent=1 // pred_region
      %202 = dma.done [#allocation18], 2048
    $region93: #{_autoencoder_call.1} parent=1 // pred_fallthru
      _
    // Predicated region
    $region94: #{_autoencoder_call.1} parent=1 // pred_check
      _
    $region95: #{_autoencoder_call.1} parent=1 // pred_check_branch
      %204 = sbr.rel (0) target = $region97
    $region96: #{_autoencoder_call.1} parent=1 // pred_region
      %206 = dma.done [#allocation18], 32
    $region97: #{_autoencoder_call.1} parent=1 // pred_fallthru
      _
    %v208 = vld [vmem:[#allocation2] sm:$0xf]
    %v209 = vld [vmem:[%s1] sm:$0xf]
    %v210 = vld [vmem:[%s1 + $0x4] sm:$0xf]
    %v211 = vld [vmem:[%s2] sm:$0x1]
    %v213 = vperm.slane %v211, 0
    %v217 = vunpack.c.l.b16 %v209
    %v218 = vunpack.c.l.b16 %v210
    %v219 = vpack.c.b16 %v218, %v217
    %vm221 = vcmask 130048
    %v223 = vsel %vm221, %v208, 0
    %225 = vmatpush.bf16.msra.mxu0 0
    %226 = vmatpush.bf16.msra.mxu0 0
    %227 = vmatpush.bf16.msra.mxu0 0
    %228 = vmatpush.bf16.msra.mxu0 0
    %229 = vmatpush.bf16.msra.mxu0 0
    %230 = vmatpush.bf16.msra.mxu0 0
    %231 = vmatpush.bf16.msra.mxu0 0
    %232 = vmatpush.bf16.msra.mxu0 %v219
    %233 = vmatmul.bf16.gmra.mxu0 %v223
    %v234 = vpop.f32.mrf.mxu0
    %v235 = vadd.f32 %v213, %v234
    %v236 = vpop.f32.mrf.mxu0
    %237 = vdwg.mxu0
    %v238 = vmax.f32 %v235, 0.0
    %v239 = vpack.c.bf16 %v238, %v238
    %v240 = vld [vmem:[#allocation5] sm:$0xff]
    %v241 = vld [vmem:[#allocation5 + $0x8] sm:$0xf]
    %v242 = vld [vmem:[#allocation5 + $0xc] sm:$0xff]
    %v243 = vld [vmem:[#allocation5 + $0x14] sm:$0xf]
    %v244 = vld [vmem:[#allocation5 + $0x18] sm:$0xff]
    %v245 = vld [vmem:[#allocation5 + $0x20] sm:$0xf]
    %v246 = vld [vmem:[#allocation5 + $0x24] sm:$0xff]
    %v247 = vld [vmem:[#allocation5 + $0x2c] sm:$0xf]
    %v248 = vld [vmem:[#allocation5 + $0x30] sm:$0xff]
    %v249 = vld [vmem:[#allocation5 + $0x38] sm:$0xf]
    %v250 = vld [vmem:[#allocation5 + $0x3c] sm:$0xff]
    %v251 = vld [vmem:[#allocation5 + $0x44] sm:$0xf]
    %v252 = vld [vmem:[#allocation5 + $0x48] sm:$0xff]
    %v253 = vld [vmem:[#allocation5 + $0x50] sm:$0xf]
    %v254 = vld [vmem:[#allocation5 + $0x54] sm:$0xff]
    %v255 = vld [vmem:[#allocation5 + $0x5c] sm:$0xf]
    %v256 = vld [vmem:[#allocation5 + $0x60] sm:$0xff]
    %v257 = vld [vmem:[#allocation5 + $0x68] sm:$0xf]
    %v258 = vld [vmem:[#allocation5 + $0x6c] sm:$0xff]
    %v259 = vld [vmem:[#allocation5 + $0x74] sm:$0xf]
    %v260 = vld [vmem:[#allocation5 + $0x78] sm:$0xff]
    %v261 = vld [vmem:[#allocation5 + $0x80] sm:$0xf]
    %v262 = vld [vmem:[#allocation5 + $0x84] sm:$0xff]
    %v263 = vld [vmem:[#allocation5 + $0x8c] sm:$0xf]
    %v264 = vld [vmem:[#allocation5 + $0x90] sm:$0xff]
    %v265 = vld [vmem:[#allocation5 + $0x98] sm:$0xf]
    %v266 = vld [vmem:[#allocation5 + $0x9c] sm:$0xff]
    %v267 = vld [vmem:[#allocation5 + $0xa4] sm:$0xf]
    %v268 = vld [vmem:[#allocation5 + $0xa8] sm:$0xff]
    %v269 = vld [vmem:[#allocation5 + $0xb0] sm:$0xf]
    %v270 = vld [vmem:[#allocation5 + $0xb4] sm:$0xff]
    %v271 = vld [vmem:[#allocation5 + $0xbc] sm:$0xf]
    %v272 = vld [vmem:[#allocation7] sm:$0x7]
    %v274 = vperm.slane %v272, 0
    %v275 = vperm.slane %v272, 1
    %v276 = vperm.slane %v272, 2
    %v312 = vunpack.c.l.b16 %v240
    %v313 = vunpack.c.h.b16 %v240
    %v314 = vunpack.c.l.b16 %v241
    %v315 = vunpack.c.l.b16 %v242
    %v316 = vunpack.c.h.b16 %v242
    %v317 = vunpack.c.l.b16 %v243
    %v318 = vunpack.c.l.b16 %v244
    %v319 = vunpack.c.h.b16 %v244
    %v320 = vunpack.c.l.b16 %v245
    %v321 = vunpack.c.l.b16 %v246
    %v322 = vunpack.c.h.b16 %v246
    %v323 = vunpack.c.l.b16 %v247
    %v324 = vunpack.c.l.b16 %v248
    %v325 = vunpack.c.h.b16 %v248
    %v326 = vunpack.c.l.b16 %v249
    %v327 = vunpack.c.l.b16 %v250
    %v328 = vunpack.c.h.b16 %v250
    %v329 = vunpack.c.l.b16 %v251
    %v330 = vunpack.c.l.b16 %v252
    %v331 = vunpack.c.h.b16 %v252
    %v332 = vunpack.c.l.b16 %v253
    %v333 = vunpack.c.l.b16 %v254
    %v334 = vunpack.c.h.b16 %v254
    %v335 = vunpack.c.l.b16 %v255
    %v336 = vunpack.c.l.b16 %v256
    %v337 = vunpack.c.h.b16 %v256
    %v338 = vunpack.c.l.b16 %v257
    %v339 = vunpack.c.l.b16 %v258
    %v340 = vunpack.c.h.b16 %v258
    %v341 = vunpack.c.l.b16 %v259
    %v342 = vunpack.c.l.b16 %v260
    %v343 = vunpack.c.h.b16 %v260
    %v344 = vunpack.c.l.b16 %v261
    %v345 = vunpack.c.l.b16 %v262
    %v346 = vunpack.c.h.b16 %v262
    %v347 = vunpack.c.l.b16 %v263
    %v348 = vunpack.c.l.b16 %v264
    %v349 = vunpack.c.h.b16 %v264
    %v350 = vunpack.c.l.b16 %v265
    %v351 = vunpack.c.l.b16 %v266
    %v352 = vunpack.c.h.b16 %v266
    %v353 = vunpack.c.l.b16 %v267
    %v354 = vunpack.c.l.b16 %v268
    %v355 = vunpack.c.h.b16 %v268
    %v356 = vunpack.c.l.b16 %v269
    %v357 = vunpack.c.l.b16 %v270
    %v358 = vunpack.c.h.b16 %v270
    %v359 = vunpack.c.l.b16 %v271
    %v360 = vpack.c.b16 %v315, %v312
    %v361 = vpack.c.b16 %v316, %v313
    %v362 = vpack.c.b16 %v317, %v314
    %v363 = vpack.c.b16 %v321, %v318
    %v364 = vpack.c.b16 %v322, %v319
    %v365 = vpack.c.b16 %v323, %v320
    %v366 = vpack.c.b16 %v327, %v324
    %v367 = vpack.c.b16 %v328, %v325
    %v368 = vpack.c.b16 %v329, %v326
    %v369 = vpack.c.b16 %v333, %v330
    %v370 = vpack.c.b16 %v334, %v331
    %v371 = vpack.c.b16 %v335, %v332
    %v372 = vpack.c.b16 %v339, %v336
    %v373 = vpack.c.b16 %v340, %v337
    %v374 = vpack.c.b16 %v341, %v338
    %v375 = vpack.c.b16 %v345, %v342
    %v376 = vpack.c.b16 %v346, %v343
    %v377 = vpack.c.b16 %v347, %v344
    %v378 = vpack.c.b16 %v351, %v348
    %v379 = vpack.c.b16 %v352, %v349
    %v380 = vpack.c.b16 %v353, %v350
    %v381 = vpack.c.b16 %v357, %v354
    %v382 = vpack.c.b16 %v358, %v355
    %v383 = vpack.c.b16 %v359, %v356
    %408 = vmatpush.bf16.msra.mxu0 %v381
    %409 = vmatpush.bf16.msra.mxu0 %v378
    %410 = vmatpush.bf16.msra.mxu0 %v375
    %411 = vmatpush.bf16.msra.mxu0 %v372
    %412 = vmatpush.bf16.msra.mxu0 %v369
    %413 = vmatpush.bf16.msra.mxu0 %v366
    %414 = vmatpush.bf16.msra.mxu0 %v363
    %415 = vmatpush.bf16.msra.mxu0 %v360
    %416 = vmatmul.bf16.gmra.mxu0 %v239
    %v417 = vpop.f32.mrf.mxu0
    %v418 = vadd.f32 %v274, %v417
    %v419 = vpop.f32.mrf.mxu0
    %420 = vdwg.mxu0
    %421 = vmatpush.bf16.msra.mxu0 %v382
    %422 = vmatpush.bf16.msra.mxu0 %v379
    %423 = vmatpush.bf16.msra.mxu0 %v376
    %424 = vmatpush.bf16.msra.mxu0 %v373
    %425 = vmatpush.bf16.msra.mxu0 %v370
    %426 = vmatpush.bf16.msra.mxu0 %v367
    %427 = vmatpush.bf16.msra.mxu0 %v364
    %428 = vmatpush.bf16.msra.mxu0 %v361
    %429 = vmatmul.bf16.gmra.mxu0 %v239
    %v430 = vpop.f32.mrf.mxu0
    %v431 = vadd.f32 %v275, %v430
    %v432 = vpop.f32.mrf.mxu0
    %433 = vdwg.mxu0
    %434 = vmatpush.bf16.msra.mxu0 %v383
    %435 = vmatpush.bf16.msra.mxu0 %v380
    %436 = vmatpush.bf16.msra.mxu0 %v377
    %437 = vmatpush.bf16.msra.mxu0 %v374
    %438 = vmatpush.bf16.msra.mxu0 %v371
    %439 = vmatpush.bf16.msra.mxu0 %v368
    %440 = vmatpush.bf16.msra.mxu0 %v365
    %441 = vmatpush.bf16.msra.mxu0 %v362
    %442 = vmatmul.bf16.gmra.mxu0 %v239
    %v443 = vpop.f32.mrf.mxu0
    %v444 = vadd.f32 %v276, %v443
    %v445 = vpop.f32.mrf.mxu0
    %446 = vdwg.mxu0
    %v447 = vmax.f32 %v418, 0.0
    %v448 = vmax.f32 %v431, 0.0
    %v449 = vmax.f32 %v444, 0.0
    %v450 = vpack.c.bf16 %v447, %v447
    %v451 = vpack.c.bf16 %v448, %v448
    %v452 = vpack.c.bf16 %v449, %v449
    %v453 = vld [vmem:[#allocation8] sm:$0xff]
    %v454 = vld [vmem:[#allocation8 + $0x8] sm:$0xff]
    %v455 = vld [vmem:[#allocation8 + $0x10] sm:$0xff]
    %v456 = vld [vmem:[#allocation8 + $0x18] sm:$0xff]
    %v457 = vld [vmem:[#allocation8 + $0x20] sm:$0xff]
    %v458 = vld [vmem:[#allocation8 + $0x28] sm:$0xff]
    %v459 = vld [vmem:[#allocation8 + $0x30] sm:$0xff]
    %v460 = vld [vmem:[#allocation8 + $0x38] sm:$0xff]
    %v461 = vld [vmem:[#allocation8 + $0x40] sm:$0xff]
    %v462 = vld [vmem:[#allocation8 + $0x48] sm:$0xff]
    %v463 = vld [vmem:[#allocation8 + $0x50] sm:$0xff]
    %v464 = vld [vmem:[#allocation8 + $0x58] sm:$0xff]
    %v465 = vld [vmem:[#allocation8 + $0x60] sm:$0xff]
    %v466 = vld [vmem:[#allocation8 + $0x68] sm:$0xff]
    %v467 = vld [vmem:[#allocation8 + $0x70] sm:$0xff]
    %v468 = vld [vmem:[#allocation8 + $0x78] sm:$0xff]
    %v469 = vld [vmem:[#allocation8 + $0x80] sm:$0xff]
    %v470 = vld [vmem:[#allocation8 + $0x88] sm:$0xff]
    %v471 = vld [vmem:[#allocation8 + $0x90] sm:$0xff]
    %v472 = vld [vmem:[#allocation8 + $0x98] sm:$0xff]
    %v473 = vld [vmem:[#allocation8 + $0xa0] sm:$0xff]
    %v474 = vld [vmem:[#allocation8 + $0xa8] sm:$0xff]
    %v475 = vld [vmem:[#allocation8 + $0xb0] sm:$0xff]
    %v476 = vld [vmem:[#allocation8 + $0xb8] sm:$0xff]
    %v477 = vld [vmem:[#allocation8 + $0xc0] sm:$0xff]
    %v478 = vld [vmem:[#allocation8 + $0xc8] sm:$0xff]
    %v479 = vld [vmem:[#allocation8 + $0xd0] sm:$0xff]
    %v480 = vld [vmem:[#allocation8 + $0xd8] sm:$0xff]
    %v481 = vld [vmem:[#allocation8 + $0xe0] sm:$0xff]
    %v482 = vld [vmem:[#allocation8 + $0xe8] sm:$0xff]
    %v483 = vld [vmem:[#allocation8 + $0xf0] sm:$0xff]
    %v484 = vld [vmem:[#allocation8 + $0xf8] sm:$0xff]
    %v485 = vld [vmem:[#allocation8 + $0x100] sm:$0xff]
    %v486 = vld [vmem:[#allocation8 + $0x108] sm:$0xff]
    %v487 = vld [vmem:[#allocation8 + $0x110] sm:$0xff]
    %v488 = vld [vmem:[#allocation8 + $0x118] sm:$0xff]
    %v489 = vld [vmem:[#allocation8 + $0x120] sm:$0xff]
    %v490 = vld [vmem:[#allocation8 + $0x128] sm:$0xff]
    %v491 = vld [vmem:[#allocation8 + $0x130] sm:$0xff]
    %v492 = vld [vmem:[#allocation8 + $0x138] sm:$0xff]
    %v493 = vld [vmem:[#allocation8 + $0x140] sm:$0xff]
    %v494 = vld [vmem:[#allocation8 + $0x148] sm:$0xff]
    %v495 = vld [vmem:[#allocation8 + $0x150] sm:$0xff]
    %v496 = vld [vmem:[#allocation8 + $0x158] sm:$0xff]
    %v497 = vld [vmem:[#allocation8 + $0x160] sm:$0xff]
    %v498 = vld [vmem:[#allocation8 + $0x168] sm:$0xff]
    %v499 = vld [vmem:[#allocation8 + $0x170] sm:$0xff]
    %v500 = vld [vmem:[#allocation8 + $0x178] sm:$0xff]
    %v501 = vld [vmem:[#allocation8 + $0x180] sm:$0xff]
    %v502 = vld [vmem:[#allocation8 + $0x188] sm:$0xff]
    %v503 = vld [vmem:[#allocation8 + $0x190] sm:$0xff]
    %v504 = vld [vmem:[#allocation8 + $0x198] sm:$0xff]
    %v505 = vld [vmem:[#allocation8 + $0x1a0] sm:$0xff]
    %v506 = vld [vmem:[#allocation8 + $0x1a8] sm:$0xff]
    %v507 = vld [vmem:[#allocation8 + $0x1b0] sm:$0xff]
    %v508 = vld [vmem:[#allocation8 + $0x1b8] sm:$0xff]
    %v509 = vld [vmem:[#allocation8 + $0x1c0] sm:$0xff]
    %v510 = vld [vmem:[#allocation8 + $0x1c8] sm:$0xff]
    %v511 = vld [vmem:[#allocation8 + $0x1d0] sm:$0xff]
    %v512 = vld [vmem:[#allocation8 + $0x1d8] sm:$0xff]
    %v513 = vld [vmem:[#allocation8 + $0x1e0] sm:$0xff]
    %v514 = vld [vmem:[#allocation8 + $0x1e8] sm:$0xff]
    %v515 = vld [vmem:[#allocation8 + $0x1f0] sm:$0xff]
    %v516 = vld [vmem:[#allocation8 + $0x1f8] sm:$0xff]
    %v517 = vld [vmem:[#allocation8 + $0x200] sm:$0xff]
    %v518 = vld [vmem:[#allocation8 + $0x208] sm:$0xff]
    %v519 = vld [vmem:[#allocation8 + $0x210] sm:$0xff]
    %v520 = vld [vmem:[#allocation8 + $0x218] sm:$0xff]
    %v521 = vld [vmem:[#allocation8 + $0x220] sm:$0xff]
    %v522 = vld [vmem:[#allocation8 + $0x228] sm:$0xff]
    %v523 = vld [vmem:[#allocation8 + $0x230] sm:$0xff]
    %v524 = vld [vmem:[#allocation8 + $0x238] sm:$0xff]
    %v525 = vld [vmem:[#allocation8 + $0x240] sm:$0xff]
    %v526 = vld [vmem:[#allocation8 + $0x248] sm:$0xff]
    %v527 = vld [vmem:[#allocation8 + $0x250] sm:$0xff]
    %v528 = vld [vmem:[#allocation8 + $0x258] sm:$0xff]
    %v529 = vld [vmem:[#allocation8 + $0x260] sm:$0xff]
    %v530 = vld [vmem:[#allocation8 + $0x268] sm:$0xff]
    %v531 = vld [vmem:[#allocation8 + $0x270] sm:$0xff]
    %v532 = vld [vmem:[#allocation8 + $0x278] sm:$0xff]
    %v533 = vld [vmem:[#allocation8 + $0x280] sm:$0xff]
    %v534 = vld [vmem:[#allocation8 + $0x288] sm:$0xff]
    %v535 = vld [vmem:[#allocation8 + $0x290] sm:$0xff]
    %v536 = vld [vmem:[#allocation8 + $0x298] sm:$0xff]
    %v537 = vld [vmem:[#allocation8 + $0x2a0] sm:$0xff]
    %v538 = vld [vmem:[#allocation8 + $0x2a8] sm:$0xff]
    %v539 = vld [vmem:[#allocation8 + $0x2b0] sm:$0xff]
    %v540 = vld [vmem:[#allocation8 + $0x2b8] sm:$0xff]
    %v541 = vld [vmem:[#allocation8 + $0x2c0] sm:$0xff]
    %v542 = vld [vmem:[#allocation8 + $0x2c8] sm:$0xff]
    %v543 = vld [vmem:[#allocation8 + $0x2d0] sm:$0xff]
    %v544 = vld [vmem:[#allocation8 + $0x2d8] sm:$0xff]
    %v545 = vld [vmem:[#allocation8 + $0x2e0] sm:$0xff]
    %v546 = vld [vmem:[#allocation8 + $0x2e8] sm:$0xff]
    %v547 = vld [vmem:[#allocation8 + $0x2f0] sm:$0xff]
    %v548 = vld [vmem:[#allocation8 + $0x2f8] sm:$0xff]
    %v549 = vld [vmem:[#allocation8 + $0x300] sm:$0xff]
    %v550 = vld [vmem:[#allocation8 + $0x308] sm:$0xff]
    %v551 = vld [vmem:[#allocation8 + $0x310] sm:$0xff]
    %v552 = vld [vmem:[#allocation8 + $0x318] sm:$0xff]
    %v553 = vld [vmem:[#allocation8 + $0x320] sm:$0xff]
    %v554 = vld [vmem:[#allocation8 + $0x328] sm:$0xff]
    %v555 = vld [vmem:[#allocation8 + $0x330] sm:$0xff]
    %v556 = vld [vmem:[#allocation8 + $0x338] sm:$0xff]
    %v557 = vld [vmem:[#allocation8 + $0x340] sm:$0xff]
    %v558 = vld [vmem:[#allocation8 + $0x348] sm:$0xff]
    %v559 = vld [vmem:[#allocation8 + $0x350] sm:$0xff]
    %v560 = vld [vmem:[#allocation8 + $0x358] sm:$0xff]
    %v561 = vld [vmem:[#allocation8 + $0x360] sm:$0xff]
    %v562 = vld [vmem:[#allocation8 + $0x368] sm:$0xff]
    %v563 = vld [vmem:[#allocation8 + $0x370] sm:$0xff]
    %v564 = vld [vmem:[#allocation8 + $0x378] sm:$0xff]
    %v565 = vld [vmem:[#allocation8 + $0x380] sm:$0xff]
    %v566 = vld [vmem:[#allocation8 + $0x388] sm:$0xff]
    %v567 = vld [vmem:[#allocation8 + $0x390] sm:$0xff]
    %v568 = vld [vmem:[#allocation8 + $0x398] sm:$0xff]
    %v569 = vld [vmem:[#allocation8 + $0x3a0] sm:$0xff]
    %v570 = vld [vmem:[#allocation8 + $0x3a8] sm:$0xff]
    %v571 = vld [vmem:[#allocation8 + $0x3b0] sm:$0xff]
    %v572 = vld [vmem:[#allocation8 + $0x3b8] sm:$0xff]
    %v573 = vld [vmem:[#allocation8 + $0x3c0] sm:$0xff]
    %v574 = vld [vmem:[#allocation8 + $0x3c8] sm:$0xff]
    %v575 = vld [vmem:[#allocation8 + $0x3d0] sm:$0xff]
    %v576 = vld [vmem:[#allocation8 + $0x3d8] sm:$0xff]
    %v577 = vld [vmem:[#allocation8 + $0x3e0] sm:$0xff]
    %v578 = vld [vmem:[#allocation8 + $0x3e8] sm:$0xff]
    %v579 = vld [vmem:[#allocation8 + $0x3f0] sm:$0xff]
    %v580 = vld [vmem:[#allocation8 + $0x3f8] sm:$0xff]
    %v581 = vld [vmem:[#allocation8 + $0x400] sm:$0xff]
    %v582 = vld [vmem:[#allocation8 + $0x408] sm:$0xff]
    %v583 = vld [vmem:[#allocation8 + $0x410] sm:$0xff]
    %v584 = vld [vmem:[#allocation8 + $0x418] sm:$0xff]
    %v585 = vld [vmem:[#allocation8 + $0x420] sm:$0xff]
    %v586 = vld [vmem:[#allocation8 + $0x428] sm:$0xff]
    %v587 = vld [vmem:[#allocation8 + $0x430] sm:$0xff]
    %v588 = vld [vmem:[#allocation8 + $0x438] sm:$0xff]
    %v589 = vld [vmem:[#allocation8 + $0x440] sm:$0xff]
    %v590 = vld [vmem:[#allocation8 + $0x448] sm:$0xff]
    %v591 = vld [vmem:[#allocation8 + $0x450] sm:$0xff]
    %v592 = vld [vmem:[#allocation8 + $0x458] sm:$0xff]
    %v593 = vld [vmem:[#allocation8 + $0x460] sm:$0xff]
    %v594 = vld [vmem:[#allocation8 + $0x468] sm:$0xff]
    %v595 = vld [vmem:[#allocation8 + $0x470] sm:$0xff]
    %v596 = vld [vmem:[#allocation8 + $0x478] sm:$0xff]
    %v597 = vld [vmem:[#allocation10] sm:$0x3f]
    %v599 = vperm.slane %v597, 0
    %v600 = vperm.slane %v597, 1
    %v601 = vperm.slane %v597, 2
    %v602 = vperm.slane %v597, 3
    %v603 = vperm.slane %v597, 4
    %v604 = vperm.slane %v597, 5
    %v755 = vunpack.c.l.b16 %v453
    %v756 = vunpack.c.h.b16 %v453
    %v757 = vunpack.c.l.b16 %v454
    %v758 = vunpack.c.h.b16 %v454
    %v759 = vunpack.c.l.b16 %v455
    %v760 = vunpack.c.h.b16 %v455
    %v761 = vunpack.c.l.b16 %v456
    %v762 = vunpack.c.h.b16 %v456
    %v763 = vunpack.c.l.b16 %v457
    %v764 = vunpack.c.h.b16 %v457
    %v765 = vunpack.c.l.b16 %v458
    %v766 = vunpack.c.h.b16 %v458
    %v767 = vunpack.c.l.b16 %v459
    %v768 = vunpack.c.h.b16 %v459
    %v769 = vunpack.c.l.b16 %v460
    %v770 = vunpack.c.h.b16 %v460
    %v771 = vunpack.c.l.b16 %v461
    %v772 = vunpack.c.h.b16 %v461
    %v773 = vunpack.c.l.b16 %v462
    %v774 = vunpack.c.h.b16 %v462
    %v775 = vunpack.c.l.b16 %v463
    %v776 = vunpack.c.h.b16 %v463
    %v777 = vunpack.c.l.b16 %v464
    %v778 = vunpack.c.h.b16 %v464
    %v779 = vunpack.c.l.b16 %v465
    %v780 = vunpack.c.h.b16 %v465
    %v781 = vunpack.c.l.b16 %v466
    %v782 = vunpack.c.h.b16 %v466
    %v783 = vunpack.c.l.b16 %v467
    %v784 = vunpack.c.h.b16 %v467
    %v785 = vunpack.c.l.b16 %v468
    %v786 = vunpack.c.h.b16 %v468
    %v787 = vunpack.c.l.b16 %v469
    %v788 = vunpack.c.h.b16 %v469
    %v789 = vunpack.c.l.b16 %v470
    %v790 = vunpack.c.h.b16 %v470
    %v791 = vunpack.c.l.b16 %v471
    %v792 = vunpack.c.h.b16 %v471
    %v793 = vunpack.c.l.b16 %v472
    %v794 = vunpack.c.h.b16 %v472
    %v795 = vunpack.c.l.b16 %v473
    %v796 = vunpack.c.h.b16 %v473
    %v797 = vunpack.c.l.b16 %v474
    %v798 = vunpack.c.h.b16 %v474
    %v799 = vunpack.c.l.b16 %v475
    %v800 = vunpack.c.h.b16 %v475
    %v801 = vunpack.c.l.b16 %v476
    %v802 = vunpack.c.h.b16 %v476
    %v803 = vunpack.c.l.b16 %v477
    %v804 = vunpack.c.h.b16 %v477
    %v805 = vunpack.c.l.b16 %v478
    %v806 = vunpack.c.h.b16 %v478
    %v807 = vunpack.c.l.b16 %v479
    %v808 = vunpack.c.h.b16 %v479
    %v809 = vunpack.c.l.b16 %v480
    %v810 = vunpack.c.h.b16 %v480
    %v811 = vunpack.c.l.b16 %v481
    %v812 = vunpack.c.h.b16 %v481
    %v813 = vunpack.c.l.b16 %v482
    %v814 = vunpack.c.h.b16 %v482
    %v815 = vunpack.c.l.b16 %v483
    %v816 = vunpack.c.h.b16 %v483
    %v817 = vunpack.c.l.b16 %v484
    %v818 = vunpack.c.h.b16 %v484
    %v819 = vunpack.c.l.b16 %v485
    %v820 = vunpack.c.h.b16 %v485
    %v821 = vunpack.c.l.b16 %v486
    %v822 = vunpack.c.h.b16 %v486
    %v823 = vunpack.c.l.b16 %v487
    %v824 = vunpack.c.h.b16 %v487
    %v825 = vunpack.c.l.b16 %v488
    %v826 = vunpack.c.h.b16 %v488
    %v827 = vunpack.c.l.b16 %v489
    %v828 = vunpack.c.h.b16 %v489
    %v829 = vunpack.c.l.b16 %v490
    %v830 = vunpack.c.h.b16 %v490
    %v831 = vunpack.c.l.b16 %v491
    %v832 = vunpack.c.h.b16 %v491
    %v833 = vunpack.c.l.b16 %v492
    %v834 = vunpack.c.h.b16 %v492
    %v835 = vunpack.c.l.b16 %v493
    %v836 = vunpack.c.h.b16 %v493
    %v837 = vunpack.c.l.b16 %v494
    %v838 = vunpack.c.h.b16 %v494
    %v839 = vunpack.c.l.b16 %v495
    %v840 = vunpack.c.h.b16 %v495
    %v841 = vunpack.c.l.b16 %v496
    %v842 = vunpack.c.h.b16 %v496
    %v843 = vunpack.c.l.b16 %v497
    %v844 = vunpack.c.h.b16 %v497
    %v845 = vunpack.c.l.b16 %v498
    %v846 = vunpack.c.h.b16 %v498
    %v847 = vunpack.c.l.b16 %v499
    %v848 = vunpack.c.h.b16 %v499
    %v849 = vunpack.c.l.b16 %v500
    %v850 = vunpack.c.h.b16 %v500
    %v851 = vunpack.c.l.b16 %v501
    %v852 = vunpack.c.h.b16 %v501
    %v853 = vunpack.c.l.b16 %v502
    %v854 = vunpack.c.h.b16 %v502
    %v855 = vunpack.c.l.b16 %v503
    %v856 = vunpack.c.h.b16 %v503
    %v857 = vunpack.c.l.b16 %v504
    %v858 = vunpack.c.h.b16 %v504
    %v859 = vunpack.c.l.b16 %v505
    %v860 = vunpack.c.h.b16 %v505
    %v861 = vunpack.c.l.b16 %v506
    %v862 = vunpack.c.h.b16 %v506
    %v863 = vunpack.c.l.b16 %v507
    %v864 = vunpack.c.h.b16 %v507
    %v865 = vunpack.c.l.b16 %v508
    %v866 = vunpack.c.h.b16 %v508
    %v867 = vunpack.c.l.b16 %v509
    %v868 = vunpack.c.h.b16 %v509
    %v869 = vunpack.c.l.b16 %v510
    %v870 = vunpack.c.h.b16 %v510
    %v871 = vunpack.c.l.b16 %v511
    %v872 = vunpack.c.h.b16 %v511
    %v873 = vunpack.c.l.b16 %v512
    %v874 = vunpack.c.h.b16 %v512
    %v875 = vunpack.c.l.b16 %v513
    %v876 = vunpack.c.h.b16 %v513
    %v877 = vunpack.c.l.b16 %v514
    %v878 = vunpack.c.h.b16 %v514
    %v879 = vunpack.c.l.b16 %v515
    %v880 = vunpack.c.h.b16 %v515
    %v881 = vunpack.c.l.b16 %v516
    %v882 = vunpack.c.h.b16 %v516
    %v883 = vunpack.c.l.b16 %v517
    %v884 = vunpack.c.h.b16 %v517
    %v885 = vunpack.c.l.b16 %v518
    %v886 = vunpack.c.h.b16 %v518
    %v887 = vunpack.c.l.b16 %v519
    %v888 = vunpack.c.h.b16 %v519
    %v889 = vunpack.c.l.b16 %v520
    %v890 = vunpack.c.h.b16 %v520
    %v891 = vunpack.c.l.b16 %v521
    %v892 = vunpack.c.h.b16 %v521
    %v893 = vunpack.c.l.b16 %v522
    %v894 = vunpack.c.h.b16 %v522
    %v895 = vunpack.c.l.b16 %v523
    %v896 = vunpack.c.h.b16 %v523
    %v897 = vunpack.c.l.b16 %v524
    %v898 = vunpack.c.h.b16 %v524
    %v899 = vunpack.c.l.b16 %v525
    %v900 = vunpack.c.h.b16 %v525
    %v901 = vunpack.c.l.b16 %v526
    %v902 = vunpack.c.h.b16 %v526
    %v903 = vunpack.c.l.b16 %v527
    %v904 = vunpack.c.h.b16 %v527
    %v905 = vunpack.c.l.b16 %v528
    %v906 = vunpack.c.h.b16 %v528
    %v907 = vunpack.c.l.b16 %v529
    %v908 = vunpack.c.h.b16 %v529
    %v909 = vunpack.c.l.b16 %v530
    %v910 = vunpack.c.h.b16 %v530
    %v911 = vunpack.c.l.b16 %v531
    %v912 = vunpack.c.h.b16 %v531
    %v913 = vunpack.c.l.b16 %v532
    %v914 = vunpack.c.h.b16 %v532
    %v915 = vunpack.c.l.b16 %v533
    %v916 = vunpack.c.h.b16 %v533
    %v917 = vunpack.c.l.b16 %v534
    %v918 = vunpack.c.h.b16 %v534
    %v919 = vunpack.c.l.b16 %v535
    %v920 = vunpack.c.h.b16 %v535
    %v921 = vunpack.c.l.b16 %v536
    %v922 = vunpack.c.h.b16 %v536
    %v923 = vunpack.c.l.b16 %v537
    %v924 = vunpack.c.h.b16 %v537
    %v925 = vunpack.c.l.b16 %v538
    %v926 = vunpack.c.h.b16 %v538
    %v927 = vunpack.c.l.b16 %v539
    %v928 = vunpack.c.h.b16 %v539
    %v929 = vunpack.c.l.b16 %v540
    %v930 = vunpack.c.h.b16 %v540
    %v931 = vunpack.c.l.b16 %v541
    %v932 = vunpack.c.h.b16 %v541
    %v933 = vunpack.c.l.b16 %v542
    %v934 = vunpack.c.h.b16 %v542
    %v935 = vunpack.c.l.b16 %v543
    %v936 = vunpack.c.h.b16 %v543
    %v937 = vunpack.c.l.b16 %v544
    %v938 = vunpack.c.h.b16 %v544
    %v939 = vunpack.c.l.b16 %v545
    %v940 = vunpack.c.h.b16 %v545
    %v941 = vunpack.c.l.b16 %v546
    %v942 = vunpack.c.h.b16 %v546
    %v943 = vunpack.c.l.b16 %v547
    %v944 = vunpack.c.h.b16 %v547
    %v945 = vunpack.c.l.b16 %v548
    %v946 = vunpack.c.h.b16 %v548
    %v947 = vunpack.c.l.b16 %v549
    %v948 = vunpack.c.h.b16 %v549
    %v949 = vunpack.c.l.b16 %v550
    %v950 = vunpack.c.h.b16 %v550
    %v951 = vunpack.c.l.b16 %v551
    %v952 = vunpack.c.h.b16 %v551
    %v953 = vunpack.c.l.b16 %v552
    %v954 = vunpack.c.h.b16 %v552
    %v955 = vunpack.c.l.b16 %v553
    %v956 = vunpack.c.h.b16 %v553
    %v957 = vunpack.c.l.b16 %v554
    %v958 = vunpack.c.h.b16 %v554
    %v959 = vunpack.c.l.b16 %v555
    %v960 = vunpack.c.h.b16 %v555
    %v961 = vunpack.c.l.b16 %v556
    %v962 = vunpack.c.h.b16 %v556
    %v963 = vunpack.c.l.b16 %v557
    %v964 = vunpack.c.h.b16 %v557
    %v965 = vunpack.c.l.b16 %v558
    %v966 = vunpack.c.h.b16 %v558
    %v967 = vunpack.c.l.b16 %v559
    %v968 = vunpack.c.h.b16 %v559
    %v969 = vunpack.c.l.b16 %v560
    %v970 = vunpack.c.h.b16 %v560
    %v971 = vunpack.c.l.b16 %v561
    %v972 = vunpack.c.h.b16 %v561
    %v973 = vunpack.c.l.b16 %v562
    %v974 = vunpack.c.h.b16 %v562
    %v975 = vunpack.c.l.b16 %v563
    %v976 = vunpack.c.h.b16 %v563
    %v977 = vunpack.c.l.b16 %v564
    %v978 = vunpack.c.h.b16 %v564
    %v979 = vunpack.c.l.b16 %v565
    %v980 = vunpack.c.h.b16 %v565
    %v981 = vunpack.c.l.b16 %v566
    %v982 = vunpack.c.h.b16 %v566
    %v983 = vunpack.c.l.b16 %v567
    %v984 = vunpack.c.h.b16 %v567
    %v985 = vunpack.c.l.b16 %v568
    %v986 = vunpack.c.h.b16 %v568
    %v987 = vunpack.c.l.b16 %v569
    %v988 = vunpack.c.h.b16 %v569
    %v989 = vunpack.c.l.b16 %v570
    %v990 = vunpack.c.h.b16 %v570
    %v991 = vunpack.c.l.b16 %v571
    %v992 = vunpack.c.h.b16 %v571
    %v993 = vunpack.c.l.b16 %v572
    %v994 = vunpack.c.h.b16 %v572
    %v995 = vunpack.c.l.b16 %v573
    %v996 = vunpack.c.h.b16 %v573
    %v997 = vunpack.c.l.b16 %v574
    %v998 = vunpack.c.h.b16 %v574
    %v999 = vunpack.c.l.b16 %v575
    %v1000 = vunpack.c.h.b16 %v575
    %v1001 = vunpack.c.l.b16 %v576
    %v1002 = vunpack.c.h.b16 %v576
    %v1003 = vunpack.c.l.b16 %v577
    %v1004 = vunpack.c.h.b16 %v577
    %v1005 = vunpack.c.l.b16 %v578
    %v1006 = vunpack.c.h.b16 %v578
    %v1007 = vunpack.c.l.b16 %v579
    %v1008 = vunpack.c.h.b16 %v579
    %v1009 = vunpack.c.l.b16 %v580
    %v1010 = vunpack.c.h.b16 %v580
    %v1011 = vunpack.c.l.b16 %v581
    %v1012 = vunpack.c.h.b16 %v581
    %v1013 = vunpack.c.l.b16 %v582
    %v1014 = vunpack.c.h.b16 %v582
    %v1015 = vunpack.c.l.b16 %v583
    %v1016 = vunpack.c.h.b16 %v583
    %v1017 = vunpack.c.l.b16 %v584
    %v1018 = vunpack.c.h.b16 %v584
    %v1019 = vunpack.c.l.b16 %v585
    %v1020 = vunpack.c.h.b16 %v585
    %v1021 = vunpack.c.l.b16 %v586
    %v1022 = vunpack.c.h.b16 %v586
    %v1023 = vunpack.c.l.b16 %v587
    %v1024 = vunpack.c.h.b16 %v587
    %v1025 = vunpack.c.l.b16 %v588
    %v1026 = vunpack.c.h.b16 %v588
    %v1027 = vunpack.c.l.b16 %v589
    %v1028 = vunpack.c.h.b16 %v589
    %v1029 = vunpack.c.l.b16 %v590
    %v1030 = vunpack.c.h.b16 %v590
    %v1031 = vunpack.c.l.b16 %v591
    %v1032 = vunpack.c.h.b16 %v591
    %v1033 = vunpack.c.l.b16 %v592
    %v1034 = vunpack.c.h.b16 %v592
    %v1035 = vunpack.c.l.b16 %v593
    %v1036 = vunpack.c.h.b16 %v593
    %v1037 = vunpack.c.l.b16 %v594
    %v1038 = vunpack.c.h.b16 %v594
    %v1039 = vunpack.c.l.b16 %v595
    %v1040 = vunpack.c.h.b16 %v595
    %v1041 = vunpack.c.l.b16 %v596
    %v1042 = vunpack.c.h.b16 %v596
    %v1043 = vpack.c.b16 %v761, %v755
    %v1044 = vpack.c.b16 %v762, %v756
    %v1045 = vpack.c.b16 %v763, %v757
    %v1046 = vpack.c.b16 %v764, %v758
    %v1047 = vpack.c.b16 %v765, %v759
    %v1048 = vpack.c.b16 %v766, %v760
    %v1049 = vpack.c.b16 %v773, %v767
    %v1050 = vpack.c.b16 %v774, %v768
    %v1051 = vpack.c.b16 %v775, %v769
    %v1052 = vpack.c.b16 %v776, %v770
    %v1053 = vpack.c.b16 %v777, %v771
    %v1054 = vpack.c.b16 %v778, %v772
    %v1055 = vpack.c.b16 %v785, %v779
    %v1056 = vpack.c.b16 %v786, %v780
    %v1057 = vpack.c.b16 %v787, %v781
    %v1058 = vpack.c.b16 %v788, %v782
    %v1059 = vpack.c.b16 %v789, %v783
    %v1060 = vpack.c.b16 %v790, %v784
    %v1061 = vpack.c.b16 %v797, %v791
    %v1062 = vpack.c.b16 %v798, %v792
    %v1063 = vpack.c.b16 %v799, %v793
    %v1064 = vpack.c.b16 %v800, %v794
    %v1065 = vpack.c.b16 %v801, %v795
    %v1066 = vpack.c.b16 %v802, %v796
    %v1067 = vpack.c.b16 %v809, %v803
    %v1068 = vpack.c.b16 %v810, %v804
    %v1069 = vpack.c.b16 %v811, %v805
    %v1070 = vpack.c.b16 %v812, %v806
    %v1071 = vpack.c.b16 %v813, %v807
    %v1072 = vpack.c.b16 %v814, %v808
    %v1073 = vpack.c.b16 %v821, %v815
    %v1074 = vpack.c.b16 %v822, %v816
    %v1075 = vpack.c.b16 %v823, %v817
    %v1076 = vpack.c.b16 %v824, %v818
    %v1077 = vpack.c.b16 %v825, %v819
    %v1078 = vpack.c.b16 %v826, %v820
    %v1079 = vpack.c.b16 %v833, %v827
    %v1080 = vpack.c.b16 %v834, %v828
    %v1081 = vpack.c.b16 %v835, %v829
    %v1082 = vpack.c.b16 %v836, %v830
    %v1083 = vpack.c.b16 %v837, %v831
    %v1084 = vpack.c.b16 %v838, %v832
    %v1085 = vpack.c.b16 %v845, %v839
    %v1086 = vpack.c.b16 %v846, %v840
    %v1087 = vpack.c.b16 %v847, %v841
    %v1088 = vpack.c.b16 %v848, %v842
    %v1089 = vpack.c.b16 %v849, %v843
    %v1090 = vpack.c.b16 %v850, %v844
    %v1091 = vpack.c.b16 %v857, %v851
    %v1092 = vpack.c.b16 %v858, %v852
    %v1093 = vpack.c.b16 %v859, %v853
    %v1094 = vpack.c.b16 %v860, %v854
    %v1095 = vpack.c.b16 %v861, %v855
    %v1096 = vpack.c.b16 %v862, %v856
    %v1097 = vpack.c.b16 %v869, %v863
    %v1098 = vpack.c.b16 %v870, %v864
    %v1099 = vpack.c.b16 %v871, %v865
    %v1100 = vpack.c.b16 %v872, %v866
    %v1101 = vpack.c.b16 %v873, %v867
    %v1102 = vpack.c.b16 %v874, %v868
    %v1103 = vpack.c.b16 %v881, %v875
    %v1104 = vpack.c.b16 %v882, %v876
    %v1105 = vpack.c.b16 %v883, %v877
    %v1106 = vpack.c.b16 %v884, %v878
    %v1107 = vpack.c.b16 %v885, %v879
    %v1108 = vpack.c.b16 %v886, %v880
    %v1109 = vpack.c.b16 %v893, %v887
    %v1110 = vpack.c.b16 %v894, %v888
    %v1111 = vpack.c.b16 %v895, %v889
    %v1112 = vpack.c.b16 %v896, %v890
    %v1113 = vpack.c.b16 %v897, %v891
    %v1114 = vpack.c.b16 %v898, %v892
    %v1115 = vpack.c.b16 %v905, %v899
    %v1116 = vpack.c.b16 %v906, %v900
    %v1117 = vpack.c.b16 %v907, %v901
    %v1118 = vpack.c.b16 %v908, %v902
    %v1119 = vpack.c.b16 %v909, %v903
    %v1120 = vpack.c.b16 %v910, %v904
    %v1121 = vpack.c.b16 %v917, %v911
    %v1122 = vpack.c.b16 %v918, %v912
    %v1123 = vpack.c.b16 %v919, %v913
    %v1124 = vpack.c.b16 %v920, %v914
    %v1125 = vpack.c.b16 %v921, %v915
    %v1126 = vpack.c.b16 %v922, %v916
    %v1127 = vpack.c.b16 %v929, %v923
    %v1128 = vpack.c.b16 %v930, %v924
    %v1129 = vpack.c.b16 %v931, %v925
    %v1130 = vpack.c.b16 %v932, %v926
    %v1131 = vpack.c.b16 %v933, %v927
    %v1132 = vpack.c.b16 %v934, %v928
    %v1133 = vpack.c.b16 %v941, %v935
    %v1134 = vpack.c.b16 %v942, %v936
    %v1135 = vpack.c.b16 %v943, %v937
    %v1136 = vpack.c.b16 %v944, %v938
    %v1137 = vpack.c.b16 %v945, %v939
    %v1138 = vpack.c.b16 %v946, %v940
    %v1139 = vpack.c.b16 %v953, %v947
    %v1140 = vpack.c.b16 %v954, %v948
    %v1141 = vpack.c.b16 %v955, %v949
    %v1142 = vpack.c.b16 %v956, %v950
    %v1143 = vpack.c.b16 %v957, %v951
    %v1144 = vpack.c.b16 %v958, %v952
    %v1145 = vpack.c.b16 %v965, %v959
    %v1146 = vpack.c.b16 %v966, %v960
    %v1147 = vpack.c.b16 %v967, %v961
    %v1148 = vpack.c.b16 %v968, %v962
    %v1149 = vpack.c.b16 %v969, %v963
    %v1150 = vpack.c.b16 %v970, %v964
    %v1151 = vpack.c.b16 %v977, %v971
    %v1152 = vpack.c.b16 %v978, %v972
    %v1153 = vpack.c.b16 %v979, %v973
    %v1154 = vpack.c.b16 %v980, %v974
    %v1155 = vpack.c.b16 %v981, %v975
    %v1156 = vpack.c.b16 %v982, %v976
    %v1157 = vpack.c.b16 %v989, %v983
    %v1158 = vpack.c.b16 %v990, %v984
    %v1159 = vpack.c.b16 %v991, %v985
    %v1160 = vpack.c.b16 %v992, %v986
    %v1161 = vpack.c.b16 %v993, %v987
    %v1162 = vpack.c.b16 %v994, %v988
    %v1163 = vpack.c.b16 %v1001, %v995
    %v1164 = vpack.c.b16 %v1002, %v996
    %v1165 = vpack.c.b16 %v1003, %v997
    %v1166 = vpack.c.b16 %v1004, %v998
    %v1167 = vpack.c.b16 %v1005, %v999
    %v1168 = vpack.c.b16 %v1006, %v1000
    %v1169 = vpack.c.b16 %v1013, %v1007
    %v1170 = vpack.c.b16 %v1014, %v1008
    %v1171 = vpack.c.b16 %v1015, %v1009
    %v1172 = vpack.c.b16 %v1016, %v1010
    %v1173 = vpack.c.b16 %v1017, %v1011
    %v1174 = vpack.c.b16 %v1018, %v1012
    %v1175 = vpack.c.b16 %v1025, %v1019
    %v1176 = vpack.c.b16 %v1026, %v1020
    %v1177 = vpack.c.b16 %v1027, %v1021
    %v1178 = vpack.c.b16 %v1028, %v1022
    %v1179 = vpack.c.b16 %v1029, %v1023
    %v1180 = vpack.c.b16 %v1030, %v1024
    %v1181 = vpack.c.b16 %v1037, %v1031
    %v1182 = vpack.c.b16 %v1038, %v1032
    %v1183 = vpack.c.b16 %v1039, %v1033
    %v1184 = vpack.c.b16 %v1040, %v1034
    %v1185 = vpack.c.b16 %v1041, %v1035
    %v1186 = vpack.c.b16 %v1042, %v1036
    %1331 = vmatpush.bf16.msra.mxu0 %v1085
    %1332 = vmatpush.bf16.msra.mxu0 %v1079
    %1333 = vmatpush.bf16.msra.mxu0 %v1073
    %1334 = vmatpush.bf16.msra.mxu0 %v1067
    %1335 = vmatpush.bf16.msra.mxu0 %v1061
    %1336 = vmatpush.bf16.msra.mxu0 %v1055
    %1337 = vmatpush.bf16.msra.mxu0 %v1049
    %1338 = vmatpush.bf16.msra.mxu0 %v1043
    %1339 = vmatmul.bf16.gmra.mxu0 %v450
    %v1340 = vpop.f32.mrf.mxu0
    %v1341 = vadd.f32 %v599, %v1340
    %v1342 = vpop.f32.mrf.mxu0
    %1343 = vdwg.mxu0
    %1344 = vmatpush.bf16.msra.mxu0 %v1133
    %1345 = vmatpush.bf16.msra.mxu0 %v1127
    %1346 = vmatpush.bf16.msra.mxu0 %v1121
    %1347 = vmatpush.bf16.msra.mxu0 %v1115
    %1348 = vmatpush.bf16.msra.mxu0 %v1109
    %1349 = vmatpush.bf16.msra.mxu0 %v1103
    %1350 = vmatpush.bf16.msra.mxu0 %v1097
    %1351 = vmatpush.bf16.msra.mxu0 %v1091
    %1352 = vmatmul.bf16.gmra.mxu0 %v451
    %v1353 = vpop.f32.mrf.mxu0
    %v1354 = vadd.f32 %v1341, %v1353
    %v1355 = vpop.f32.mrf.mxu0
    %1356 = vdwg.mxu0
    %1357 = vmatpush.bf16.msra.mxu0 %v1181
    %1358 = vmatpush.bf16.msra.mxu0 %v1175
    %1359 = vmatpush.bf16.msra.mxu0 %v1169
    %1360 = vmatpush.bf16.msra.mxu0 %v1163
    %1361 = vmatpush.bf16.msra.mxu0 %v1157
    %1362 = vmatpush.bf16.msra.mxu0 %v1151
    %1363 = vmatpush.bf16.msra.mxu0 %v1145
    %1364 = vmatpush.bf16.msra.mxu0 %v1139
    %1365 = vmatmul.bf16.gmra.mxu0 %v452
    %v1366 = vpop.f32.mrf.mxu0
    %v1367 = vadd.f32 %v1354, %v1366
    %v1368 = vpop.f32.mrf.mxu0
    %1369 = vdwg.mxu0
    %1370 = vmatpush.bf16.msra.mxu0 %v1086
    %1371 = vmatpush.bf16.msra.mxu0 %v1080
    %1372 = vmatpush.bf16.msra.mxu0 %v1074
    %1373 = vmatpush.bf16.msra.mxu0 %v1068
    %1374 = vmatpush.bf16.msra.mxu0 %v1062
    %1375 = vmatpush.bf16.msra.mxu0 %v1056
    %1376 = vmatpush.bf16.msra.mxu0 %v1050
    %1377 = vmatpush.bf16.msra.mxu0 %v1044
    %1378 = vmatmul.bf16.gmra.mxu0 %v450
    %v1379 = vpop.f32.mrf.mxu0
    %v1380 = vadd.f32 %v600, %v1379
    %v1381 = vpop.f32.mrf.mxu0
    %1382 = vdwg.mxu0
    %1383 = vmatpush.bf16.msra.mxu0 %v1134
    %1384 = vmatpush.bf16.msra.mxu0 %v1128
    %1385 = vmatpush.bf16.msra.mxu0 %v1122
    %1386 = vmatpush.bf16.msra.mxu0 %v1116
    %1387 = vmatpush.bf16.msra.mxu0 %v1110
    %1388 = vmatpush.bf16.msra.mxu0 %v1104
    %1389 = vmatpush.bf16.msra.mxu0 %v1098
    %1390 = vmatpush.bf16.msra.mxu0 %v1092
    %1391 = vmatmul.bf16.gmra.mxu0 %v451
    %v1392 = vpop.f32.mrf.mxu0
    %v1393 = vadd.f32 %v1380, %v1392
    %v1394 = vpop.f32.mrf.mxu0
    %1395 = vdwg.mxu0
    %1396 = vmatpush.bf16.msra.mxu0 %v1182
    %1397 = vmatpush.bf16.msra.mxu0 %v1176
    %1398 = vmatpush.bf16.msra.mxu0 %v1170
    %1399 = vmatpush.bf16.msra.mxu0 %v1164
    %1400 = vmatpush.bf16.msra.mxu0 %v1158
    %1401 = vmatpush.bf16.msra.mxu0 %v1152
    %1402 = vmatpush.bf16.msra.mxu0 %v1146
    %1403 = vmatpush.bf16.msra.mxu0 %v1140
    %1404 = vmatmul.bf16.gmra.mxu0 %v452
    %v1405 = vpop.f32.mrf.mxu0
    %v1406 = vadd.f32 %v1393, %v1405
    %v1407 = vpop.f32.mrf.mxu0
    %1408 = vdwg.mxu0
    %1409 = vmatpush.bf16.msra.mxu0 %v1087
    %1410 = vmatpush.bf16.msra.mxu0 %v1081
    %1411 = vmatpush.bf16.msra.mxu0 %v1075
    %1412 = vmatpush.bf16.msra.mxu0 %v1069
    %1413 = vmatpush.bf16.msra.mxu0 %v1063
    %1414 = vmatpush.bf16.msra.mxu0 %v1057
    %1415 = vmatpush.bf16.msra.mxu0 %v1051
    %1416 = vmatpush.bf16.msra.mxu0 %v1045
    %1417 = vmatmul.bf16.gmra.mxu0 %v450
    %v1418 = vpop.f32.mrf.mxu0
    %v1419 = vadd.f32 %v601, %v1418
    %v1420 = vpop.f32.mrf.mxu0
    %1421 = vdwg.mxu0
    %1422 = vmatpush.bf16.msra.mxu0 %v1135
    %1423 = vmatpush.bf16.msra.mxu0 %v1129
    %1424 = vmatpush.bf16.msra.mxu0 %v1123
    %1425 = vmatpush.bf16.msra.mxu0 %v1117
    %1426 = vmatpush.bf16.msra.mxu0 %v1111
    %1427 = vmatpush.bf16.msra.mxu0 %v1105
    %1428 = vmatpush.bf16.msra.mxu0 %v1099
    %1429 = vmatpush.bf16.msra.mxu0 %v1093
    %1430 = vmatmul.bf16.gmra.mxu0 %v451
    %v1431 = vpop.f32.mrf.mxu0
    %v1432 = vadd.f32 %v1419, %v1431
    %v1433 = vpop.f32.mrf.mxu0
    %1434 = vdwg.mxu0
    %1435 = vmatpush.bf16.msra.mxu0 %v1183
    %1436 = vmatpush.bf16.msra.mxu0 %v1177
    %1437 = vmatpush.bf16.msra.mxu0 %v1171
    %1438 = vmatpush.bf16.msra.mxu0 %v1165
    %1439 = vmatpush.bf16.msra.mxu0 %v1159
    %1440 = vmatpush.bf16.msra.mxu0 %v1153
    %1441 = vmatpush.bf16.msra.mxu0 %v1147
    %1442 = vmatpush.bf16.msra.mxu0 %v1141
    %1443 = vmatmul.bf16.gmra.mxu0 %v452
    %v1444 = vpop.f32.mrf.mxu0
    %v1445 = vadd.f32 %v1432, %v1444
    %v1446 = vpop.f32.mrf.mxu0
    %1447 = vdwg.mxu0
    %1448 = vmatpush.bf16.msra.mxu0 %v1088
    %1449 = vmatpush.bf16.msra.mxu0 %v1082
    %1450 = vmatpush.bf16.msra.mxu0 %v1076
    %1451 = vmatpush.bf16.msra.mxu0 %v1070
    %1452 = vmatpush.bf16.msra.mxu0 %v1064
    %1453 = vmatpush.bf16.msra.mxu0 %v1058
    %1454 = vmatpush.bf16.msra.mxu0 %v1052
    %1455 = vmatpush.bf16.msra.mxu0 %v1046
    %1456 = vmatmul.bf16.gmra.mxu0 %v450
    %v1457 = vpop.f32.mrf.mxu0
    %v1458 = vadd.f32 %v602, %v1457
    %v1459 = vpop.f32.mrf.mxu0
    %1460 = vdwg.mxu0
    %1461 = vmatpush.bf16.msra.mxu0 %v1136
    %1462 = vmatpush.bf16.msra.mxu0 %v1130
    %1463 = vmatpush.bf16.msra.mxu0 %v1124
    %1464 = vmatpush.bf16.msra.mxu0 %v1118
    %1465 = vmatpush.bf16.msra.mxu0 %v1112
    %1466 = vmatpush.bf16.msra.mxu0 %v1106
    %1467 = vmatpush.bf16.msra.mxu0 %v1100
    %1468 = vmatpush.bf16.msra.mxu0 %v1094
    %1469 = vmatmul.bf16.gmra.mxu0 %v451
    %v1470 = vpop.f32.mrf.mxu0
    %v1471 = vadd.f32 %v1458, %v1470
    %v1472 = vpop.f32.mrf.mxu0
    %1473 = vdwg.mxu0
    %1474 = vmatpush.bf16.msra.mxu0 %v1184
    %1475 = vmatpush.bf16.msra.mxu0 %v1178
    %1476 = vmatpush.bf16.msra.mxu0 %v1172
    %1477 = vmatpush.bf16.msra.mxu0 %v1166
    %1478 = vmatpush.bf16.msra.mxu0 %v1160
    %1479 = vmatpush.bf16.msra.mxu0 %v1154
    %1480 = vmatpush.bf16.msra.mxu0 %v1148
    %1481 = vmatpush.bf16.msra.mxu0 %v1142
    %1482 = vmatmul.bf16.gmra.mxu0 %v452
    %v1483 = vpop.f32.mrf.mxu0
    %v1484 = vadd.f32 %v1471, %v1483
    %v1485 = vpop.f32.mrf.mxu0
    %1486 = vdwg.mxu0
    %1487 = vmatpush.bf16.msra.mxu0 %v1089
    %1488 = vmatpush.bf16.msra.mxu0 %v1083
    %1489 = vmatpush.bf16.msra.mxu0 %v1077
    %1490 = vmatpush.bf16.msra.mxu0 %v1071
    %1491 = vmatpush.bf16.msra.mxu0 %v1065
    %1492 = vmatpush.bf16.msra.mxu0 %v1059
    %1493 = vmatpush.bf16.msra.mxu0 %v1053
    %1494 = vmatpush.bf16.msra.mxu0 %v1047
    %1495 = vmatmul.bf16.gmra.mxu0 %v450
    %v1496 = vpop.f32.mrf.mxu0
    %v1497 = vadd.f32 %v603, %v1496
    %v1498 = vpop.f32.mrf.mxu0
    %1499 = vdwg.mxu0
    %1500 = vmatpush.bf16.msra.mxu0 %v1137
    %1501 = vmatpush.bf16.msra.mxu0 %v1131
    %1502 = vmatpush.bf16.msra.mxu0 %v1125
    %1503 = vmatpush.bf16.msra.mxu0 %v1119
    %1504 = vmatpush.bf16.msra.mxu0 %v1113
    %1505 = vmatpush.bf16.msra.mxu0 %v1107
    %1506 = vmatpush.bf16.msra.mxu0 %v1101
    %1507 = vmatpush.bf16.msra.mxu0 %v1095
    %1508 = vmatmul.bf16.gmra.mxu0 %v451
    %v1509 = vpop.f32.mrf.mxu0
    %v1510 = vadd.f32 %v1497, %v1509
    %v1511 = vpop.f32.mrf.mxu0
    %1512 = vdwg.mxu0
    %1513 = vmatpush.bf16.msra.mxu0 %v1185
    %1514 = vmatpush.bf16.msra.mxu0 %v1179
    %1515 = vmatpush.bf16.msra.mxu0 %v1173
    %1516 = vmatpush.bf16.msra.mxu0 %v1167
    %1517 = vmatpush.bf16.msra.mxu0 %v1161
    %1518 = vmatpush.bf16.msra.mxu0 %v1155
    %1519 = vmatpush.bf16.msra.mxu0 %v1149
    %1520 = vmatpush.bf16.msra.mxu0 %v1143
    %1521 = vmatmul.bf16.gmra.mxu0 %v452
    %v1522 = vpop.f32.mrf.mxu0
    %v1523 = vadd.f32 %v1510, %v1522
    %v1524 = vpop.f32.mrf.mxu0
    %1525 = vdwg.mxu0
    %1526 = vmatpush.bf16.msra.mxu0 %v1090
    %1527 = vmatpush.bf16.msra.mxu0 %v1084
    %1528 = vmatpush.bf16.msra.mxu0 %v1078
    %1529 = vmatpush.bf16.msra.mxu0 %v1072
    %1530 = vmatpush.bf16.msra.mxu0 %v1066
    %1531 = vmatpush.bf16.msra.mxu0 %v1060
    %1532 = vmatpush.bf16.msra.mxu0 %v1054
    %1533 = vmatpush.bf16.msra.mxu0 %v1048
    %1534 = vmatmul.bf16.gmra.mxu0 %v450
    %v1535 = vpop.f32.mrf.mxu0
    %v1536 = vadd.f32 %v604, %v1535
    %v1537 = vpop.f32.mrf.mxu0
    %1538 = vdwg.mxu0
    %1539 = vmatpush.bf16.msra.mxu0 %v1138
    %1540 = vmatpush.bf16.msra.mxu0 %v1132
    %1541 = vmatpush.bf16.msra.mxu0 %v1126
    %1542 = vmatpush.bf16.msra.mxu0 %v1120
    %1543 = vmatpush.bf16.msra.mxu0 %v1114
    %1544 = vmatpush.bf16.msra.mxu0 %v1108
    %1545 = vmatpush.bf16.msra.mxu0 %v1102
    %1546 = vmatpush.bf16.msra.mxu0 %v1096
    %1547 = vmatmul.bf16.gmra.mxu0 %v451
    %v1548 = vpop.f32.mrf.mxu0
    %v1549 = vadd.f32 %v1536, %v1548
    %v1550 = vpop.f32.mrf.mxu0
    %1551 = vdwg.mxu0
    %1552 = vmatpush.bf16.msra.mxu0 %v1186
    %1553 = vmatpush.bf16.msra.mxu0 %v1180
    %1554 = vmatpush.bf16.msra.mxu0 %v1174
    %1555 = vmatpush.bf16.msra.mxu0 %v1168
    %1556 = vmatpush.bf16.msra.mxu0 %v1162
    %1557 = vmatpush.bf16.msra.mxu0 %v1156
    %1558 = vmatpush.bf16.msra.mxu0 %v1150
    %1559 = vmatpush.bf16.msra.mxu0 %v1144
    %1560 = vmatmul.bf16.gmra.mxu0 %v452
    %v1561 = vpop.f32.mrf.mxu0
    %v1562 = vadd.f32 %v1549, %v1561
    %v1563 = vpop.f32.mrf.mxu0
    %1564 = vdwg.mxu0
    %v1565 = vpack.c.bf16 %v1406, %v1367
    %v1566 = vpack.c.bf16 %v1484, %v1445
    %v1567 = vpack.c.bf16 %v1562, %v1523
    %1568 = vst [vmem:[#allocation20] sm:$0xff] %v1565
    %1569 = vst [vmem:[#allocation20 + $0x8] sm:$0xff] %v1566
    %1570 = vst [vmem:[#allocation20 + $0x10] sm:$0xff] %v1567
    %v1571 = vld [vmem:[#allocation11] sm:$0xff]
    %v1572 = vld [vmem:[#allocation11 + $0x8] sm:$0xf]
    %v1573 = vld [vmem:[#allocation11 + $0xc] sm:$0xff]
    %v1574 = vld [vmem:[#allocation11 + $0x14] sm:$0xf]
    %v1575 = vld [vmem:[#allocation11 + $0x18] sm:$0xff]
    %v1576 = vld [vmem:[#allocation11 + $0x20] sm:$0xf]
    %v1577 = vld [vmem:[#allocation11 + $0x24] sm:$0xff]
    %v1578 = vld [vmem:[#allocation11 + $0x2c] sm:$0xf]
    %v1579 = vld [vmem:[#allocation11 + $0x30] sm:$0xff]
    %v1580 = vld [vmem:[#allocation11 + $0x38] sm:$0xf]
    %v1581 = vld [vmem:[#allocation11 + $0x3c] sm:$0xff]
    %v1582 = vld [vmem:[#allocation11 + $0x44] sm:$0xf]
    %v1583 = vld [vmem:[#allocation11 + $0x48] sm:$0xff]
    %v1584 = vld [vmem:[#allocation11 + $0x50] sm:$0xf]
    %v1585 = vld [vmem:[#allocation11 + $0x54] sm:$0xff]
    %v1586 = vld [vmem:[#allocation11 + $0x5c] sm:$0xf]
    %v1587 = vld [vmem:[#allocation11 + $0x60] sm:$0xff]
    %v1588 = vld [vmem:[#allocation11 + $0x68] sm:$0xf]
    %v1589 = vld [vmem:[#allocation11 + $0x6c] sm:$0xff]
    %v1590 = vld [vmem:[#allocation11 + $0x74] sm:$0xf]
    %v1591 = vld [vmem:[#allocation11 + $0x78] sm:$0xff]
    %v1592 = vld [vmem:[#allocation11 + $0x80] sm:$0xf]
    %v1593 = vld [vmem:[#allocation11 + $0x84] sm:$0xff]
    %v1594 = vld [vmem:[#allocation11 + $0x8c] sm:$0xf]
    %v1595 = vld [vmem:[#allocation11 + $0x90] sm:$0xff]
    %v1596 = vld [vmem:[#allocation11 + $0x98] sm:$0xf]
    %v1597 = vld [vmem:[#allocation11 + $0x9c] sm:$0xff]
    %v1598 = vld [vmem:[#allocation11 + $0xa4] sm:$0xf]
    %v1599 = vld [vmem:[#allocation11 + $0xa8] sm:$0xff]
    %v1600 = vld [vmem:[#allocation11 + $0xb0] sm:$0xf]
    %v1601 = vld [vmem:[#allocation11 + $0xb4] sm:$0xff]
    %v1602 = vld [vmem:[#allocation11 + $0xbc] sm:$0xf]
    %v1603 = vld [vmem:[#allocation11 + $0xc0] sm:$0xff]
    %v1604 = vld [vmem:[#allocation11 + $0xc8] sm:$0xf]
    %v1605 = vld [vmem:[#allocation11 + $0xcc] sm:$0xff]
    %v1606 = vld [vmem:[#allocation11 + $0xd4] sm:$0xf]
    %v1607 = vld [vmem:[#allocation11 + $0xd8] sm:$0xff]
    %v1608 = vld [vmem:[#allocation11 + $0xe0] sm:$0xf]
    %v1609 = vld [vmem:[#allocation11 + $0xe4] sm:$0xff]
    %v1610 = vld [vmem:[#allocation11 + $0xec] sm:$0xf]
    %v1611 = vld [vmem:[#allocation11 + $0xf0] sm:$0xff]
    %v1612 = vld [vmem:[#allocation11 + $0xf8] sm:$0xf]
    %v1613 = vld [vmem:[#allocation11 + $0xfc] sm:$0xff]
    %v1614 = vld [vmem:[#allocation11 + $0x104] sm:$0xf]
    %v1615 = vld [vmem:[#allocation11 + $0x108] sm:$0xff]
    %v1616 = vld [vmem:[#allocation11 + $0x110] sm:$0xf]
    %v1617 = vld [vmem:[#allocation11 + $0x114] sm:$0xff]
    %v1618 = vld [vmem:[#allocation11 + $0x11c] sm:$0xf]
    %v1619 = vld [vmem:[#allocation11 + $0x120] sm:$0xff]
    %v1620 = vld [vmem:[#allocation11 + $0x128] sm:$0xf]
    %v1621 = vld [vmem:[#allocation11 + $0x12c] sm:$0xff]
    %v1622 = vld [vmem:[#allocation11 + $0x134] sm:$0xf]
    %v1623 = vld [vmem:[#allocation11 + $0x138] sm:$0xff]
    %v1624 = vld [vmem:[#allocation11 + $0x140] sm:$0xf]
    %v1625 = vld [vmem:[#allocation11 + $0x144] sm:$0xff]
    %v1626 = vld [vmem:[#allocation11 + $0x14c] sm:$0xf]
    %v1627 = vld [vmem:[#allocation11 + $0x150] sm:$0xff]
    %v1628 = vld [vmem:[#allocation11 + $0x158] sm:$0xf]
    %v1629 = vld [vmem:[#allocation11 + $0x15c] sm:$0xff]
    %v1630 = vld [vmem:[#allocation11 + $0x164] sm:$0xf]
    %v1631 = vld [vmem:[#allocation11 + $0x168] sm:$0xff]
    %v1632 = vld [vmem:[#allocation11 + $0x170] sm:$0xf]
    %v1633 = vld [vmem:[#allocation11 + $0x174] sm:$0xff]
    %v1634 = vld [vmem:[#allocation11 + $0x17c] sm:$0xf]
    %v1635 = vld [vmem:[#allocation11 + $0x180] sm:$0xff]
    %v1636 = vld [vmem:[#allocation11 + $0x188] sm:$0xf]
    %v1637 = vld [vmem:[#allocation11 + $0x18c] sm:$0xff]
    %v1638 = vld [vmem:[#allocation11 + $0x194] sm:$0xf]
    %v1639 = vld [vmem:[#allocation11 + $0x198] sm:$0xff]
    %v1640 = vld [vmem:[#allocation11 + $0x1a0] sm:$0xf]
    %v1641 = vld [vmem:[#allocation11 + $0x1a4] sm:$0xff]
    %v1642 = vld [vmem:[#allocation11 + $0x1ac] sm:$0xf]
    %v1643 = vld [vmem:[#allocation11 + $0x1b0] sm:$0xff]
    %v1644 = vld [vmem:[#allocation11 + $0x1b8] sm:$0xf]
    %v1645 = vld [vmem:[#allocation11 + $0x1bc] sm:$0xff]
    %v1646 = vld [vmem:[#allocation11 + $0x1c4] sm:$0xf]
    %v1647 = vld [vmem:[#allocation11 + $0x1c8] sm:$0xff]
    %v1648 = vld [vmem:[#allocation11 + $0x1d0] sm:$0xf]
    %v1649 = vld [vmem:[#allocation11 + $0x1d4] sm:$0xff]
    %v1650 = vld [vmem:[#allocation11 + $0x1dc] sm:$0xf]
    %v1651 = vld [vmem:[#allocation11 + $0x1e0] sm:$0xff]
    %v1652 = vld [vmem:[#allocation11 + $0x1e8] sm:$0xf]
    %v1653 = vld [vmem:[#allocation11 + $0x1ec] sm:$0xff]
    %v1654 = vld [vmem:[#allocation11 + $0x1f4] sm:$0xf]
    %v1655 = vld [vmem:[#allocation11 + $0x1f8] sm:$0xff]
    %v1656 = vld [vmem:[#allocation11 + $0x200] sm:$0xf]
    %v1657 = vld [vmem:[#allocation11 + $0x204] sm:$0xff]
    %v1658 = vld [vmem:[#allocation11 + $0x20c] sm:$0xf]
    %v1659 = vld [vmem:[#allocation11 + $0x210] sm:$0xff]
    %v1660 = vld [vmem:[#allocation11 + $0x218] sm:$0xf]
    %v1661 = vld [vmem:[#allocation11 + $0x21c] sm:$0xff]
    %v1662 = vld [vmem:[#allocation11 + $0x224] sm:$0xf]
    %v1663 = vld [vmem:[#allocation11 + $0x228] sm:$0xff]
    %v1664 = vld [vmem:[#allocation11 + $0x230] sm:$0xf]
    %v1665 = vld [vmem:[#allocation11 + $0x234] sm:$0xff]
    %v1666 = vld [vmem:[#allocation11 + $0x23c] sm:$0xf]
    %v1667 = vld [vmem:[#allocation11 + $0x240] sm:$0xff]
    %v1668 = vld [vmem:[#allocation11 + $0x248] sm:$0xf]
    %v1669 = vld [vmem:[#allocation11 + $0x24c] sm:$0xff]
    %v1670 = vld [vmem:[#allocation11 + $0x254] sm:$0xf]
    %v1671 = vld [vmem:[#allocation11 + $0x258] sm:$0xff]
    %v1672 = vld [vmem:[#allocation11 + $0x260] sm:$0xf]
    %v1673 = vld [vmem:[#allocation11 + $0x264] sm:$0xff]
    %v1674 = vld [vmem:[#allocation11 + $0x26c] sm:$0xf]
    %v1675 = vld [vmem:[#allocation11 + $0x270] sm:$0xff]
    %v1676 = vld [vmem:[#allocation11 + $0x278] sm:$0xf]
    %v1677 = vld [vmem:[#allocation11 + $0x27c] sm:$0xff]
    %v1678 = vld [vmem:[#allocation11 + $0x284] sm:$0xf]
    %v1679 = vld [vmem:[#allocation11 + $0x288] sm:$0xff]
    %v1680 = vld [vmem:[#allocation11 + $0x290] sm:$0xf]
    %v1681 = vld [vmem:[#allocation11 + $0x294] sm:$0xff]
    %v1682 = vld [vmem:[#allocation11 + $0x29c] sm:$0xf]
    %v1683 = vld [vmem:[#allocation11 + $0x2a0] sm:$0xff]
    %v1684 = vld [vmem:[#allocation11 + $0x2a8] sm:$0xf]
    %v1685 = vld [vmem:[#allocation11 + $0x2ac] sm:$0xff]
    %v1686 = vld [vmem:[#allocation11 + $0x2b4] sm:$0xf]
    %v1687 = vld [vmem:[#allocation11 + $0x2b8] sm:$0xff]
    %v1688 = vld [vmem:[#allocation11 + $0x2c0] sm:$0xf]
    %v1689 = vld [vmem:[#allocation11 + $0x2c4] sm:$0xff]
    %v1690 = vld [vmem:[#allocation11 + $0x2cc] sm:$0xf]
    %v1691 = vld [vmem:[#allocation11 + $0x2d0] sm:$0xff]
    %v1692 = vld [vmem:[#allocation11 + $0x2d8] sm:$0xf]
    %v1693 = vld [vmem:[#allocation11 + $0x2dc] sm:$0xff]
    %v1694 = vld [vmem:[#allocation11 + $0x2e4] sm:$0xf]
    %v1695 = vld [vmem:[#allocation11 + $0x2e8] sm:$0xff]
    %v1696 = vld [vmem:[#allocation11 + $0x2f0] sm:$0xf]
    %v1697 = vld [vmem:[#allocation11 + $0x2f4] sm:$0xff]
    %v1698 = vld [vmem:[#allocation11 + $0x2fc] sm:$0xf]
    %v1699 = vld [vmem:[#allocation11 + $0x300] sm:$0xff]
    %v1700 = vld [vmem:[#allocation11 + $0x308] sm:$0xf]
    %v1701 = vld [vmem:[#allocation11 + $0x30c] sm:$0xff]
    %v1702 = vld [vmem:[#allocation11 + $0x314] sm:$0xf]
    %v1703 = vld [vmem:[#allocation11 + $0x318] sm:$0xff]
    %v1704 = vld [vmem:[#allocation11 + $0x320] sm:$0xf]
    %v1705 = vld [vmem:[#allocation11 + $0x324] sm:$0xff]
    %v1706 = vld [vmem:[#allocation11 + $0x32c] sm:$0xf]
    %v1707 = vld [vmem:[#allocation11 + $0x330] sm:$0xff]
    %v1708 = vld [vmem:[#allocation11 + $0x338] sm:$0xf]
    %v1709 = vld [vmem:[#allocation11 + $0x33c] sm:$0xff]
    %v1710 = vld [vmem:[#allocation11 + $0x344] sm:$0xf]
    %v1711 = vld [vmem:[#allocation11 + $0x348] sm:$0xff]
    %v1712 = vld [vmem:[#allocation11 + $0x350] sm:$0xf]
    %v1713 = vld [vmem:[#allocation11 + $0x354] sm:$0xff]
    %v1714 = vld [vmem:[#allocation11 + $0x35c] sm:$0xf]
    %v1715 = vld [vmem:[#allocation11 + $0x360] sm:$0xff]
    %v1716 = vld [vmem:[#allocation11 + $0x368] sm:$0xf]
    %v1717 = vld [vmem:[#allocation11 + $0x36c] sm:$0xff]
    %v1718 = vld [vmem:[#allocation11 + $0x374] sm:$0xf]
    %v1719 = vld [vmem:[#allocation11 + $0x378] sm:$0xff]
    %v1720 = vld [vmem:[#allocation11 + $0x380] sm:$0xf]
    %v1721 = vld [vmem:[#allocation11 + $0x384] sm:$0xff]
    %v1722 = vld [vmem:[#allocation11 + $0x38c] sm:$0xf]
    %v1723 = vld [vmem:[#allocation11 + $0x390] sm:$0xff]
    %v1724 = vld [vmem:[#allocation11 + $0x398] sm:$0xf]
    %v1725 = vld [vmem:[#allocation11 + $0x39c] sm:$0xff]
    %v1726 = vld [vmem:[#allocation11 + $0x3a4] sm:$0xf]
    %v1727 = vld [vmem:[#allocation11 + $0x3a8] sm:$0xff]
    %v1728 = vld [vmem:[#allocation11 + $0x3b0] sm:$0xf]
    %v1729 = vld [vmem:[#allocation11 + $0x3b4] sm:$0xff]
    %v1730 = vld [vmem:[#allocation11 + $0x3bc] sm:$0xf]
    %v1731 = vld [vmem:[#allocation11 + $0x3c0] sm:$0xff]
    %v1732 = vld [vmem:[#allocation11 + $0x3c8] sm:$0xf]
    %v1733 = vld [vmem:[#allocation11 + $0x3cc] sm:$0xff]
    %v1734 = vld [vmem:[#allocation11 + $0x3d4] sm:$0xf]
    %v1735 = vld [vmem:[#allocation11 + $0x3d8] sm:$0xff]
    %v1736 = vld [vmem:[#allocation11 + $0x3e0] sm:$0xf]
    %v1737 = vld [vmem:[#allocation11 + $0x3e4] sm:$0xff]
    %v1738 = vld [vmem:[#allocation11 + $0x3ec] sm:$0xf]
    %v1739 = vld [vmem:[#allocation11 + $0x3f0] sm:$0xff]
    %v1740 = vld [vmem:[#allocation11 + $0x3f8] sm:$0xf]
    %v1741 = vld [vmem:[#allocation11 + $0x3fc] sm:$0xff]
    %v1742 = vld [vmem:[#allocation11 + $0x404] sm:$0xf]
    %v1743 = vld [vmem:[#allocation11 + $0x408] sm:$0xff]
    %v1744 = vld [vmem:[#allocation11 + $0x410] sm:$0xf]
    %v1745 = vld [vmem:[#allocation11 + $0x414] sm:$0xff]
    %v1746 = vld [vmem:[#allocation11 + $0x41c] sm:$0xf]
    %v1747 = vld [vmem:[#allocation11 + $0x420] sm:$0xff]
    %v1748 = vld [vmem:[#allocation11 + $0x428] sm:$0xf]
    %v1749 = vld [vmem:[#allocation11 + $0x42c] sm:$0xff]
    %v1750 = vld [vmem:[#allocation11 + $0x434] sm:$0xf]
    %v1751 = vld [vmem:[#allocation11 + $0x438] sm:$0xff]
    %v1752 = vld [vmem:[#allocation11 + $0x440] sm:$0xf]
    %v1753 = vld [vmem:[#allocation11 + $0x444] sm:$0xff]
    %v1754 = vld [vmem:[#allocation11 + $0x44c] sm:$0xf]
    %v1755 = vld [vmem:[#allocation11 + $0x450] sm:$0xff]
    %v1756 = vld [vmem:[#allocation11 + $0x458] sm:$0xf]
    %v1757 = vld [vmem:[#allocation11 + $0x45c] sm:$0xff]
    %v1758 = vld [vmem:[#allocation11 + $0x464] sm:$0xf]
    %v1759 = vld [vmem:[#allocation11 + $0x468] sm:$0xff]
    %v1760 = vld [vmem:[#allocation11 + $0x470] sm:$0xf]
    %v1761 = vld [vmem:[#allocation11 + $0x474] sm:$0xff]
    %v1762 = vld [vmem:[#allocation11 + $0x47c] sm:$0xf]
    %v1763 = vld [vmem:[#allocation13] sm:$0x7]
    %v1765 = vperm.slane %v1763, 0
    %v1766 = vperm.slane %v1763, 1
    %v1767 = vperm.slane %v1763, 2
    %v1774 = vunpack.c.l.b16 %v1565
    %v1775 = vunpack.c.h.b16 %v1565
    %v1776 = vunpack.c.l.b16 %v1566
    %v1777 = vunpack.c.h.b16 %v1566
    %v1778 = vunpack.c.l.b16 %v1567
    %v1779 = vunpack.c.h.b16 %v1567
    %v1780 = vpack.c.b16 %v1774, %v1774
    %v1781 = vpack.c.b16 %v1775, %v1775
    %v1782 = vpack.c.b16 %v1776, %v1776
    %v1783 = vpack.c.b16 %v1777, %v1777
    %v1784 = vpack.c.b16 %v1778, %v1778
    %v1785 = vpack.c.b16 %v1779, %v1779
    %v1984 = vunpack.c.l.b16 %v1571
    %v1985 = vunpack.c.h.b16 %v1571
    %v1986 = vunpack.c.l.b16 %v1572
    %v1987 = vunpack.c.l.b16 %v1573
    %v1988 = vunpack.c.h.b16 %v1573
    %v1989 = vunpack.c.l.b16 %v1574
    %v1990 = vunpack.c.l.b16 %v1575
    %v1991 = vunpack.c.h.b16 %v1575
    %v1992 = vunpack.c.l.b16 %v1576
    %v1993 = vunpack.c.l.b16 %v1577
    %v1994 = vunpack.c.h.b16 %v1577
    %v1995 = vunpack.c.l.b16 %v1578
    %v1996 = vunpack.c.l.b16 %v1579
    %v1997 = vunpack.c.h.b16 %v1579
    %v1998 = vunpack.c.l.b16 %v1580
    %v1999 = vunpack.c.l.b16 %v1581
    %v2000 = vunpack.c.h.b16 %v1581
    %v2001 = vunpack.c.l.b16 %v1582
    %v2002 = vunpack.c.l.b16 %v1583
    %v2003 = vunpack.c.h.b16 %v1583
    %v2004 = vunpack.c.l.b16 %v1584
    %v2005 = vunpack.c.l.b16 %v1585
    %v2006 = vunpack.c.h.b16 %v1585
    %v2007 = vunpack.c.l.b16 %v1586
    %v2008 = vunpack.c.l.b16 %v1587
    %v2009 = vunpack.c.h.b16 %v1587
    %v2010 = vunpack.c.l.b16 %v1588
    %v2011 = vunpack.c.l.b16 %v1589
    %v2012 = vunpack.c.h.b16 %v1589
    %v2013 = vunpack.c.l.b16 %v1590
    %v2014 = vunpack.c.l.b16 %v1591
    %v2015 = vunpack.c.h.b16 %v1591
    %v2016 = vunpack.c.l.b16 %v1592
    %v2017 = vunpack.c.l.b16 %v1593
    %v2018 = vunpack.c.h.b16 %v1593
    %v2019 = vunpack.c.l.b16 %v1594
    %v2020 = vunpack.c.l.b16 %v1595
    %v2021 = vunpack.c.h.b16 %v1595
    %v2022 = vunpack.c.l.b16 %v1596
    %v2023 = vunpack.c.l.b16 %v1597
    %v2024 = vunpack.c.h.b16 %v1597
    %v2025 = vunpack.c.l.b16 %v1598
    %v2026 = vunpack.c.l.b16 %v1599
    %v2027 = vunpack.c.h.b16 %v1599
    %v2028 = vunpack.c.l.b16 %v1600
    %v2029 = vunpack.c.l.b16 %v1601
    %v2030 = vunpack.c.h.b16 %v1601
    %v2031 = vunpack.c.l.b16 %v1602
    %v2032 = vunpack.c.l.b16 %v1603
    %v2033 = vunpack.c.h.b16 %v1603
    %v2034 = vunpack.c.l.b16 %v1604
    %v2035 = vunpack.c.l.b16 %v1605
    %v2036 = vunpack.c.h.b16 %v1605
    %v2037 = vunpack.c.l.b16 %v1606
    %v2038 = vunpack.c.l.b16 %v1607
    %v2039 = vunpack.c.h.b16 %v1607
    %v2040 = vunpack.c.l.b16 %v1608
    %v2041 = vunpack.c.l.b16 %v1609
    %v2042 = vunpack.c.h.b16 %v1609
    %v2043 = vunpack.c.l.b16 %v1610
    %v2044 = vunpack.c.l.b16 %v1611
    %v2045 = vunpack.c.h.b16 %v1611
    %v2046 = vunpack.c.l.b16 %v1612
    %v2047 = vunpack.c.l.b16 %v1613
    %v2048 = vunpack.c.h.b16 %v1613
    %v2049 = vunpack.c.l.b16 %v1614
    %v2050 = vunpack.c.l.b16 %v1615
    %v2051 = vunpack.c.h.b16 %v1615
    %v2052 = vunpack.c.l.b16 %v1616
    %v2053 = vunpack.c.l.b16 %v1617
    %v2054 = vunpack.c.h.b16 %v1617
    %v2055 = vunpack.c.l.b16 %v1618
    %v2056 = vunpack.c.l.b16 %v1619
    %v2057 = vunpack.c.h.b16 %v1619
    %v2058 = vunpack.c.l.b16 %v1620
    %v2059 = vunpack.c.l.b16 %v1621
    %v2060 = vunpack.c.h.b16 %v1621
    %v2061 = vunpack.c.l.b16 %v1622
    %v2062 = vunpack.c.l.b16 %v1623
    %v2063 = vunpack.c.h.b16 %v1623
    %v2064 = vunpack.c.l.b16 %v1624
    %v2065 = vunpack.c.l.b16 %v1625
    %v2066 = vunpack.c.h.b16 %v1625
    %v2067 = vunpack.c.l.b16 %v1626
    %v2068 = vunpack.c.l.b16 %v1627
    %v2069 = vunpack.c.h.b16 %v1627
    %v2070 = vunpack.c.l.b16 %v1628
    %v2071 = vunpack.c.l.b16 %v1629
    %v2072 = vunpack.c.h.b16 %v1629
    %v2073 = vunpack.c.l.b16 %v1630
    %v2074 = vunpack.c.l.b16 %v1631
    %v2075 = vunpack.c.h.b16 %v1631
    %v2076 = vunpack.c.l.b16 %v1632
    %v2077 = vunpack.c.l.b16 %v1633
    %v2078 = vunpack.c.h.b16 %v1633
    %v2079 = vunpack.c.l.b16 %v1634
    %v2080 = vunpack.c.l.b16 %v1635
    %v2081 = vunpack.c.h.b16 %v1635
    %v2082 = vunpack.c.l.b16 %v1636
    %v2083 = vunpack.c.l.b16 %v1637
    %v2084 = vunpack.c.h.b16 %v1637
    %v2085 = vunpack.c.l.b16 %v1638
    %v2086 = vunpack.c.l.b16 %v1639
    %v2087 = vunpack.c.h.b16 %v1639
    %v2088 = vunpack.c.l.b16 %v1640
    %v2089 = vunpack.c.l.b16 %v1641
    %v2090 = vunpack.c.h.b16 %v1641
    %v2091 = vunpack.c.l.b16 %v1642
    %v2092 = vunpack.c.l.b16 %v1643
    %v2093 = vunpack.c.h.b16 %v1643
    %v2094 = vunpack.c.l.b16 %v1644
    %v2095 = vunpack.c.l.b16 %v1645
    %v2096 = vunpack.c.h.b16 %v1645
    %v2097 = vunpack.c.l.b16 %v1646
    %v2098 = vunpack.c.l.b16 %v1647
    %v2099 = vunpack.c.h.b16 %v1647
    %v2100 = vunpack.c.l.b16 %v1648
    %v2101 = vunpack.c.l.b16 %v1649
    %v2102 = vunpack.c.h.b16 %v1649
    %v2103 = vunpack.c.l.b16 %v1650
    %v2104 = vunpack.c.l.b16 %v1651
    %v2105 = vunpack.c.h.b16 %v1651
    %v2106 = vunpack.c.l.b16 %v1652
    %v2107 = vunpack.c.l.b16 %v1653
    %v2108 = vunpack.c.h.b16 %v1653
    %v2109 = vunpack.c.l.b16 %v1654
    %v2110 = vunpack.c.l.b16 %v1655
    %v2111 = vunpack.c.h.b16 %v1655
    %v2112 = vunpack.c.l.b16 %v1656
    %v2113 = vunpack.c.l.b16 %v1657
    %v2114 = vunpack.c.h.b16 %v1657
    %v2115 = vunpack.c.l.b16 %v1658
    %v2116 = vunpack.c.l.b16 %v1659
    %v2117 = vunpack.c.h.b16 %v1659
    %v2118 = vunpack.c.l.b16 %v1660
    %v2119 = vunpack.c.l.b16 %v1661
    %v2120 = vunpack.c.h.b16 %v1661
    %v2121 = vunpack.c.l.b16 %v1662
    %v2122 = vunpack.c.l.b16 %v1663
    %v2123 = vunpack.c.h.b16 %v1663
    %v2124 = vunpack.c.l.b16 %v1664
    %v2125 = vunpack.c.l.b16 %v1665
    %v2126 = vunpack.c.h.b16 %v1665
    %v2127 = vunpack.c.l.b16 %v1666
    %v2128 = vunpack.c.l.b16 %v1667
    %v2129 = vunpack.c.h.b16 %v1667
    %v2130 = vunpack.c.l.b16 %v1668
    %v2131 = vunpack.c.l.b16 %v1669
    %v2132 = vunpack.c.h.b16 %v1669
    %v2133 = vunpack.c.l.b16 %v1670
    %v2134 = vunpack.c.l.b16 %v1671
    %v2135 = vunpack.c.h.b16 %v1671
    %v2136 = vunpack.c.l.b16 %v1672
    %v2137 = vunpack.c.l.b16 %v1673
    %v2138 = vunpack.c.h.b16 %v1673
    %v2139 = vunpack.c.l.b16 %v1674
    %v2140 = vunpack.c.l.b16 %v1675
    %v2141 = vunpack.c.h.b16 %v1675
    %v2142 = vunpack.c.l.b16 %v1676
    %v2143 = vunpack.c.l.b16 %v1677
    %v2144 = vunpack.c.h.b16 %v1677
    %v2145 = vunpack.c.l.b16 %v1678
    %v2146 = vunpack.c.l.b16 %v1679
    %v2147 = vunpack.c.h.b16 %v1679
    %v2148 = vunpack.c.l.b16 %v1680
    %v2149 = vunpack.c.l.b16 %v1681
    %v2150 = vunpack.c.h.b16 %v1681
    %v2151 = vunpack.c.l.b16 %v1682
    %v2152 = vunpack.c.l.b16 %v1683
    %v2153 = vunpack.c.h.b16 %v1683
    %v2154 = vunpack.c.l.b16 %v1684
    %v2155 = vunpack.c.l.b16 %v1685
    %v2156 = vunpack.c.h.b16 %v1685
    %v2157 = vunpack.c.l.b16 %v1686
    %v2158 = vunpack.c.l.b16 %v1687
    %v2159 = vunpack.c.h.b16 %v1687
    %v2160 = vunpack.c.l.b16 %v1688
    %v2161 = vunpack.c.l.b16 %v1689
    %v2162 = vunpack.c.h.b16 %v1689
    %v2163 = vunpack.c.l.b16 %v1690
    %v2164 = vunpack.c.l.b16 %v1691
    %v2165 = vunpack.c.h.b16 %v1691
    %v2166 = vunpack.c.l.b16 %v1692
    %v2167 = vunpack.c.l.b16 %v1693
    %v2168 = vunpack.c.h.b16 %v1693
    %v2169 = vunpack.c.l.b16 %v1694
    %v2170 = vunpack.c.l.b16 %v1695
    %v2171 = vunpack.c.h.b16 %v1695
    %v2172 = vunpack.c.l.b16 %v1696
    %v2173 = vunpack.c.l.b16 %v1697
    %v2174 = vunpack.c.h.b16 %v1697
    %v2175 = vunpack.c.l.b16 %v1698
    %v2176 = vunpack.c.l.b16 %v1699
    %v2177 = vunpack.c.h.b16 %v1699
    %v2178 = vunpack.c.l.b16 %v1700
    %v2179 = vunpack.c.l.b16 %v1701
    %v2180 = vunpack.c.h.b16 %v1701
    %v2181 = vunpack.c.l.b16 %v1702
    %v2182 = vunpack.c.l.b16 %v1703
    %v2183 = vunpack.c.h.b16 %v1703
    %v2184 = vunpack.c.l.b16 %v1704
    %v2185 = vunpack.c.l.b16 %v1705
    %v2186 = vunpack.c.h.b16 %v1705
    %v2187 = vunpack.c.l.b16 %v1706
    %v2188 = vunpack.c.l.b16 %v1707
    %v2189 = vunpack.c.h.b16 %v1707
    %v2190 = vunpack.c.l.b16 %v1708
    %v2191 = vunpack.c.l.b16 %v1709
    %v2192 = vunpack.c.h.b16 %v1709
    %v2193 = vunpack.c.l.b16 %v1710
    %v2194 = vunpack.c.l.b16 %v1711
    %v2195 = vunpack.c.h.b16 %v1711
    %v2196 = vunpack.c.l.b16 %v1712
    %v2197 = vunpack.c.l.b16 %v1713
    %v2198 = vunpack.c.h.b16 %v1713
    %v2199 = vunpack.c.l.b16 %v1714
    %v2200 = vunpack.c.l.b16 %v1715
    %v2201 = vunpack.c.h.b16 %v1715
    %v2202 = vunpack.c.l.b16 %v1716
    %v2203 = vunpack.c.l.b16 %v1717
    %v2204 = vunpack.c.h.b16 %v1717
    %v2205 = vunpack.c.l.b16 %v1718
    %v2206 = vunpack.c.l.b16 %v1719
    %v2207 = vunpack.c.h.b16 %v1719
    %v2208 = vunpack.c.l.b16 %v1720
    %v2209 = vunpack.c.l.b16 %v1721
    %v2210 = vunpack.c.h.b16 %v1721
    %v2211 = vunpack.c.l.b16 %v1722
    %v2212 = vunpack.c.l.b16 %v1723
    %v2213 = vunpack.c.h.b16 %v1723
    %v2214 = vunpack.c.l.b16 %v1724
    %v2215 = vunpack.c.l.b16 %v1725
    %v2216 = vunpack.c.h.b16 %v1725
    %v2217 = vunpack.c.l.b16 %v1726
    %v2218 = vunpack.c.l.b16 %v1727
    %v2219 = vunpack.c.h.b16 %v1727
    %v2220 = vunpack.c.l.b16 %v1728
    %v2221 = vunpack.c.l.b16 %v1729
    %v2222 = vunpack.c.h.b16 %v1729
    %v2223 = vunpack.c.l.b16 %v1730
    %v2224 = vunpack.c.l.b16 %v1731
    %v2225 = vunpack.c.h.b16 %v1731
    %v2226 = vunpack.c.l.b16 %v1732
    %v2227 = vunpack.c.l.b16 %v1733
    %v2228 = vunpack.c.h.b16 %v1733
    %v2229 = vunpack.c.l.b16 %v1734
    %v2230 = vunpack.c.l.b16 %v1735
    %v2231 = vunpack.c.h.b16 %v1735
    %v2232 = vunpack.c.l.b16 %v1736
    %v2233 = vunpack.c.l.b16 %v1737
    %v2234 = vunpack.c.h.b16 %v1737
    %v2235 = vunpack.c.l.b16 %v1738
    %v2236 = vunpack.c.l.b16 %v1739
    %v2237 = vunpack.c.h.b16 %v1739
    %v2238 = vunpack.c.l.b16 %v1740
    %v2239 = vunpack.c.l.b16 %v1741
    %v2240 = vunpack.c.h.b16 %v1741
    %v2241 = vunpack.c.l.b16 %v1742
    %v2242 = vunpack.c.l.b16 %v1743
    %v2243 = vunpack.c.h.b16 %v1743
    %v2244 = vunpack.c.l.b16 %v1744
    %v2245 = vunpack.c.l.b16 %v1745
    %v2246 = vunpack.c.h.b16 %v1745
    %v2247 = vunpack.c.l.b16 %v1746
    %v2248 = vunpack.c.l.b16 %v1747
    %v2249 = vunpack.c.h.b16 %v1747
    %v2250 = vunpack.c.l.b16 %v1748
    %v2251 = vunpack.c.l.b16 %v1749
    %v2252 = vunpack.c.h.b16 %v1749
    %v2253 = vunpack.c.l.b16 %v1750
    %v2254 = vunpack.c.l.b16 %v1751
    %v2255 = vunpack.c.h.b16 %v1751
    %v2256 = vunpack.c.l.b16 %v1752
    %v2257 = vunpack.c.l.b16 %v1753
    %v2258 = vunpack.c.h.b16 %v1753
    %v2259 = vunpack.c.l.b16 %v1754
    %v2260 = vunpack.c.l.b16 %v1755
    %v2261 = vunpack.c.h.b16 %v1755
    %v2262 = vunpack.c.l.b16 %v1756
    %v2263 = vunpack.c.l.b16 %v1757
    %v2264 = vunpack.c.h.b16 %v1757
    %v2265 = vunpack.c.l.b16 %v1758
    %v2266 = vunpack.c.l.b16 %v1759
    %v2267 = vunpack.c.h.b16 %v1759
    %v2268 = vunpack.c.l.b16 %v1760
    %v2269 = vunpack.c.l.b16 %v1761
    %v2270 = vunpack.c.h.b16 %v1761
    %v2271 = vunpack.c.l.b16 %v1762
    %v2272 = vpack.c.b16 %v1987, %v1984
    %v2273 = vpack.c.b16 %v1988, %v1985
    %v2274 = vpack.c.b16 %v1989, %v1986
    %v2275 = vpack.c.b16 %v1993, %v1990
    %v2276 = vpack.c.b16 %v1994, %v1991
    %v2277 = vpack.c.b16 %v1995, %v1992
    %v2278 = vpack.c.b16 %v1999, %v1996
    %v2279 = vpack.c.b16 %v2000, %v1997
    %v2280 = vpack.c.b16 %v2001, %v1998
    %v2281 = vpack.c.b16 %v2005, %v2002
    %v2282 = vpack.c.b16 %v2006, %v2003
    %v2283 = vpack.c.b16 %v2007, %v2004
    %v2284 = vpack.c.b16 %v2011, %v2008
    %v2285 = vpack.c.b16 %v2012, %v2009
    %v2286 = vpack.c.b16 %v2013, %v2010
    %v2287 = vpack.c.b16 %v2017, %v2014
    %v2288 = vpack.c.b16 %v2018, %v2015
    %v2289 = vpack.c.b16 %v2019, %v2016
    %v2290 = vpack.c.b16 %v2023, %v2020
    %v2291 = vpack.c.b16 %v2024, %v2021
    %v2292 = vpack.c.b16 %v2025, %v2022
    %v2293 = vpack.c.b16 %v2029, %v2026
    %v2294 = vpack.c.b16 %v2030, %v2027
    %v2295 = vpack.c.b16 %v2031, %v2028
    %v2296 = vpack.c.b16 %v2035, %v2032
    %v2297 = vpack.c.b16 %v2036, %v2033
    %v2298 = vpack.c.b16 %v2037, %v2034
    %v2299 = vpack.c.b16 %v2041, %v2038
    %v2300 = vpack.c.b16 %v2042, %v2039
    %v2301 = vpack.c.b16 %v2043, %v2040
    %v2302 = vpack.c.b16 %v2047, %v2044
    %v2303 = vpack.c.b16 %v2048, %v2045
    %v2304 = vpack.c.b16 %v2049, %v2046
    %v2305 = vpack.c.b16 %v2053, %v2050
    %v2306 = vpack.c.b16 %v2054, %v2051
    %v2307 = vpack.c.b16 %v2055, %v2052
    %v2308 = vpack.c.b16 %v2059, %v2056
    %v2309 = vpack.c.b16 %v2060, %v2057
    %v2310 = vpack.c.b16 %v2061, %v2058
    %v2311 = vpack.c.b16 %v2065, %v2062
    %v2312 = vpack.c.b16 %v2066, %v2063
    %v2313 = vpack.c.b16 %v2067, %v2064
    %v2314 = vpack.c.b16 %v2071, %v2068
    %v2315 = vpack.c.b16 %v2072, %v2069
    %v2316 = vpack.c.b16 %v2073, %v2070
    %v2317 = vpack.c.b16 %v2077, %v2074
    %v2318 = vpack.c.b16 %v2078, %v2075
    %v2319 = vpack.c.b16 %v2079, %v2076
    %v2320 = vpack.c.b16 %v2083, %v2080
    %v2321 = vpack.c.b16 %v2084, %v2081
    %v2322 = vpack.c.b16 %v2085, %v2082
    %v2323 = vpack.c.b16 %v2089, %v2086
    %v2324 = vpack.c.b16 %v2090, %v2087
    %v2325 = vpack.c.b16 %v2091, %v2088
    %v2326 = vpack.c.b16 %v2095, %v2092
    %v2327 = vpack.c.b16 %v2096, %v2093
    %v2328 = vpack.c.b16 %v2097, %v2094
    %v2329 = vpack.c.b16 %v2101, %v2098
    %v2330 = vpack.c.b16 %v2102, %v2099
    %v2331 = vpack.c.b16 %v2103, %v2100
    %v2332 = vpack.c.b16 %v2107, %v2104
    %v2333 = vpack.c.b16 %v2108, %v2105
    %v2334 = vpack.c.b16 %v2109, %v2106
    %v2335 = vpack.c.b16 %v2113, %v2110
    %v2336 = vpack.c.b16 %v2114, %v2111
    %v2337 = vpack.c.b16 %v2115, %v2112
    %v2338 = vpack.c.b16 %v2119, %v2116
    %v2339 = vpack.c.b16 %v2120, %v2117
    %v2340 = vpack.c.b16 %v2121, %v2118
    %v2341 = vpack.c.b16 %v2125, %v2122
    %v2342 = vpack.c.b16 %v2126, %v2123
    %v2343 = vpack.c.b16 %v2127, %v2124
    %v2344 = vpack.c.b16 %v2131, %v2128
    %v2345 = vpack.c.b16 %v2132, %v2129
    %v2346 = vpack.c.b16 %v2133, %v2130
    %v2347 = vpack.c.b16 %v2137, %v2134
    %v2348 = vpack.c.b16 %v2138, %v2135
    %v2349 = vpack.c.b16 %v2139, %v2136
    %v2350 = vpack.c.b16 %v2143, %v2140
    %v2351 = vpack.c.b16 %v2144, %v2141
    %v2352 = vpack.c.b16 %v2145, %v2142
    %v2353 = vpack.c.b16 %v2149, %v2146
    %v2354 = vpack.c.b16 %v2150, %v2147
    %v2355 = vpack.c.b16 %v2151, %v2148
    %v2356 = vpack.c.b16 %v2155, %v2152
    %v2357 = vpack.c.b16 %v2156, %v2153
    %v2358 = vpack.c.b16 %v2157, %v2154
    %v2359 = vpack.c.b16 %v2161, %v2158
    %v2360 = vpack.c.b16 %v2162, %v2159
    %v2361 = vpack.c.b16 %v2163, %v2160
    %v2362 = vpack.c.b16 %v2167, %v2164
    %v2363 = vpack.c.b16 %v2168, %v2165
    %v2364 = vpack.c.b16 %v2169, %v2166
    %v2365 = vpack.c.b16 %v2173, %v2170
    %v2366 = vpack.c.b16 %v2174, %v2171
    %v2367 = vpack.c.b16 %v2175, %v2172
    %v2368 = vpack.c.b16 %v2179, %v2176
    %v2369 = vpack.c.b16 %v2180, %v2177
    %v2370 = vpack.c.b16 %v2181, %v2178
    %v2371 = vpack.c.b16 %v2185, %v2182
    %v2372 = vpack.c.b16 %v2186, %v2183
    %v2373 = vpack.c.b16 %v2187, %v2184
    %v2374 = vpack.c.b16 %v2191, %v2188
    %v2375 = vpack.c.b16 %v2192, %v2189
    %v2376 = vpack.c.b16 %v2193, %v2190
    %v2377 = vpack.c.b16 %v2197, %v2194
    %v2378 = vpack.c.b16 %v2198, %v2195
    %v2379 = vpack.c.b16 %v2199, %v2196
    %v2380 = vpack.c.b16 %v2203, %v2200
    %v2381 = vpack.c.b16 %v2204, %v2201
    %v2382 = vpack.c.b16 %v2205, %v2202
    %v2383 = vpack.c.b16 %v2209, %v2206
    %v2384 = vpack.c.b16 %v2210, %v2207
    %v2385 = vpack.c.b16 %v2211, %v2208
    %v2386 = vpack.c.b16 %v2215, %v2212
    %v2387 = vpack.c.b16 %v2216, %v2213
    %v2388 = vpack.c.b16 %v2217, %v2214
    %v2389 = vpack.c.b16 %v2221, %v2218
    %v2390 = vpack.c.b16 %v2222, %v2219
    %v2391 = vpack.c.b16 %v2223, %v2220
    %v2392 = vpack.c.b16 %v2227, %v2224
    %v2393 = vpack.c.b16 %v2228, %v2225
    %v2394 = vpack.c.b16 %v2229, %v2226
    %v2395 = vpack.c.b16 %v2233, %v2230
    %v2396 = vpack.c.b16 %v2234, %v2231
    %v2397 = vpack.c.b16 %v2235, %v2232
    %v2398 = vpack.c.b16 %v2239, %v2236
    %v2399 = vpack.c.b16 %v2240, %v2237
    %v2400 = vpack.c.b16 %v2241, %v2238
    %v2401 = vpack.c.b16 %v2245, %v2242
    %v2402 = vpack.c.b16 %v2246, %v2243
    %v2403 = vpack.c.b16 %v2247, %v2244
    %v2404 = vpack.c.b16 %v2251, %v2248
    %v2405 = vpack.c.b16 %v2252, %v2249
    %v2406 = vpack.c.b16 %v2253, %v2250
    %v2407 = vpack.c.b16 %v2257, %v2254
    %v2408 = vpack.c.b16 %v2258, %v2255
    %v2409 = vpack.c.b16 %v2259, %v2256
    %v2410 = vpack.c.b16 %v2263, %v2260
    %v2411 = vpack.c.b16 %v2264, %v2261
    %v2412 = vpack.c.b16 %v2265, %v2262
    %v2413 = vpack.c.b16 %v2269, %v2266
    %v2414 = vpack.c.b16 %v2270, %v2267
    %v2415 = vpack.c.b16 %v2271, %v2268
    %2560 = vmatpush.bf16.msra.mxu0 %v2293
    %2561 = vmatpush.bf16.msra.mxu0 %v2290
    %2562 = vmatpush.bf16.msra.mxu0 %v2287
    %2563 = vmatpush.bf16.msra.mxu0 %v2284
    %2564 = vmatpush.bf16.msra.mxu0 %v2281
    %2565 = vmatpush.bf16.msra.mxu0 %v2278
    %2566 = vmatpush.bf16.msra.mxu0 %v2275
    %2567 = vmatpush.bf16.msra.mxu0 %v2272
    %2568 = vmatmul.bf16.gmra.mxu0 %v1780
    %v2569 = vpop.f32.mrf.mxu0
    %v2570 = vadd.f32 %v1765, %v2569
    %v2571 = vpop.f32.mrf.mxu0
    %2572 = vdwg.mxu0
    %2573 = vmatpush.bf16.msra.mxu0 %v2317
    %2574 = vmatpush.bf16.msra.mxu0 %v2314
    %2575 = vmatpush.bf16.msra.mxu0 %v2311
    %2576 = vmatpush.bf16.msra.mxu0 %v2308
    %2577 = vmatpush.bf16.msra.mxu0 %v2305
    %2578 = vmatpush.bf16.msra.mxu0 %v2302
    %2579 = vmatpush.bf16.msra.mxu0 %v2299
    %2580 = vmatpush.bf16.msra.mxu0 %v2296
    %2581 = vmatmul.bf16.gmra.mxu0 %v1781
    %v2582 = vpop.f32.mrf.mxu0
    %v2583 = vadd.f32 %v2570, %v2582
    %v2584 = vpop.f32.mrf.mxu0
    %2585 = vdwg.mxu0
    %2586 = vmatpush.bf16.msra.mxu0 %v2341
    %2587 = vmatpush.bf16.msra.mxu0 %v2338
    %2588 = vmatpush.bf16.msra.mxu0 %v2335
    %2589 = vmatpush.bf16.msra.mxu0 %v2332
    %2590 = vmatpush.bf16.msra.mxu0 %v2329
    %2591 = vmatpush.bf16.msra.mxu0 %v2326
    %2592 = vmatpush.bf16.msra.mxu0 %v2323
    %2593 = vmatpush.bf16.msra.mxu0 %v2320
    %2594 = vmatmul.bf16.gmra.mxu0 %v1782
    %v2595 = vpop.f32.mrf.mxu0
    %v2596 = vadd.f32 %v2583, %v2595
    %v2597 = vpop.f32.mrf.mxu0
    %2598 = vdwg.mxu0
    %2599 = vmatpush.bf16.msra.mxu0 %v2365
    %2600 = vmatpush.bf16.msra.mxu0 %v2362
    %2601 = vmatpush.bf16.msra.mxu0 %v2359
    %2602 = vmatpush.bf16.msra.mxu0 %v2356
    %2603 = vmatpush.bf16.msra.mxu0 %v2353
    %2604 = vmatpush.bf16.msra.mxu0 %v2350
    %2605 = vmatpush.bf16.msra.mxu0 %v2347
    %2606 = vmatpush.bf16.msra.mxu0 %v2344
    %2607 = vmatmul.bf16.gmra.mxu0 %v1783
    %v2608 = vpop.f32.mrf.mxu0
    %v2609 = vadd.f32 %v2596, %v2608
    %v2610 = vpop.f32.mrf.mxu0
    %2611 = vdwg.mxu0
    %2612 = vmatpush.bf16.msra.mxu0 %v2389
    %2613 = vmatpush.bf16.msra.mxu0 %v2386
    %2614 = vmatpush.bf16.msra.mxu0 %v2383
    %2615 = vmatpush.bf16.msra.mxu0 %v2380
    %2616 = vmatpush.bf16.msra.mxu0 %v2377
    %2617 = vmatpush.bf16.msra.mxu0 %v2374
    %2618 = vmatpush.bf16.msra.mxu0 %v2371
    %2619 = vmatpush.bf16.msra.mxu0 %v2368
    %2620 = vmatmul.bf16.gmra.mxu0 %v1784
    %v2621 = vpop.f32.mrf.mxu0
    %v2622 = vadd.f32 %v2609, %v2621
    %v2623 = vpop.f32.mrf.mxu0
    %2624 = vdwg.mxu0
    %2625 = vmatpush.bf16.msra.mxu0 %v2413
    %2626 = vmatpush.bf16.msra.mxu0 %v2410
    %2627 = vmatpush.bf16.msra.mxu0 %v2407
    %2628 = vmatpush.bf16.msra.mxu0 %v2404
    %2629 = vmatpush.bf16.msra.mxu0 %v2401
    %2630 = vmatpush.bf16.msra.mxu0 %v2398
    %2631 = vmatpush.bf16.msra.mxu0 %v2395
    %2632 = vmatpush.bf16.msra.mxu0 %v2392
    %2633 = vmatmul.bf16.gmra.mxu0 %v1785
    %v2634 = vpop.f32.mrf.mxu0
    %v2635 = vadd.f32 %v2622, %v2634
    %v2636 = vpop.f32.mrf.mxu0
    %2637 = vdwg.mxu0
    %2638 = vmatpush.bf16.msra.mxu0 %v2294
    %2639 = vmatpush.bf16.msra.mxu0 %v2291
    %2640 = vmatpush.bf16.msra.mxu0 %v2288
    %2641 = vmatpush.bf16.msra.mxu0 %v2285
    %2642 = vmatpush.bf16.msra.mxu0 %v2282
    %2643 = vmatpush.bf16.msra.mxu0 %v2279
    %2644 = vmatpush.bf16.msra.mxu0 %v2276
    %2645 = vmatpush.bf16.msra.mxu0 %v2273
    %2646 = vmatmul.bf16.gmra.mxu0 %v1780
    %v2647 = vpop.f32.mrf.mxu0
    %v2648 = vadd.f32 %v1766, %v2647
    %v2649 = vpop.f32.mrf.mxu0
    %2650 = vdwg.mxu0
    %2651 = vmatpush.bf16.msra.mxu0 %v2318
    %2652 = vmatpush.bf16.msra.mxu0 %v2315
    %2653 = vmatpush.bf16.msra.mxu0 %v2312
    %2654 = vmatpush.bf16.msra.mxu0 %v2309
    %2655 = vmatpush.bf16.msra.mxu0 %v2306
    %2656 = vmatpush.bf16.msra.mxu0 %v2303
    %2657 = vmatpush.bf16.msra.mxu0 %v2300
    %2658 = vmatpush.bf16.msra.mxu0 %v2297
    %2659 = vmatmul.bf16.gmra.mxu0 %v1781
    %v2660 = vpop.f32.mrf.mxu0
    %v2661 = vadd.f32 %v2648, %v2660
    %v2662 = vpop.f32.mrf.mxu0
    %2663 = vdwg.mxu0
    %2664 = vmatpush.bf16.msra.mxu0 %v2342
    %2665 = vmatpush.bf16.msra.mxu0 %v2339
    %2666 = vmatpush.bf16.msra.mxu0 %v2336
    %2667 = vmatpush.bf16.msra.mxu0 %v2333
    %2668 = vmatpush.bf16.msra.mxu0 %v2330
    %2669 = vmatpush.bf16.msra.mxu0 %v2327
    %2670 = vmatpush.bf16.msra.mxu0 %v2324
    %2671 = vmatpush.bf16.msra.mxu0 %v2321
    %2672 = vmatmul.bf16.gmra.mxu0 %v1782
    %v2673 = vpop.f32.mrf.mxu0
    %v2674 = vadd.f32 %v2661, %v2673
    %v2675 = vpop.f32.mrf.mxu0
    %2676 = vdwg.mxu0
    %2677 = vmatpush.bf16.msra.mxu0 %v2366
    %2678 = vmatpush.bf16.msra.mxu0 %v2363
    %2679 = vmatpush.bf16.msra.mxu0 %v2360
    %2680 = vmatpush.bf16.msra.mxu0 %v2357
    %2681 = vmatpush.bf16.msra.mxu0 %v2354
    %2682 = vmatpush.bf16.msra.mxu0 %v2351
    %2683 = vmatpush.bf16.msra.mxu0 %v2348
    %2684 = vmatpush.bf16.msra.mxu0 %v2345
    %2685 = vmatmul.bf16.gmra.mxu0 %v1783
    %v2686 = vpop.f32.mrf.mxu0
    %v2687 = vadd.f32 %v2674, %v2686
    %v2688 = vpop.f32.mrf.mxu0
    %2689 = vdwg.mxu0
    %2690 = vmatpush.bf16.msra.mxu0 %v2390
    %2691 = vmatpush.bf16.msra.mxu0 %v2387
    %2692 = vmatpush.bf16.msra.mxu0 %v2384
    %2693 = vmatpush.bf16.msra.mxu0 %v2381
    %2694 = vmatpush.bf16.msra.mxu0 %v2378
    %2695 = vmatpush.bf16.msra.mxu0 %v2375
    %2696 = vmatpush.bf16.msra.mxu0 %v2372
    %2697 = vmatpush.bf16.msra.mxu0 %v2369
    %2698 = vmatmul.bf16.gmra.mxu0 %v1784
    %v2699 = vpop.f32.mrf.mxu0
    %v2700 = vadd.f32 %v2687, %v2699
    %v2701 = vpop.f32.mrf.mxu0
    %2702 = vdwg.mxu0
    %2703 = vmatpush.bf16.msra.mxu0 %v2414
    %2704 = vmatpush.bf16.msra.mxu0 %v2411
    %2705 = vmatpush.bf16.msra.mxu0 %v2408
    %2706 = vmatpush.bf16.msra.mxu0 %v2405
    %2707 = vmatpush.bf16.msra.mxu0 %v2402
    %2708 = vmatpush.bf16.msra.mxu0 %v2399
    %2709 = vmatpush.bf16.msra.mxu0 %v2396
    %2710 = vmatpush.bf16.msra.mxu0 %v2393
    %2711 = vmatmul.bf16.gmra.mxu0 %v1785
    %v2712 = vpop.f32.mrf.mxu0
    %v2713 = vadd.f32 %v2700, %v2712
    %v2714 = vpop.f32.mrf.mxu0
    %2715 = vdwg.mxu0
    %2716 = vmatpush.bf16.msra.mxu0 %v2295
    %2717 = vmatpush.bf16.msra.mxu0 %v2292
    %2718 = vmatpush.bf16.msra.mxu0 %v2289
    %2719 = vmatpush.bf16.msra.mxu0 %v2286
    %2720 = vmatpush.bf16.msra.mxu0 %v2283
    %2721 = vmatpush.bf16.msra.mxu0 %v2280
    %2722 = vmatpush.bf16.msra.mxu0 %v2277
    %2723 = vmatpush.bf16.msra.mxu0 %v2274
    %2724 = vmatmul.bf16.gmra.mxu0 %v1780
    %v2725 = vpop.f32.mrf.mxu0
    %v2726 = vadd.f32 %v1767, %v2725
    %v2727 = vpop.f32.mrf.mxu0
    %2728 = vdwg.mxu0
    %2729 = vmatpush.bf16.msra.mxu0 %v2319
    %2730 = vmatpush.bf16.msra.mxu0 %v2316
    %2731 = vmatpush.bf16.msra.mxu0 %v2313
    %2732 = vmatpush.bf16.msra.mxu0 %v2310
    %2733 = vmatpush.bf16.msra.mxu0 %v2307
    %2734 = vmatpush.bf16.msra.mxu0 %v2304
    %2735 = vmatpush.bf16.msra.mxu0 %v2301
    %2736 = vmatpush.bf16.msra.mxu0 %v2298
    %2737 = vmatmul.bf16.gmra.mxu0 %v1781
    %v2738 = vpop.f32.mrf.mxu0
    %v2739 = vadd.f32 %v2726, %v2738
    %v2740 = vpop.f32.mrf.mxu0
    %2741 = vdwg.mxu0
    %2742 = vmatpush.bf16.msra.mxu0 %v2343
    %2743 = vmatpush.bf16.msra.mxu0 %v2340
    %2744 = vmatpush.bf16.msra.mxu0 %v2337
    %2745 = vmatpush.bf16.msra.mxu0 %v2334
    %2746 = vmatpush.bf16.msra.mxu0 %v2331
    %2747 = vmatpush.bf16.msra.mxu0 %v2328
    %2748 = vmatpush.bf16.msra.mxu0 %v2325
    %2749 = vmatpush.bf16.msra.mxu0 %v2322
    %2750 = vmatmul.bf16.gmra.mxu0 %v1782
    %v2751 = vpop.f32.mrf.mxu0
    %v2752 = vadd.f32 %v2739, %v2751
    %v2753 = vpop.f32.mrf.mxu0
    %2754 = vdwg.mxu0
    %2755 = vmatpush.bf16.msra.mxu0 %v2367
    %2756 = vmatpush.bf16.msra.mxu0 %v2364
    %2757 = vmatpush.bf16.msra.mxu0 %v2361
    %2758 = vmatpush.bf16.msra.mxu0 %v2358
    %2759 = vmatpush.bf16.msra.mxu0 %v2355
    %2760 = vmatpush.bf16.msra.mxu0 %v2352
    %2761 = vmatpush.bf16.msra.mxu0 %v2349
    %2762 = vmatpush.bf16.msra.mxu0 %v2346
    %2763 = vmatmul.bf16.gmra.mxu0 %v1783
    %v2764 = vpop.f32.mrf.mxu0
    %v2765 = vadd.f32 %v2752, %v2764
    %v2766 = vpop.f32.mrf.mxu0
    %2767 = vdwg.mxu0
    %2768 = vmatpush.bf16.msra.mxu0 %v2391
    %2769 = vmatpush.bf16.msra.mxu0 %v2388
    %2770 = vmatpush.bf16.msra.mxu0 %v2385
    %2771 = vmatpush.bf16.msra.mxu0 %v2382
    %2772 = vmatpush.bf16.msra.mxu0 %v2379
    %2773 = vmatpush.bf16.msra.mxu0 %v2376
    %2774 = vmatpush.bf16.msra.mxu0 %v2373
    %2775 = vmatpush.bf16.msra.mxu0 %v2370
    %2776 = vmatmul.bf16.gmra.mxu0 %v1784
    %v2777 = vpop.f32.mrf.mxu0
    %v2778 = vadd.f32 %v2765, %v2777
    %v2779 = vpop.f32.mrf.mxu0
    %2780 = vdwg.mxu0
    %2781 = vmatpush.bf16.msra.mxu0 %v2415
    %2782 = vmatpush.bf16.msra.mxu0 %v2412
    %2783 = vmatpush.bf16.msra.mxu0 %v2409
    %2784 = vmatpush.bf16.msra.mxu0 %v2406
    %2785 = vmatpush.bf16.msra.mxu0 %v2403
    %2786 = vmatpush.bf16.msra.mxu0 %v2400
    %2787 = vmatpush.bf16.msra.mxu0 %v2397
    %2788 = vmatpush.bf16.msra.mxu0 %v2394
    %2789 = vmatmul.bf16.gmra.mxu0 %v1785
    %v2790 = vpop.f32.mrf.mxu0
    %v2791 = vadd.f32 %v2778, %v2790
    %v2792 = vpop.f32.mrf.mxu0
    %2793 = vdwg.mxu0
    %v2794 = vmax.f32 %v2635, 0.0
    %v2795 = vmax.f32 %v2713, 0.0
    %v2796 = vmax.f32 %v2791, 0.0
    %v2797 = vpack.c.bf16 %v2794, %v2794
    %v2798 = vpack.c.bf16 %v2795, %v2795
    %v2799 = vpack.c.bf16 %v2796, %v2796
    %v2800 = vld [vmem:[#allocation14] sm:$0xf]
    %v2801 = vld [vmem:[#allocation14 + $0x4] sm:$0xf]
    %v2802 = vld [vmem:[#allocation14 + $0x8] sm:$0xf]
    %v2803 = vld [vmem:[#allocation14 + $0xc] sm:$0xf]
    %v2804 = vld [vmem:[#allocation14 + $0x10] sm:$0xf]
    %v2805 = vld [vmem:[#allocation14 + $0x14] sm:$0xf]
    %v2806 = vld [vmem:[#allocation14 + $0x18] sm:$0xf]
    %v2807 = vld [vmem:[#allocation14 + $0x1c] sm:$0xf]
    %v2808 = vld [vmem:[#allocation14 + $0x20] sm:$0xf]
    %v2809 = vld [vmem:[#allocation14 + $0x24] sm:$0xf]
    %v2810 = vld [vmem:[#allocation14 + $0x28] sm:$0xf]
    %v2811 = vld [vmem:[#allocation14 + $0x2c] sm:$0xf]
    %v2812 = vld [vmem:[#allocation14 + $0x30] sm:$0xf]
    %v2813 = vld [vmem:[#allocation14 + $0x34] sm:$0xf]
    %v2814 = vld [vmem:[#allocation14 + $0x38] sm:$0xf]
    %v2815 = vld [vmem:[#allocation14 + $0x3c] sm:$0xf]
    %v2816 = vld [vmem:[#allocation14 + $0x40] sm:$0xf]
    %v2817 = vld [vmem:[#allocation14 + $0x44] sm:$0xf]
    %v2818 = vld [vmem:[#allocation14 + $0x48] sm:$0xf]
    %v2819 = vld [vmem:[#allocation14 + $0x4c] sm:$0xf]
    %v2820 = vld [vmem:[#allocation14 + $0x50] sm:$0xf]
    %v2821 = vld [vmem:[#allocation14 + $0x54] sm:$0xf]
    %v2822 = vld [vmem:[#allocation14 + $0x58] sm:$0xf]
    %v2823 = vld [vmem:[#allocation14 + $0x5c] sm:$0xf]
    %v2824 = vld [vmem:[#allocation14 + $0x60] sm:$0xf]
    %v2825 = vld [vmem:[#allocation14 + $0x64] sm:$0xf]
    %v2826 = vld [vmem:[#allocation14 + $0x68] sm:$0xf]
    %v2827 = vld [vmem:[#allocation14 + $0x6c] sm:$0xf]
    %v2828 = vld [vmem:[#allocation14 + $0x70] sm:$0xf]
    %v2829 = vld [vmem:[#allocation14 + $0x74] sm:$0xf]
    %v2830 = vld [vmem:[#allocation14 + $0x78] sm:$0xf]
    %v2831 = vld [vmem:[#allocation14 + $0x7c] sm:$0xf]
    %v2832 = vld [vmem:[#allocation14 + $0x80] sm:$0xf]
    %v2833 = vld [vmem:[#allocation14 + $0x84] sm:$0xf]
    %v2834 = vld [vmem:[#allocation14 + $0x88] sm:$0xf]
    %v2835 = vld [vmem:[#allocation14 + $0x8c] sm:$0xf]
    %v2836 = vld [vmem:[#allocation14 + $0x90] sm:$0xf]
    %v2837 = vld [vmem:[#allocation14 + $0x94] sm:$0xf]
    %v2838 = vld [vmem:[#allocation14 + $0x98] sm:$0xf]
    %v2839 = vld [vmem:[#allocation14 + $0x9c] sm:$0xf]
    %v2840 = vld [vmem:[#allocation14 + $0xa0] sm:$0xf]
    %v2841 = vld [vmem:[#allocation14 + $0xa4] sm:$0xf]
    %v2842 = vld [vmem:[#allocation14 + $0xa8] sm:$0xf]
    %v2843 = vld [vmem:[#allocation14 + $0xac] sm:$0xf]
    %v2844 = vld [vmem:[#allocation14 + $0xb0] sm:$0xf]
    %v2845 = vld [vmem:[#allocation14 + $0xb4] sm:$0xf]
    %v2846 = vld [vmem:[#allocation14 + $0xb8] sm:$0xf]
    %v2847 = vld [vmem:[#allocation14 + $0xbc] sm:$0xf]
    %v2848 = vld [vmem:[#allocation16] sm:$0x1]
    %v2850 = vperm.slane %v2848, 0
    %v2900 = vunpack.c.l.b16 %v2800
    %v2901 = vunpack.c.l.b16 %v2801
    %v2902 = vunpack.c.l.b16 %v2802
    %v2903 = vunpack.c.l.b16 %v2803
    %v2904 = vunpack.c.l.b16 %v2804
    %v2905 = vunpack.c.l.b16 %v2805
    %v2906 = vunpack.c.l.b16 %v2806
    %v2907 = vunpack.c.l.b16 %v2807
    %v2908 = vunpack.c.l.b16 %v2808
    %v2909 = vunpack.c.l.b16 %v2809
    %v2910 = vunpack.c.l.b16 %v2810
    %v2911 = vunpack.c.l.b16 %v2811
    %v2912 = vunpack.c.l.b16 %v2812
    %v2913 = vunpack.c.l.b16 %v2813
    %v2914 = vunpack.c.l.b16 %v2814
    %v2915 = vunpack.c.l.b16 %v2815
    %v2916 = vunpack.c.l.b16 %v2816
    %v2917 = vunpack.c.l.b16 %v2817
    %v2918 = vunpack.c.l.b16 %v2818
    %v2919 = vunpack.c.l.b16 %v2819
    %v2920 = vunpack.c.l.b16 %v2820
    %v2921 = vunpack.c.l.b16 %v2821
    %v2922 = vunpack.c.l.b16 %v2822
    %v2923 = vunpack.c.l.b16 %v2823
    %v2924 = vunpack.c.l.b16 %v2824
    %v2925 = vunpack.c.l.b16 %v2825
    %v2926 = vunpack.c.l.b16 %v2826
    %v2927 = vunpack.c.l.b16 %v2827
    %v2928 = vunpack.c.l.b16 %v2828
    %v2929 = vunpack.c.l.b16 %v2829
    %v2930 = vunpack.c.l.b16 %v2830
    %v2931 = vunpack.c.l.b16 %v2831
    %v2932 = vunpack.c.l.b16 %v2832
    %v2933 = vunpack.c.l.b16 %v2833
    %v2934 = vunpack.c.l.b16 %v2834
    %v2935 = vunpack.c.l.b16 %v2835
    %v2936 = vunpack.c.l.b16 %v2836
    %v2937 = vunpack.c.l.b16 %v2837
    %v2938 = vunpack.c.l.b16 %v2838
    %v2939 = vunpack.c.l.b16 %v2839
    %v2940 = vunpack.c.l.b16 %v2840
    %v2941 = vunpack.c.l.b16 %v2841
    %v2942 = vunpack.c.l.b16 %v2842
    %v2943 = vunpack.c.l.b16 %v2843
    %v2944 = vunpack.c.l.b16 %v2844
    %v2945 = vunpack.c.l.b16 %v2845
    %v2946 = vunpack.c.l.b16 %v2846
    %v2947 = vunpack.c.l.b16 %v2847
    %v2948 = vpack.c.b16 %v2901, %v2900
    %v2949 = vpack.c.b16 %v2903, %v2902
    %v2950 = vpack.c.b16 %v2905, %v2904
    %v2951 = vpack.c.b16 %v2907, %v2906
    %v2952 = vpack.c.b16 %v2909, %v2908
    %v2953 = vpack.c.b16 %v2911, %v2910
    %v2954 = vpack.c.b16 %v2913, %v2912
    %v2955 = vpack.c.b16 %v2915, %v2914
    %v2956 = vpack.c.b16 %v2917, %v2916
    %v2957 = vpack.c.b16 %v2919, %v2918
    %v2958 = vpack.c.b16 %v2921, %v2920
    %v2959 = vpack.c.b16 %v2923, %v2922
    %v2960 = vpack.c.b16 %v2925, %v2924
    %v2961 = vpack.c.b16 %v2927, %v2926
    %v2962 = vpack.c.b16 %v2929, %v2928
    %v2963 = vpack.c.b16 %v2931, %v2930
    %v2964 = vpack.c.b16 %v2933, %v2932
    %v2965 = vpack.c.b16 %v2935, %v2934
    %v2966 = vpack.c.b16 %v2937, %v2936
    %v2967 = vpack.c.b16 %v2939, %v2938
    %v2968 = vpack.c.b16 %v2941, %v2940
    %v2969 = vpack.c.b16 %v2943, %v2942
    %v2970 = vpack.c.b16 %v2945, %v2944
    %v2971 = vpack.c.b16 %v2947, %v2946
    %2996 = vmatpush.bf16.msra.mxu0 %v2955
    %2997 = vmatpush.bf16.msra.mxu0 %v2954
    %2998 = vmatpush.bf16.msra.mxu0 %v2953
    %2999 = vmatpush.bf16.msra.mxu0 %v2952
    %3000 = vmatpush.bf16.msra.mxu0 %v2951
    %3001 = vmatpush.bf16.msra.mxu0 %v2950
    %3002 = vmatpush.bf16.msra.mxu0 %v2949
    %3003 = vmatpush.bf16.msra.mxu0 %v2948
    %3004 = vmatmul.bf16.gmra.mxu0 %v2797
    %v3005 = vpop.f32.mrf.mxu0
    %v3006 = vadd.f32 %v2850, %v3005
    %v3007 = vpop.f32.mrf.mxu0
    %3008 = vdwg.mxu0
    %3009 = vmatpush.bf16.msra.mxu0 %v2963
    %3010 = vmatpush.bf16.msra.mxu0 %v2962
    %3011 = vmatpush.bf16.msra.mxu0 %v2961
    %3012 = vmatpush.bf16.msra.mxu0 %v2960
    %3013 = vmatpush.bf16.msra.mxu0 %v2959
    %3014 = vmatpush.bf16.msra.mxu0 %v2958
    %3015 = vmatpush.bf16.msra.mxu0 %v2957
    %3016 = vmatpush.bf16.msra.mxu0 %v2956
    %3017 = vmatmul.bf16.gmra.mxu0 %v2798
    %v3018 = vpop.f32.mrf.mxu0
    %v3019 = vadd.f32 %v3006, %v3018
    %v3020 = vpop.f32.mrf.mxu0
    %3021 = vdwg.mxu0
    %3022 = vmatpush.bf16.msra.mxu0 %v2971
    %3023 = vmatpush.bf16.msra.mxu0 %v2970
    %3024 = vmatpush.bf16.msra.mxu0 %v2969
    %3025 = vmatpush.bf16.msra.mxu0 %v2968
    %3026 = vmatpush.bf16.msra.mxu0 %v2967
    %3027 = vmatpush.bf16.msra.mxu0 %v2966
    %3028 = vmatpush.bf16.msra.mxu0 %v2965
    %3029 = vmatpush.bf16.msra.mxu0 %v2964
    %3030 = vmatmul.bf16.gmra.mxu0 %v2799
    %v3031 = vpop.f32.mrf.mxu0
    %v3032 = vadd.f32 %v3019, %v3031
    %v3033 = vpop.f32.mrf.mxu0
    %3034 = vdwg.mxu0
    %v3035 = vmax.f32 %v3032, 0.0
    %v3036 = vpack.c.bf16 %v3035, %v3035
    %v3037 = vld [vmem:[#allocation17] sm:$0xff]
    %v3038 = vld [vmem:[#allocation17 + $0x8] sm:$0xff]
    %v3039 = vld [vmem:[#allocation17 + $0x10] sm:$0xff]
    %v3040 = vld [vmem:[#allocation17 + $0x18] sm:$0xff]
    %v3041 = vld [vmem:[#allocation17 + $0x20] sm:$0xff]
    %v3042 = vld [vmem:[#allocation17 + $0x28] sm:$0xff]
    %v3043 = vld [vmem:[#allocation17 + $0x30] sm:$0xff]
    %v3044 = vld [vmem:[#allocation17 + $0x38] sm:$0xff]
    %v3045 = vld [vmem:[#allocation17 + $0x40] sm:$0xff]
    %v3046 = vld [vmem:[#allocation17 + $0x48] sm:$0xff]
    %v3047 = vld [vmem:[#allocation17 + $0x50] sm:$0xff]
    %v3048 = vld [vmem:[#allocation17 + $0x58] sm:$0xff]
    %v3049 = vld [vmem:[#allocation17 + $0x60] sm:$0xff]
    %v3050 = vld [vmem:[#allocation17 + $0x68] sm:$0xff]
    %v3051 = vld [vmem:[#allocation17 + $0x70] sm:$0xff]
    %v3052 = vld [vmem:[#allocation17 + $0x78] sm:$0xff]
    %v3053 = vld [vmem:[#allocation19] sm:$0x3]
    %v3055 = vperm.slane %v3053, 0
    %v3056 = vperm.slane %v3053, 1
    %v3075 = vunpack.c.l.b16 %v3037
    %v3076 = vunpack.c.h.b16 %v3037
    %v3077 = vunpack.c.l.b16 %v3038
    %v3078 = vunpack.c.h.b16 %v3038
    %v3079 = vunpack.c.l.b16 %v3039
    %v3080 = vunpack.c.h.b16 %v3039
    %v3081 = vunpack.c.l.b16 %v3040
    %v3082 = vunpack.c.h.b16 %v3040
    %v3083 = vunpack.c.l.b16 %v3041
    %v3084 = vunpack.c.h.b16 %v3041
    %v3085 = vunpack.c.l.b16 %v3042
    %v3086 = vunpack.c.h.b16 %v3042
    %v3087 = vunpack.c.l.b16 %v3043
    %v3088 = vunpack.c.h.b16 %v3043
    %v3089 = vunpack.c.l.b16 %v3044
    %v3090 = vunpack.c.h.b16 %v3044
    %v3091 = vunpack.c.l.b16 %v3045
    %v3092 = vunpack.c.h.b16 %v3045
    %v3093 = vunpack.c.l.b16 %v3046
    %v3094 = vunpack.c.h.b16 %v3046
    %v3095 = vunpack.c.l.b16 %v3047
    %v3096 = vunpack.c.h.b16 %v3047
    %v3097 = vunpack.c.l.b16 %v3048
    %v3098 = vunpack.c.h.b16 %v3048
    %v3099 = vunpack.c.l.b16 %v3049
    %v3100 = vunpack.c.h.b16 %v3049
    %v3101 = vunpack.c.l.b16 %v3050
    %v3102 = vunpack.c.h.b16 %v3050
    %v3103 = vunpack.c.l.b16 %v3051
    %v3104 = vunpack.c.h.b16 %v3051
    %v3105 = vunpack.c.l.b16 %v3052
    %v3106 = vunpack.c.h.b16 %v3052
    %v3107 = vpack.c.b16 %v3077, %v3075
    %v3108 = vpack.c.b16 %v3078, %v3076
    %v3109 = vpack.c.b16 %v3081, %v3079
    %v3110 = vpack.c.b16 %v3082, %v3080
    %v3111 = vpack.c.b16 %v3085, %v3083
    %v3112 = vpack.c.b16 %v3086, %v3084
    %v3113 = vpack.c.b16 %v3089, %v3087
    %v3114 = vpack.c.b16 %v3090, %v3088
    %v3115 = vpack.c.b16 %v3093, %v3091
    %v3116 = vpack.c.b16 %v3094, %v3092
    %v3117 = vpack.c.b16 %v3097, %v3095
    %v3118 = vpack.c.b16 %v3098, %v3096
    %v3119 = vpack.c.b16 %v3101, %v3099
    %v3120 = vpack.c.b16 %v3102, %v3100
    %v3121 = vpack.c.b16 %v3105, %v3103
    %v3122 = vpack.c.b16 %v3106, %v3104
    %3139 = vmatpush.bf16.msra.mxu0 %v3121
    %3140 = vmatpush.bf16.msra.mxu0 %v3119
    %3141 = vmatpush.bf16.msra.mxu0 %v3117
    %3142 = vmatpush.bf16.msra.mxu0 %v3115
    %3143 = vmatpush.bf16.msra.mxu0 %v3113
    %3144 = vmatpush.bf16.msra.mxu0 %v3111
    %3145 = vmatpush.bf16.msra.mxu0 %v3109
    %3146 = vmatpush.bf16.msra.mxu0 %v3107
    %3147 = vmatmul.bf16.gmra.mxu0 %v3036
    %v3148 = vpop.f32.mrf.mxu0
    %v3149 = vadd.f32 %v3055, %v3148
    %v3150 = vpop.f32.mrf.mxu0
    %3151 = vdwg.mxu0
    %3152 = vmatpush.bf16.msra.mxu0 %v3122
    %3153 = vmatpush.bf16.msra.mxu0 %v3120
    %3154 = vmatpush.bf16.msra.mxu0 %v3118
    %3155 = vmatpush.bf16.msra.mxu0 %v3116
    %3156 = vmatpush.bf16.msra.mxu0 %v3114
    %3157 = vmatpush.bf16.msra.mxu0 %v3112
    %3158 = vmatpush.bf16.msra.mxu0 %v3110
    %3159 = vmatpush.bf16.msra.mxu0 %v3108
    %3160 = vmatmul.bf16.gmra.mxu0 %v3036
    %v3161 = vpop.f32.mrf.mxu0
    %v3162 = vadd.f32 %v3056, %v3161
    %v3163 = vpop.f32.mrf.mxu0
    %3164 = vdwg.mxu0
    %3165 = vst [vmem:[#allocation21] sm:$0xff] %v3149
    %3166 = vst [vmem:[#allocation21 + $0x8] sm:$0xff] %v3162
    // Predicated region
    $region98: #{_autoencoder_call.1} parent=1 // pred_check
      _
    $region99: #{_autoencoder_call.1} parent=1 // pred_check_branch
      %3168 = sbr.rel (0) target = $region101
    $region100: #{_autoencoder_call.1} parent=1 // pred_region
      %3170 = vsyncadd [#allocation4], 0
      %s3172 = sshll.u32 [#allocation20], 4
      %s3173 = int_to_ptr.vmem [resolvable:$true] %s3172
      %s3174 = sshll.u32 %s13, 4
      %s3175 = int_to_ptr.hbm [resolvable:$true] %s3174
      %3177 = dma.vmem_to_hbm [thread:$0]  %s3173, 384, %s3175, [#allocation4]
    $region101: #{_autoencoder_call.1} parent=1 // pred_fallthru
      _
    // Predicated region
    $region102: #{_autoencoder_call.1} parent=1 // pred_check
      _
    $region103: #{_autoencoder_call.1} parent=1 // pred_check_branch
      %3179 = sbr.rel (0) target = $region105
    $region104: #{_autoencoder_call.1} parent=1 // pred_region
      %3181 = vsyncadd [#allocation22], 0
      %s3183 = sshll.u32 [#allocation21], 4
      %s3184 = int_to_ptr.vmem [resolvable:$true] %s3183
      %s3185 = sshll.u32 %s14, 4
      %s3186 = int_to_ptr.hbm [resolvable:$true] %s3185
      %3188 = dma.vmem_to_hbm [thread:$0]  %s3184, 256, %s3186, [#allocation22]
    $region105: #{_autoencoder_call.1} parent=1 // pred_fallthru
      _
    // Predicated region
    $region106: #{_autoencoder_call.1} parent=1 // pred_check
      _
    $region107: #{_autoencoder_call.1} parent=1 // pred_check_branch
      %3190 = sbr.rel (0) target = $region109
    $region108: #{_autoencoder_call.1} parent=1 // pred_region
      %3192 = dma.done [#allocation4], 384
    $region109: #{_autoencoder_call.1} parent=1 // pred_fallthru
      _
    // Predicated region
    $region110: #{_autoencoder_call.1} parent=1 // pred_check
      _
    $region111: #{_autoencoder_call.1} parent=1 // pred_check_branch
      %3194 = sbr.rel (0) target = $region113
    $region112: #{_autoencoder_call.1} parent=1 // pred_region
      %3196 = dma.done [#allocation22], 256
    $region113: #{_autoencoder_call.1} parent=1 // pred_fallthru
      _
    %3197 = vsyncpa [#allocation3], 1
    %3198 = vsyncpa [#allocation6], 1
    %3199 = vsyncpa [#allocation9], 1
    %3200 = vsyncpa [#allocation12], 1
    %3201 = vsyncpa [#allocation15], 1
    %3202 = vsyncpa [#allocation18], 1
    %3203 = vsyncpa [#allocation4], 1
    %3204 = vsyncpa [#allocation22], 1

// kernel: _autoencoder_call.1
$region0: #{_autoencoder_call.1}
  #allocation0 [shape = 'u32[]', space=smem, size = 0x4, offset = 0x4, fixed_abs, tag = 'smem constant byte address 0x4 - core index']
  #allocation1 [shape = 'u32[72,128]{1,0:T(1,128)}', space=vmem, size = 0x9000, scoped, tag = 'internal scratch']
  %s0 = inlined_call_operand.hbm [shape: bf16[8,16], index: 0, kind: input, shape index: {}]
  %s1 = inlined_call_operand.vmem [shape: bf16[16,128], index: 1, kind: input, shape index: {}]
  %s2 = inlined_call_operand.vmem [shape: f32[1,128], index: 2, kind: input, shape index: {}]
  %s3 = inlined_call_operand.hbm [shape: bf16[128,384], index: 3, kind: input, shape index: {}]
  %s4 = inlined_call_operand.hbm [shape: f32[1,384], index: 4, kind: input, shape index: {}]
  %s5 = inlined_call_operand.hbm [shape: bf16[384,768], index: 5, kind: input, shape index: {}]
  %s6 = inlined_call_operand.hbm [shape: f32[1,768], index: 6, kind: input, shape index: {}]
  %s7 = inlined_call_operand.hbm [shape: bf16[768,384], index: 7, kind: input, shape index: {}]
  %s8 = inlined_call_operand.hbm [shape: f32[1,384], index: 8, kind: input, shape index: {}]
  %s9 = inlined_call_operand.hbm [shape: bf16[384,128], index: 9, kind: input, shape index: {}]
  %s10 = inlined_call_operand.hbm [shape: f32[1,128], index: 10, kind: input, shape index: {}]
  %s11 = inlined_call_operand.hbm [shape: bf16[128,256], index: 11, kind: input, shape index: {}]
  %s12 = inlined_call_operand.hbm [shape: f32[1,256], index: 12, kind: input, shape index: {}]
  %s13 = inlined_call_operand.hbm [shape: bf16[8,768], index: 13, kind: output, shape index: {0}]
  %s14 = inlined_call_operand.hbm [shape: f32[8,256], index: 14, kind: output, shape index: {1}]
  %15 = xla_tuple %s13, %s14
  %s16 = sld [smem:[#allocation0]]
  $region114: #{_autoencoder_call.1} parent=0
    _
  %s18 = ssub.s32 1, %s16
  %s19 = scalar_select 0, %s18, %s16
  $region1: #{_autoencoder_call.1} parent=0
    #allocation2 [shape = 'u8[2048]{0}', space=vmem, size = 0x800, scoped, tag = 'input window, operand 0, single buffered']
    #allocation3 [shape = 's32[1]{0}', space=sflag, size = 0x4, scoped, tag = 'scoped memory for _autoencoder_call.1']
    #allocation4 [shape = 's32[1]{0}', space=sflag, size = 0x4, scoped, tag = 'scoped memory for _autoencoder_call.1']
    #allocation5 [shape = 'u8[98304]{0}', space=vmem, size = 0x18000, scoped, tag = 'input window, operand 3, single buffered']
    #allocation6 [shape = 's32[1]{0}', space=sflag, size = 0x4, scoped, tag = 'scoped memory for _autoencoder_call.1']
    #allocation7 [shape = 'u8[1536]{0}', space=vmem, size = 0x800, scoped, tag = 'input window, operand 4, single buffered']
    #allocation8 [shape = 'u8[589824]{0}', space=vmem, size = 0x90000, scoped, tag = 'input window, operand 5, single buffered']
    #allocation9 [shape = 's32[1]{0}', space=sflag, size = 0x4, scoped, tag = 'scoped memory for _autoencoder_call.1']
    #allocation10 [shape = 'u8[3072]{0}', space=vmem, size = 0xc00, scoped, tag = 'input window, operand 6, single buffered']
    #allocation11 [shape = 'u8[589824]{0}', space=vmem, size = 0x90000, scoped, tag = 'input window, operand 7, single buffered']
    #allocation12 [shape = 's32[1]{0}', space=sflag, size = 0x4, scoped, tag = 'scoped memory for _autoencoder_call.1']
    #allocation13 [shape = 'u8[1536]{0}', space=vmem, size = 0x800, scoped, tag = 'input window, operand 8, single buffered']
    #allocation14 [shape = 'u8[98304]{0}', space=vmem, size = 0x18000, scoped, tag = 'input window, operand 9, single buffered']
    #allocation15 [shape = 's32[1]{0}', space=sflag, size = 0x4, scoped, tag = 'scoped memory for _autoencoder_call.1']
    #allocation16 [shape = 'u8[512]{0}', space=vmem, size = 0x400, scoped, tag = 'input window, operand 10, single buffered']
    #allocation17 [shape = 'u8[65536]{0}', space=vmem, size = 0x10000, scoped, tag = 'input window, operand 11, single buffered']
    #allocation18 [shape = 's32[1]{0}', space=sflag, size = 0x4, scoped, tag = 'scoped memory for _autoencoder_call.1']
    #allocation19 [shape = 'u8[1024]{0}', space=vmem, size = 0x400, scoped, tag = 'input window, operand 12, single buffered']
    #allocation20 [shape = 'u8[12288]{0}', space=vmem, size = 0x3000, scoped, tag = 'output window, operand 0, single buffered']
    #allocation21 [shape = 'u8[8192]{0}', space=vmem, size = 0x2000, scoped, tag = 'output window, operand 1, single buffered']
    #allocation22 [shape = 's32[1]{0}', space=sflag, size = 0x4, scoped, tag = 'scoped memory for _autoencoder_call.1']
    %20 = vsyncpa [#allocation3], 0
    %21 = vsyncpa [#allocation6], 0
    %22 = vsyncpa [#allocation9], 0
    %23 = vsyncpa [#allocation12], 0
    %24 = vsyncpa [#allocation15], 0
    %25 = vsyncpa [#allocation18], 0
    %26 = vsyncpa [#allocation4], 0
    %27 = vsyncpa [#allocation22], 0
    // Predicated region
    $region2: #{_autoencoder_call.1} parent=1 // pred_check
      _
    $region3: #{_autoencoder_call.1} parent=1 // pred_check_branch
      %29 = sbr.rel (0) target = $region5
    $region4: #{_autoencoder_call.1} parent=1 // pred_region
      %31 = vsyncadd [#allocation3], 0
      %s33 = sshll.u32 %s0, 4
      %s34 = int_to_ptr.hbm [resolvable:$true] %s33
      %s35 = sshll.u32 [#allocation2], 4
      %s36 = int_to_ptr.vmem [resolvable:$true] %s35
      %38 = dma.hbm_to_vmem [thread:$0]  %s34, 64, %s36, [#allocation3]
    $region5: #{_autoencoder_call.1} parent=1 // pred_fallthru
      _
    // Predicated region
    $region6: #{_autoencoder_call.1} parent=1 // pred_check
      _
    $region7: #{_autoencoder_call.1} parent=1 // pred_check_branch
      %40 = sbr.rel (0) target = $region9
    $region8: #{_autoencoder_call.1} parent=1 // pred_region
      _
    $region9: #{_autoencoder_call.1} parent=1 // pred_fallthru
      _
    // Predicated region
    $region10: #{_autoencoder_call.1} parent=1 // pred_check
      _
    $region11: #{_autoencoder_call.1} parent=1 // pred_check_branch
      %42 = sbr.rel (0) target = $region13
    $region12: #{_autoencoder_call.1} parent=1 // pred_region
      _
    $region13: #{_autoencoder_call.1} parent=1 // pred_fallthru
      _
    // Predicated region
    $region14: #{_autoencoder_call.1} parent=1 // pred_check
      _
    $region15: #{_autoencoder_call.1} parent=1 // pred_check_branch
      %44 = sbr.rel (0) target = $region17
    $region16: #{_autoencoder_call.1} parent=1 // pred_region
      %46 = vsyncadd [#allocation6], 0
      %s47 = sshll.u32 %s3, 4
      %s48 = int_to_ptr.hbm [resolvable:$true] %s47
      %s49 = sshll.u32 [#allocation5], 4
      %s50 = int_to_ptr.vmem [resolvable:$true] %s49
      %55 = dma.hbm_to_vmem [thread:$0]  %s48, 3072, %s50, [#allocation6], 192, 192, 12
    $region17: #{_autoencoder_call.1} parent=1 // pred_fallthru
      _
    // Predicated region
    $region18: #{_autoencoder_call.1} parent=1 // pred_check
      _
    $region19: #{_autoencoder_call.1} parent=1 // pred_check_branch
      %57 = sbr.rel (0) target = $region21
    $region20: #{_autoencoder_call.1} parent=1 // pred_region
      %59 = vsyncadd [#allocation6], 0
      %s61 = sshll.u32 %s4, 4
      %s62 = int_to_ptr.hbm [resolvable:$true] %s61
      %s63 = sshll.u32 [#allocation7], 4
      %s64 = int_to_ptr.vmem [resolvable:$true] %s63
      %66 = dma.hbm_to_vmem [thread:$0]  %s62, 48, %s64, [#allocation6]
    $region21: #{_autoencoder_call.1} parent=1 // pred_fallthru
      _
    // Predicated region
    $region22: #{_autoencoder_call.1} parent=1 // pred_check
      _
    $region23: #{_autoencoder_call.1} parent=1 // pred_check_branch
      %68 = sbr.rel (0) target = $region25
    $region24: #{_autoencoder_call.1} parent=1 // pred_region
      %70 = vsyncadd [#allocation9], 0
      %s71 = sshll.u32 %s5, 4
      %s72 = int_to_ptr.hbm [resolvable:$true] %s71
      %s73 = sshll.u32 [#allocation8], 4
      %s74 = int_to_ptr.vmem [resolvable:$true] %s73
      %79 = dma.hbm_to_vmem [thread:$0]  %s72, 18432, %s74, [#allocation9], 384, 384, 24
    $region25: #{_autoencoder_call.1} parent=1 // pred_fallthru
      _
    // Predicated region
    $region26: #{_autoencoder_call.1} parent=1 // pred_check
      _
    $region27: #{_autoencoder_call.1} parent=1 // pred_check_branch
      %81 = sbr.rel (0) target = $region29
    $region28: #{_autoencoder_call.1} parent=1 // pred_region
      %83 = vsyncadd [#allocation9], 0
      %s85 = sshll.u32 %s6, 4
      %s86 = int_to_ptr.hbm [resolvable:$true] %s85
      %s87 = sshll.u32 [#allocation10], 4
      %s88 = int_to_ptr.vmem [resolvable:$true] %s87
      %90 = dma.hbm_to_vmem [thread:$0]  %s86, 96, %s88, [#allocation9]
    $region29: #{_autoencoder_call.1} parent=1 // pred_fallthru
      _
    // Predicated region
    $region30: #{_autoencoder_call.1} parent=1 // pred_check
      _
    $region31: #{_autoencoder_call.1} parent=1 // pred_check_branch
      %92 = sbr.rel (0) target = $region33
    $region32: #{_autoencoder_call.1} parent=1 // pred_region
      %94 = vsyncadd [#allocation12], 0
      %s95 = sshll.u32 %s7, 4
      %s96 = int_to_ptr.hbm [resolvable:$true] %s95
      %s97 = sshll.u32 [#allocation11], 4
      %s98 = int_to_ptr.vmem [resolvable:$true] %s97
      %103 = dma.hbm_to_vmem [thread:$0]  %s96, 18432, %s98, [#allocation12], 192, 192, 12
    $region33: #{_autoencoder_call.1} parent=1 // pred_fallthru
      _
    // Predicated region
    $region34: #{_autoencoder_call.1} parent=1 // pred_check
      _
    $region35: #{_autoencoder_call.1} parent=1 // pred_check_branch
      %105 = sbr.rel (0) target = $region37
    $region36: #{_autoencoder_call.1} parent=1 // pred_region
      %107 = vsyncadd [#allocation12], 0
      %s109 = sshll.u32 %s8, 4
      %s110 = int_to_ptr.hbm [resolvable:$true] %s109
      %s111 = sshll.u32 [#allocation13], 4
      %s112 = int_to_ptr.vmem [resolvable:$true] %s111
      %114 = dma.hbm_to_vmem [thread:$0]  %s110, 48, %s112, [#allocation12]
    $region37: #{_autoencoder_call.1} parent=1 // pred_fallthru
      _
    // Predicated region
    $region38: #{_autoencoder_call.1} parent=1 // pred_check
      _
    $region39: #{_autoencoder_call.1} parent=1 // pred_check_branch
      %116 = sbr.rel (0) target = $region41
    $region40: #{_autoencoder_call.1} parent=1 // pred_region
      %118 = vsyncadd [#allocation15], 0
      %s119 = sshll.u32 %s9, 4
      %s120 = int_to_ptr.hbm [resolvable:$true] %s119
      %s121 = sshll.u32 [#allocation14], 4
      %s122 = int_to_ptr.vmem [resolvable:$true] %s121
      %127 = dma.hbm_to_vmem [thread:$0]  %s120, 3072, %s122, [#allocation15], 64, 64, 4
    $region41: #{_autoencoder_call.1} parent=1 // pred_fallthru
      _
    // Predicated region
    $region42: #{_autoencoder_call.1} parent=1 // pred_check
      _
    $region43: #{_autoencoder_call.1} parent=1 // pred_check_branch
      %129 = sbr.rel (0) target = $region45
    $region44: #{_autoencoder_call.1} parent=1 // pred_region
      %131 = vsyncadd [#allocation15], 0
      %s133 = sshll.u32 %s10, 4
      %s134 = int_to_ptr.hbm [resolvable:$true] %s133
      %s135 = sshll.u32 [#allocation16], 4
      %s136 = int_to_ptr.vmem [resolvable:$true] %s135
      %138 = dma.hbm_to_vmem [thread:$0]  %s134, 16, %s136, [#allocation15]
    $region45: #{_autoencoder_call.1} parent=1 // pred_fallthru
      _
    // Predicated region
    $region46: #{_autoencoder_call.1} parent=1 // pred_check
      _
    $region47: #{_autoencoder_call.1} parent=1 // pred_check_branch
      %140 = sbr.rel (0) target = $region49
    $region48: #{_autoencoder_call.1} parent=1 // pred_region
      %142 = vsyncadd [#allocation18], 0
      %s143 = sshll.u32 %s11, 4
      %s144 = int_to_ptr.hbm [resolvable:$true] %s143
      %s145 = sshll.u32 [#allocation17], 4
      %s146 = int_to_ptr.vmem [resolvable:$true] %s145
      %151 = dma.hbm_to_vmem [thread:$0]  %s144, 2048, %s146, [#allocation18], 128, 128, 8
    $region49: #{_autoencoder_call.1} parent=1 // pred_fallthru
      _
    // Predicated region
    $region50: #{_autoencoder_call.1} parent=1 // pred_check
      _
    $region51: #{_autoencoder_call.1} parent=1 // pred_check_branch
      %153 = sbr.rel (0) target = $region53
    $region52: #{_autoencoder_call.1} parent=1 // pred_region
      %155 = vsyncadd [#allocation18], 0
      %s157 = sshll.u32 %s12, 4
      %s158 = int_to_ptr.hbm [resolvable:$true] %s157
      %s159 = sshll.u32 [#allocation19], 4
      %s160 = int_to_ptr.vmem [resolvable:$true] %s159
      %162 = dma.hbm_to_vmem [thread:$0]  %s158, 32, %s160, [#allocation18]
    $region53: #{_autoencoder_call.1} parent=1 // pred_fallthru
      _
    // Predicated region
    $region54: #{_autoencoder_call.1} parent=1 // pred_check
      _
    $region55: #{_autoencoder_call.1} parent=1 // pred_check_branch
      %164 = sbr.rel (0) target = $region57
    $region56: #{_autoencoder_call.1} parent=1 // pred_region
      %166 = dma.done [#allocation3], 64
    $region57: #{_autoencoder_call.1} parent=1 // pred_fallthru
      _
    // Predicated region
    $region58: #{_autoencoder_call.1} parent=1 // pred_check
      _
    $region59: #{_autoencoder_call.1} parent=1 // pred_check_branch
      %168 = sbr.rel (0) target = $region61
    $region60: #{_autoencoder_call.1} parent=1 // pred_region
      %170 = dma.done [#allocation6], 3072
    $region61: #{_autoencoder_call.1} parent=1 // pred_fallthru
      _
    // Predicated region
    $region62: #{_autoencoder_call.1} parent=1 // pred_check
      _
    $region63: #{_autoencoder_call.1} parent=1 // pred_check_branch
      %172 = sbr.rel (0) target = $region65
    $region64: #{_autoencoder_call.1} parent=1 // pred_region
      %174 = dma.done [#allocation6], 48
    $region65: #{_autoencoder_call.1} parent=1 // pred_fallthru
      _
    // Predicated region
    $region66: #{_autoencoder_call.1} parent=1 // pred_check
      _
    $region67: #{_autoencoder_call.1} parent=1 // pred_check_branch
      %176 = sbr.rel (0) target = $region69
    $region68: #{_autoencoder_call.1} parent=1 // pred_region
      %178 = dma.done [#allocation9], 18432
    $region69: #{_autoencoder_call.1} parent=1 // pred_fallthru
      _
    // Predicated region
    $region70: #{_autoencoder_call.1} parent=1 // pred_check
      _
    $region71: #{_autoencoder_call.1} parent=1 // pred_check_branch
      %180 = sbr.rel (0) target = $region73
    $region72: #{_autoencoder_call.1} parent=1 // pred_region
      %182 = dma.done [#allocation9], 96
    $region73: #{_autoencoder_call.1} parent=1 // pred_fallthru
      _
    // Predicated region
    $region74: #{_autoencoder_call.1} parent=1 // pred_check
      _
    $region75: #{_autoencoder_call.1} parent=1 // pred_check_branch
      %184 = sbr.rel (0) target = $region77
    $region76: #{_autoencoder_call.1} parent=1 // pred_region
      %186 = dma.done [#allocation12], 18432
    $region77: #{_autoencoder_call.1} parent=1 // pred_fallthru
      _
    // Predicated region
    $region78: #{_autoencoder_call.1} parent=1 // pred_check
      _
    $region79: #{_autoencoder_call.1} parent=1 // pred_check_branch
      %188 = sbr.rel (0) target = $region81
    $region80: #{_autoencoder_call.1} parent=1 // pred_region
      %190 = dma.done [#allocation12], 48
    $region81: #{_autoencoder_call.1} parent=1 // pred_fallthru
      _
    // Predicated region
    $region82: #{_autoencoder_call.1} parent=1 // pred_check
      _
    $region83: #{_autoencoder_call.1} parent=1 // pred_check_branch
      %192 = sbr.rel (0) target = $region85
    $region84: #{_autoencoder_call.1} parent=1 // pred_region
      %194 = dma.done [#allocation15], 3072
    $region85: #{_autoencoder_call.1} parent=1 // pred_fallthru
      _
    // Predicated region
    $region86: #{_autoencoder_call.1} parent=1 // pred_check
      _
    $region87: #{_autoencoder_call.1} parent=1 // pred_check_branch
      %196 = sbr.rel (0) target = $region89
    $region88: #{_autoencoder_call.1} parent=1 // pred_region
      %198 = dma.done [#allocation15], 16
    $region89: #{_autoencoder_call.1} parent=1 // pred_fallthru
      _
    // Predicated region
    $region90: #{_autoencoder_call.1} parent=1 // pred_check
      _
    $region91: #{_autoencoder_call.1} parent=1 // pred_check_branch
      %200 = sbr.rel (0) target = $region93
    $region92: #{_autoencoder_call.1} parent=1 // pred_region
      %202 = dma.done [#allocation18], 2048
    $region93: #{_autoencoder_call.1} parent=1 // pred_fallthru
      _
    // Predicated region
    $region94: #{_autoencoder_call.1} parent=1 // pred_check
      _
    $region95: #{_autoencoder_call.1} parent=1 // pred_check_branch
      %204 = sbr.rel (0) target = $region97
    $region96: #{_autoencoder_call.1} parent=1 // pred_region
      %206 = dma.done [#allocation18], 32
    $region97: #{_autoencoder_call.1} parent=1 // pred_fallthru
      _
    %v208 = vld [vmem:[#allocation2] sm:$0xf]
    %v209 = vld [vmem:[%s1] sm:$0xf]
    %v210 = vld [vmem:[%s1 + $0x4] sm:$0xf]
    %v211 = vld [vmem:[%s2] sm:$0x1]
    %v213 = vperm.slane %v211, 0
    %v217 = vunpack.c.l.b16 %v209
    %v218 = vunpack.c.l.b16 %v210
    %v219 = vpack.c.b16 %v218, %v217
    %vm221 = vcmask 130048
    %v223 = vsel %vm221, %v208, 0
    %225 = vmatpush.bf16.msra.mxu0 0
    %226 = vmatpush.bf16.msra.mxu0 0
    %227 = vmatpush.bf16.msra.mxu0 0
    %228 = vmatpush.bf16.msra.mxu0 0
    %229 = vmatpush.bf16.msra.mxu0 0
    %230 = vmatpush.bf16.msra.mxu0 0
    %231 = vmatpush.bf16.msra.mxu0 0
    %232 = vmatpush.bf16.msra.mxu0 %v219
    %233 = vmatmul.bf16.gmra.mxu0 %v223
    %v234 = vpop.f32.mrf.mxu0
    %v235 = vadd.f32 %v213, %v234
    %v236 = vpop.f32.mrf.mxu0
    %237 = vdwg.mxu0
    %v238 = vmax.f32 %v235, 0.0
    %v239 = vpack.c.bf16 %v238, %v238
    %v240 = vld [vmem:[#allocation5] sm:$0xff]
    %v241 = vld [vmem:[#allocation5 + $0x8] sm:$0xf]
    %v242 = vld [vmem:[#allocation5 + $0xc] sm:$0xff]
    %v243 = vld [vmem:[#allocation5 + $0x14] sm:$0xf]
    %v244 = vld [vmem:[#allocation5 + $0x18] sm:$0xff]
    %v245 = vld [vmem:[#allocation5 + $0x20] sm:$0xf]
    %v246 = vld [vmem:[#allocation5 + $0x24] sm:$0xff]
    %v247 = vld [vmem:[#allocation5 + $0x2c] sm:$0xf]
    %v248 = vld [vmem:[#allocation5 + $0x30] sm:$0xff]
    %v249 = vld [vmem:[#allocation5 + $0x38] sm:$0xf]
    %v250 = vld [vmem:[#allocation5 + $0x3c] sm:$0xff]
    %v251 = vld [vmem:[#allocation5 + $0x44] sm:$0xf]
    %v252 = vld [vmem:[#allocation5 + $0x48] sm:$0xff]
    %v253 = vld [vmem:[#allocation5 + $0x50] sm:$0xf]
    %v254 = vld [vmem:[#allocation5 + $0x54] sm:$0xff]
    %v255 = vld [vmem:[#allocation5 + $0x5c] sm:$0xf]
    %v256 = vld [vmem:[#allocation5 + $0x60] sm:$0xff]
    %v257 = vld [vmem:[#allocation5 + $0x68] sm:$0xf]
    %v258 = vld [vmem:[#allocation5 + $0x6c] sm:$0xff]
    %v259 = vld [vmem:[#allocation5 + $0x74] sm:$0xf]
    %v260 = vld [vmem:[#allocation5 + $0x78] sm:$0xff]
    %v261 = vld [vmem:[#allocation5 + $0x80] sm:$0xf]
    %v262 = vld [vmem:[#allocation5 + $0x84] sm:$0xff]
    %v263 = vld [vmem:[#allocation5 + $0x8c] sm:$0xf]
    %v264 = vld [vmem:[#allocation5 + $0x90] sm:$0xff]
    %v265 = vld [vmem:[#allocation5 + $0x98] sm:$0xf]
    %v266 = vld [vmem:[#allocation5 + $0x9c] sm:$0xff]
    %v267 = vld [vmem:[#allocation5 + $0xa4] sm:$0xf]
    %v268 = vld [vmem:[#allocation5 + $0xa8] sm:$0xff]
    %v269 = vld [vmem:[#allocation5 + $0xb0] sm:$0xf]
    %v270 = vld [vmem:[#allocation5 + $0xb4] sm:$0xff]
    %v271 = vld [vmem:[#allocation5 + $0xbc] sm:$0xf]
    %v272 = vld [vmem:[#allocation7] sm:$0x7]
    %v274 = vperm.slane %v272, 0
    %v275 = vperm.slane %v272, 1
    %v276 = vperm.slane %v272, 2
    %v312 = vunpack.c.l.b16 %v240
    %v313 = vunpack.c.h.b16 %v240
    %v314 = vunpack.c.l.b16 %v241
    %v315 = vunpack.c.l.b16 %v242
    %v316 = vunpack.c.h.b16 %v242
    %v317 = vunpack.c.l.b16 %v243
    %v318 = vunpack.c.l.b16 %v244
    %v319 = vunpack.c.h.b16 %v244
    %v320 = vunpack.c.l.b16 %v245
    %v321 = vunpack.c.l.b16 %v246
    %v322 = vunpack.c.h.b16 %v246
    %v323 = vunpack.c.l.b16 %v247
    %v324 = vunpack.c.l.b16 %v248
    %v325 = vunpack.c.h.b16 %v248
    %v326 = vunpack.c.l.b16 %v249
    %v327 = vunpack.c.l.b16 %v250
    %v328 = vunpack.c.h.b16 %v250
    %v329 = vunpack.c.l.b16 %v251
    %v330 = vunpack.c.l.b16 %v252
    %v331 = vunpack.c.h.b16 %v252
    %v332 = vunpack.c.l.b16 %v253
    %v333 = vunpack.c.l.b16 %v254
    %v334 = vunpack.c.h.b16 %v254
    %v335 = vunpack.c.l.b16 %v255
    %v336 = vunpack.c.l.b16 %v256
    %v337 = vunpack.c.h.b16 %v256
    %v338 = vunpack.c.l.b16 %v257
    %v339 = vunpack.c.l.b16 %v258
    %v340 = vunpack.c.h.b16 %v258
    %v341 = vunpack.c.l.b16 %v259
    %v342 = vunpack.c.l.b16 %v260
    %v343 = vunpack.c.h.b16 %v260
    %v344 = vunpack.c.l.b16 %v261
    %v345 = vunpack.c.l.b16 %v262
    %v346 = vunpack.c.h.b16 %v262
    %v347 = vunpack.c.l.b16 %v263
    %v348 = vunpack.c.l.b16 %v264
    %v349 = vunpack.c.h.b16 %v264
    %v350 = vunpack.c.l.b16 %v265
    %v351 = vunpack.c.l.b16 %v266
    %v352 = vunpack.c.h.b16 %v266
    %v353 = vunpack.c.l.b16 %v267
    %v354 = vunpack.c.l.b16 %v268
    %v355 = vunpack.c.h.b16 %v268
    %v356 = vunpack.c.l.b16 %v269
    %v357 = vunpack.c.l.b16 %v270
    %v358 = vunpack.c.h.b16 %v270
    %v359 = vunpack.c.l.b16 %v271
    %v360 = vpack.c.b16 %v315, %v312
    %v361 = vpack.c.b16 %v316, %v313
    %v362 = vpack.c.b16 %v317, %v314
    %v363 = vpack.c.b16 %v321, %v318
    %v364 = vpack.c.b16 %v322, %v319
    %v365 = vpack.c.b16 %v323, %v320
    %v366 = vpack.c.b16 %v327, %v324
    %v367 = vpack.c.b16 %v328, %v325
    %v368 = vpack.c.b16 %v329, %v326
    %v369 = vpack.c.b16 %v333, %v330
    %v370 = vpack.c.b16 %v334, %v331
    %v371 = vpack.c.b16 %v335, %v332
    %v372 = vpack.c.b16 %v339, %v336
    %v373 = vpack.c.b16 %v340, %v337
    %v374 = vpack.c.b16 %v341, %v338
    %v375 = vpack.c.b16 %v345, %v342
    %v376 = vpack.c.b16 %v346, %v343
    %v377 = vpack.c.b16 %v347, %v344
    %v378 = vpack.c.b16 %v351, %v348
    %v379 = vpack.c.b16 %v352, %v349
    %v380 = vpack.c.b16 %v353, %v350
    %v381 = vpack.c.b16 %v357, %v354
    %v382 = vpack.c.b16 %v358, %v355
    %v383 = vpack.c.b16 %v359, %v356
    %408 = vmatpush.bf16.msra.mxu0 %v381
    %409 = vmatpush.bf16.msra.mxu0 %v378
    %410 = vmatpush.bf16.msra.mxu0 %v375
    %411 = vmatpush.bf16.msra.mxu0 %v372
    %412 = vmatpush.bf16.msra.mxu0 %v369
    %413 = vmatpush.bf16.msra.mxu0 %v366
    %414 = vmatpush.bf16.msra.mxu0 %v363
    %415 = vmatpush.bf16.msra.mxu0 %v360
    %416 = vmatmul.bf16.gmra.mxu0 %v239
    %v417 = vpop.f32.mrf.mxu0
    %v418 = vadd.f32 %v274, %v417
    %v419 = vpop.f32.mrf.mxu0
    %420 = vdwg.mxu0
    %421 = vmatpush.bf16.msra.mxu0 %v382
    %422 = vmatpush.bf16.msra.mxu0 %v379
    %423 = vmatpush.bf16.msra.mxu0 %v376
    %424 = vmatpush.bf16.msra.mxu0 %v373
    %425 = vmatpush.bf16.msra.mxu0 %v370
    %426 = vmatpush.bf16.msra.mxu0 %v367
    %427 = vmatpush.bf16.msra.mxu0 %v364
    %428 = vmatpush.bf16.msra.mxu0 %v361
    %429 = vmatmul.bf16.gmra.mxu0 %v239
    %v430 = vpop.f32.mrf.mxu0
    %v431 = vadd.f32 %v275, %v430
    %v432 = vpop.f32.mrf.mxu0
    %433 = vdwg.mxu0
    %434 = vmatpush.bf16.msra.mxu0 %v383
    %435 = vmatpush.bf16.msra.mxu0 %v380
    %436 = vmatpush.bf16.msra.mxu0 %v377
    %437 = vmatpush.bf16.msra.mxu0 %v374
    %438 = vmatpush.bf16.msra.mxu0 %v371
    %439 = vmatpush.bf16.msra.mxu0 %v368
    %440 = vmatpush.bf16.msra.mxu0 %v365
    %441 = vmatpush.bf16.msra.mxu0 %v362
    %442 = vmatmul.bf16.gmra.mxu0 %v239
    %v443 = vpop.f32.mrf.mxu0
    %v444 = vadd.f32 %v276, %v443
    %v445 = vpop.f32.mrf.mxu0
    %446 = vdwg.mxu0
    %v447 = vmax.f32 %v418, 0.0
    %v448 = vmax.f32 %v431, 0.0
    %v449 = vmax.f32 %v444, 0.0
    %v450 = vpack.c.bf16 %v447, %v447
    %v451 = vpack.c.bf16 %v448, %v448
    %v452 = vpack.c.bf16 %v449, %v449
    %v453 = vld [vmem:[#allocation8] sm:$0xff]
    %v454 = vld [vmem:[#allocation8 + $0x8] sm:$0xff]
    %v455 = vld [vmem:[#allocation8 + $0x10] sm:$0xff]
    %v456 = vld [vmem:[#allocation8 + $0x18] sm:$0xff]
    %v457 = vld [vmem:[#allocation8 + $0x20] sm:$0xff]
    %v458 = vld [vmem:[#allocation8 + $0x28] sm:$0xff]
    %v459 = vld [vmem:[#allocation8 + $0x30] sm:$0xff]
    %v460 = vld [vmem:[#allocation8 + $0x38] sm:$0xff]
    %v461 = vld [vmem:[#allocation8 + $0x40] sm:$0xff]
    %v462 = vld [vmem:[#allocation8 + $0x48] sm:$0xff]
    %v463 = vld [vmem:[#allocation8 + $0x50] sm:$0xff]
    %v464 = vld [vmem:[#allocation8 + $0x58] sm:$0xff]
    %v465 = vld [vmem:[#allocation8 + $0x60] sm:$0xff]
    %v466 = vld [vmem:[#allocation8 + $0x68] sm:$0xff]
    %v467 = vld [vmem:[#allocation8 + $0x70] sm:$0xff]
    %v468 = vld [vmem:[#allocation8 + $0x78] sm:$0xff]
    %v469 = vld [vmem:[#allocation8 + $0x80] sm:$0xff]
    %v470 = vld [vmem:[#allocation8 + $0x88] sm:$0xff]
    %v471 = vld [vmem:[#allocation8 + $0x90] sm:$0xff]
    %v472 = vld [vmem:[#allocation8 + $0x98] sm:$0xff]
    %v473 = vld [vmem:[#allocation8 + $0xa0] sm:$0xff]
    %v474 = vld [vmem:[#allocation8 + $0xa8] sm:$0xff]
    %v475 = vld [vmem:[#allocation8 + $0xb0] sm:$0xff]
    %v476 = vld [vmem:[#allocation8 + $0xb8] sm:$0xff]
    %v477 = vld [vmem:[#allocation8 + $0xc0] sm:$0xff]
    %v478 = vld [vmem:[#allocation8 + $0xc8] sm:$0xff]
    %v479 = vld [vmem:[#allocation8 + $0xd0] sm:$0xff]
    %v480 = vld [vmem:[#allocation8 + $0xd8] sm:$0xff]
    %v481 = vld [vmem:[#allocation8 + $0xe0] sm:$0xff]
    %v482 = vld [vmem:[#allocation8 + $0xe8] sm:$0xff]
    %v483 = vld [vmem:[#allocation8 + $0xf0] sm:$0xff]
    %v484 = vld [vmem:[#allocation8 + $0xf8] sm:$0xff]
    %v485 = vld [vmem:[#allocation8 + $0x100] sm:$0xff]
    %v486 = vld [vmem:[#allocation8 + $0x108] sm:$0xff]
    %v487 = vld [vmem:[#allocation8 + $0x110] sm:$0xff]
    %v488 = vld [vmem:[#allocation8 + $0x118] sm:$0xff]
    %v489 = vld [vmem:[#allocation8 + $0x120] sm:$0xff]
    %v490 = vld [vmem:[#allocation8 + $0x128] sm:$0xff]
    %v491 = vld [vmem:[#allocation8 + $0x130] sm:$0xff]
    %v492 = vld [vmem:[#allocation8 + $0x138] sm:$0xff]
    %v493 = vld [vmem:[#allocation8 + $0x140] sm:$0xff]
    %v494 = vld [vmem:[#allocation8 + $0x148] sm:$0xff]
    %v495 = vld [vmem:[#allocation8 + $0x150] sm:$0xff]
    %v496 = vld [vmem:[#allocation8 + $0x158] sm:$0xff]
    %v497 = vld [vmem:[#allocation8 + $0x160] sm:$0xff]
    %v498 = vld [vmem:[#allocation8 + $0x168] sm:$0xff]
    %v499 = vld [vmem:[#allocation8 + $0x170] sm:$0xff]
    %v500 = vld [vmem:[#allocation8 + $0x178] sm:$0xff]
    %v501 = vld [vmem:[#allocation8 + $0x180] sm:$0xff]
    %v502 = vld [vmem:[#allocation8 + $0x188] sm:$0xff]
    %v503 = vld [vmem:[#allocation8 + $0x190] sm:$0xff]
    %v504 = vld [vmem:[#allocation8 + $0x198] sm:$0xff]
    %v505 = vld [vmem:[#allocation8 + $0x1a0] sm:$0xff]
    %v506 = vld [vmem:[#allocation8 + $0x1a8] sm:$0xff]
    %v507 = vld [vmem:[#allocation8 + $0x1b0] sm:$0xff]
    %v508 = vld [vmem:[#allocation8 + $0x1b8] sm:$0xff]
    %v509 = vld [vmem:[#allocation8 + $0x1c0] sm:$0xff]
    %v510 = vld [vmem:[#allocation8 + $0x1c8] sm:$0xff]
    %v511 = vld [vmem:[#allocation8 + $0x1d0] sm:$0xff]
    %v512 = vld [vmem:[#allocation8 + $0x1d8] sm:$0xff]
    %v513 = vld [vmem:[#allocation8 + $0x1e0] sm:$0xff]
    %v514 = vld [vmem:[#allocation8 + $0x1e8] sm:$0xff]
    %v515 = vld [vmem:[#allocation8 + $0x1f0] sm:$0xff]
    %v516 = vld [vmem:[#allocation8 + $0x1f8] sm:$0xff]
    %v517 = vld [vmem:[#allocation8 + $0x200] sm:$0xff]
    %v518 = vld [vmem:[#allocation8 + $0x208] sm:$0xff]
    %v519 = vld [vmem:[#allocation8 + $0x210] sm:$0xff]
    %v520 = vld [vmem:[#allocation8 + $0x218] sm:$0xff]
    %v521 = vld [vmem:[#allocation8 + $0x220] sm:$0xff]
    %v522 = vld [vmem:[#allocation8 + $0x228] sm:$0xff]
    %v523 = vld [vmem:[#allocation8 + $0x230] sm:$0xff]
    %v524 = vld [vmem:[#allocation8 + $0x238] sm:$0xff]
    %v525 = vld [vmem:[#allocation8 + $0x240] sm:$0xff]
    %v526 = vld [vmem:[#allocation8 + $0x248] sm:$0xff]
    %v527 = vld [vmem:[#allocation8 + $0x250] sm:$0xff]
    %v528 = vld [vmem:[#allocation8 + $0x258] sm:$0xff]
    %v529 = vld [vmem:[#allocation8 + $0x260] sm:$0xff]
    %v530 = vld [vmem:[#allocation8 + $0x268] sm:$0xff]
    %v531 = vld [vmem:[#allocation8 + $0x270] sm:$0xff]
    %v532 = vld [vmem:[#allocation8 + $0x278] sm:$0xff]
    %v533 = vld [vmem:[#allocation8 + $0x280] sm:$0xff]
    %v534 = vld [vmem:[#allocation8 + $0x288] sm:$0xff]
    %v535 = vld [vmem:[#allocation8 + $0x290] sm:$0xff]
    %v536 = vld [vmem:[#allocation8 + $0x298] sm:$0xff]
    %v537 = vld [vmem:[#allocation8 + $0x2a0] sm:$0xff]
    %v538 = vld [vmem:[#allocation8 + $0x2a8] sm:$0xff]
    %v539 = vld [vmem:[#allocation8 + $0x2b0] sm:$0xff]
    %v540 = vld [vmem:[#allocation8 + $0x2b8] sm:$0xff]
    %v541 = vld [vmem:[#allocation8 + $0x2c0] sm:$0xff]
    %v542 = vld [vmem:[#allocation8 + $0x2c8] sm:$0xff]
    %v543 = vld [vmem:[#allocation8 + $0x2d0] sm:$0xff]
    %v544 = vld [vmem:[#allocation8 + $0x2d8] sm:$0xff]
    %v545 = vld [vmem:[#allocation8 + $0x2e0] sm:$0xff]
    %v546 = vld [vmem:[#allocation8 + $0x2e8] sm:$0xff]
    %v547 = vld [vmem:[#allocation8 + $0x2f0] sm:$0xff]
    %v548 = vld [vmem:[#allocation8 + $0x2f8] sm:$0xff]
    %v549 = vld [vmem:[#allocation8 + $0x300] sm:$0xff]
    %v550 = vld [vmem:[#allocation8 + $0x308] sm:$0xff]
    %v551 = vld [vmem:[#allocation8 + $0x310] sm:$0xff]
    %v552 = vld [vmem:[#allocation8 + $0x318] sm:$0xff]
    %v553 = vld [vmem:[#allocation8 + $0x320] sm:$0xff]
    %v554 = vld [vmem:[#allocation8 + $0x328] sm:$0xff]
    %v555 = vld [vmem:[#allocation8 + $0x330] sm:$0xff]
    %v556 = vld [vmem:[#allocation8 + $0x338] sm:$0xff]
    %v557 = vld [vmem:[#allocation8 + $0x340] sm:$0xff]
    %v558 = vld [vmem:[#allocation8 + $0x348] sm:$0xff]
    %v559 = vld [vmem:[#allocation8 + $0x350] sm:$0xff]
    %v560 = vld [vmem:[#allocation8 + $0x358] sm:$0xff]
    %v561 = vld [vmem:[#allocation8 + $0x360] sm:$0xff]
    %v562 = vld [vmem:[#allocation8 + $0x368] sm:$0xff]
    %v563 = vld [vmem:[#allocation8 + $0x370] sm:$0xff]
    %v564 = vld [vmem:[#allocation8 + $0x378] sm:$0xff]
    %v565 = vld [vmem:[#allocation8 + $0x380] sm:$0xff]
    %v566 = vld [vmem:[#allocation8 + $0x388] sm:$0xff]
    %v567 = vld [vmem:[#allocation8 + $0x390] sm:$0xff]
    %v568 = vld [vmem:[#allocation8 + $0x398] sm:$0xff]
    %v569 = vld [vmem:[#allocation8 + $0x3a0] sm:$0xff]
    %v570 = vld [vmem:[#allocation8 + $0x3a8] sm:$0xff]
    %v571 = vld [vmem:[#allocation8 + $0x3b0] sm:$0xff]
    %v572 = vld [vmem:[#allocation8 + $0x3b8] sm:$0xff]
    %v573 = vld [vmem:[#allocation8 + $0x3c0] sm:$0xff]
    %v574 = vld [vmem:[#allocation8 + $0x3c8] sm:$0xff]
    %v575 = vld [vmem:[#allocation8 + $0x3d0] sm:$0xff]
    %v576 = vld [vmem:[#allocation8 + $0x3d8] sm:$0xff]
    %v577 = vld [vmem:[#allocation8 + $0x3e0] sm:$0xff]
    %v578 = vld [vmem:[#allocation8 + $0x3e8] sm:$0xff]
    %v579 = vld [vmem:[#allocation8 + $0x3f0] sm:$0xff]
    %v580 = vld [vmem:[#allocation8 + $0x3f8] sm:$0xff]
    %v581 = vld [vmem:[#allocation8 + $0x400] sm:$0xff]
    %v582 = vld [vmem:[#allocation8 + $0x408] sm:$0xff]
    %v583 = vld [vmem:[#allocation8 + $0x410] sm:$0xff]
    %v584 = vld [vmem:[#allocation8 + $0x418] sm:$0xff]
    %v585 = vld [vmem:[#allocation8 + $0x420] sm:$0xff]
    %v586 = vld [vmem:[#allocation8 + $0x428] sm:$0xff]
    %v587 = vld [vmem:[#allocation8 + $0x430] sm:$0xff]
    %v588 = vld [vmem:[#allocation8 + $0x438] sm:$0xff]
    %v589 = vld [vmem:[#allocation8 + $0x440] sm:$0xff]
    %v590 = vld [vmem:[#allocation8 + $0x448] sm:$0xff]
    %v591 = vld [vmem:[#allocation8 + $0x450] sm:$0xff]
    %v592 = vld [vmem:[#allocation8 + $0x458] sm:$0xff]
    %v593 = vld [vmem:[#allocation8 + $0x460] sm:$0xff]
    %v594 = vld [vmem:[#allocation8 + $0x468] sm:$0xff]
    %v595 = vld [vmem:[#allocation8 + $0x470] sm:$0xff]
    %v596 = vld [vmem:[#allocation8 + $0x478] sm:$0xff]
    %v597 = vld [vmem:[#allocation10] sm:$0x3f]
    %v599 = vperm.slane %v597, 0
    %v600 = vperm.slane %v597, 1
    %v601 = vperm.slane %v597, 2
    %v602 = vperm.slane %v597, 3
    %v603 = vperm.slane %v597, 4
    %v604 = vperm.slane %v597, 5
    %v755 = vunpack.c.l.b16 %v453
    %v756 = vunpack.c.h.b16 %v453
    %v757 = vunpack.c.l.b16 %v454
    %v758 = vunpack.c.h.b16 %v454
    %v759 = vunpack.c.l.b16 %v455
    %v760 = vunpack.c.h.b16 %v455
    %v761 = vunpack.c.l.b16 %v456
    %v762 = vunpack.c.h.b16 %v456
    %v763 = vunpack.c.l.b16 %v457
    %v764 = vunpack.c.h.b16 %v457
    %v765 = vunpack.c.l.b16 %v458
    %v766 = vunpack.c.h.b16 %v458
    %v767 = vunpack.c.l.b16 %v459
    %v768 = vunpack.c.h.b16 %v459
    %v769 = vunpack.c.l.b16 %v460
    %v770 = vunpack.c.h.b16 %v460
    %v771 = vunpack.c.l.b16 %v461
    %v772 = vunpack.c.h.b16 %v461
    %v773 = vunpack.c.l.b16 %v462
    %v774 = vunpack.c.h.b16 %v462
    %v775 = vunpack.c.l.b16 %v463
    %v776 = vunpack.c.h.b16 %v463
    %v777 = vunpack.c.l.b16 %v464
    %v778 = vunpack.c.h.b16 %v464
    %v779 = vunpack.c.l.b16 %v465
    %v780 = vunpack.c.h.b16 %v465
    %v781 = vunpack.c.l.b16 %v466
    %v782 = vunpack.c.h.b16 %v466
    %v783 = vunpack.c.l.b16 %v467
    %v784 = vunpack.c.h.b16 %v467
    %v785 = vunpack.c.l.b16 %v468
    %v786 = vunpack.c.h.b16 %v468
    %v787 = vunpack.c.l.b16 %v469
    %v788 = vunpack.c.h.b16 %v469
    %v789 = vunpack.c.l.b16 %v470
    %v790 = vunpack.c.h.b16 %v470
    %v791 = vunpack.c.l.b16 %v471
    %v792 = vunpack.c.h.b16 %v471
    %v793 = vunpack.c.l.b16 %v472
    %v794 = vunpack.c.h.b16 %v472
    %v795 = vunpack.c.l.b16 %v473
    %v796 = vunpack.c.h.b16 %v473
    %v797 = vunpack.c.l.b16 %v474
    %v798 = vunpack.c.h.b16 %v474
    %v799 = vunpack.c.l.b16 %v475
    %v800 = vunpack.c.h.b16 %v475
    %v801 = vunpack.c.l.b16 %v476
    %v802 = vunpack.c.h.b16 %v476
    %v803 = vunpack.c.l.b16 %v477
    %v804 = vunpack.c.h.b16 %v477
    %v805 = vunpack.c.l.b16 %v478
    %v806 = vunpack.c.h.b16 %v478
    %v807 = vunpack.c.l.b16 %v479
    %v808 = vunpack.c.h.b16 %v479
    %v809 = vunpack.c.l.b16 %v480
    %v810 = vunpack.c.h.b16 %v480
    %v811 = vunpack.c.l.b16 %v481
    %v812 = vunpack.c.h.b16 %v481
    %v813 = vunpack.c.l.b16 %v482
    %v814 = vunpack.c.h.b16 %v482
    %v815 = vunpack.c.l.b16 %v483
    %v816 = vunpack.c.h.b16 %v483
    %v817 = vunpack.c.l.b16 %v484
    %v818 = vunpack.c.h.b16 %v484
    %v819 = vunpack.c.l.b16 %v485
    %v820 = vunpack.c.h.b16 %v485
    %v821 = vunpack.c.l.b16 %v486
    %v822 = vunpack.c.h.b16 %v486
    %v823 = vunpack.c.l.b16 %v487
    %v824 = vunpack.c.h.b16 %v487
    %v825 = vunpack.c.l.b16 %v488
    %v826 = vunpack.c.h.b16 %v488
    %v827 = vunpack.c.l.b16 %v489
    %v828 = vunpack.c.h.b16 %v489
    %v829 = vunpack.c.l.b16 %v490
    %v830 = vunpack.c.h.b16 %v490
    %v831 = vunpack.c.l.b16 %v491
    %v832 = vunpack.c.h.b16 %v491
    %v833 = vunpack.c.l.b16 %v492
    %v834 = vunpack.c.h.b16 %v492
    %v835 = vunpack.c.l.b16 %v493
    %v836 = vunpack.c.h.b16 %v493
    %v837 = vunpack.c.l.b16 %v494
    %v838 = vunpack.c.h.b16 %v494
    %v839 = vunpack.c.l.b16 %v495
    %v840 = vunpack.c.h.b16 %v495
    %v841 = vunpack.c.l.b16 %v496
    %v842 = vunpack.c.h.b16 %v496
    %v843 = vunpack.c.l.b16 %v497
    %v844 = vunpack.c.h.b16 %v497
    %v845 = vunpack.c.l.b16 %v498
    %v846 = vunpack.c.h.b16 %v498
    %v847 = vunpack.c.l.b16 %v499
    %v848 = vunpack.c.h.b16 %v499
    %v849 = vunpack.c.l.b16 %v500
    %v850 = vunpack.c.h.b16 %v500
    %v851 = vunpack.c.l.b16 %v501
    %v852 = vunpack.c.h.b16 %v501
    %v853 = vunpack.c.l.b16 %v502
    %v854 = vunpack.c.h.b16 %v502
    %v855 = vunpack.c.l.b16 %v503
    %v856 = vunpack.c.h.b16 %v503
    %v857 = vunpack.c.l.b16 %v504
    %v858 = vunpack.c.h.b16 %v504
    %v859 = vunpack.c.l.b16 %v505
    %v860 = vunpack.c.h.b16 %v505
    %v861 = vunpack.c.l.b16 %v506
    %v862 = vunpack.c.h.b16 %v506
    %v863 = vunpack.c.l.b16 %v507
    %v864 = vunpack.c.h.b16 %v507
    %v865 = vunpack.c.l.b16 %v508
    %v866 = vunpack.c.h.b16 %v508
    %v867 = vunpack.c.l.b16 %v509
    %v868 = vunpack.c.h.b16 %v509
    %v869 = vunpack.c.l.b16 %v510
    %v870 = vunpack.c.h.b16 %v510
    %v871 = vunpack.c.l.b16 %v511
    %v872 = vunpack.c.h.b16 %v511
    %v873 = vunpack.c.l.b16 %v512
    %v874 = vunpack.c.h.b16 %v512
    %v875 = vunpack.c.l.b16 %v513
    %v876 = vunpack.c.h.b16 %v513
    %v877 = vunpack.c.l.b16 %v514
    %v878 = vunpack.c.h.b16 %v514
    %v879 = vunpack.c.l.b16 %v515
    %v880 = vunpack.c.h.b16 %v515
    %v881 = vunpack.c.l.b16 %v516
    %v882 = vunpack.c.h.b16 %v516
    %v883 = vunpack.c.l.b16 %v517
    %v884 = vunpack.c.h.b16 %v517
    %v885 = vunpack.c.l.b16 %v518
    %v886 = vunpack.c.h.b16 %v518
    %v887 = vunpack.c.l.b16 %v519
    %v888 = vunpack.c.h.b16 %v519
    %v889 = vunpack.c.l.b16 %v520
    %v890 = vunpack.c.h.b16 %v520
    %v891 = vunpack.c.l.b16 %v521
    %v892 = vunpack.c.h.b16 %v521
    %v893 = vunpack.c.l.b16 %v522
    %v894 = vunpack.c.h.b16 %v522
    %v895 = vunpack.c.l.b16 %v523
    %v896 = vunpack.c.h.b16 %v523
    %v897 = vunpack.c.l.b16 %v524
    %v898 = vunpack.c.h.b16 %v524
    %v899 = vunpack.c.l.b16 %v525
    %v900 = vunpack.c.h.b16 %v525
    %v901 = vunpack.c.l.b16 %v526
    %v902 = vunpack.c.h.b16 %v526
    %v903 = vunpack.c.l.b16 %v527
    %v904 = vunpack.c.h.b16 %v527
    %v905 = vunpack.c.l.b16 %v528
    %v906 = vunpack.c.h.b16 %v528
    %v907 = vunpack.c.l.b16 %v529
    %v908 = vunpack.c.h.b16 %v529
    %v909 = vunpack.c.l.b16 %v530
    %v910 = vunpack.c.h.b16 %v530
    %v911 = vunpack.c.l.b16 %v531
    %v912 = vunpack.c.h.b16 %v531
    %v913 = vunpack.c.l.b16 %v532
    %v914 = vunpack.c.h.b16 %v532
    %v915 = vunpack.c.l.b16 %v533
    %v916 = vunpack.c.h.b16 %v533
    %v917 = vunpack.c.l.b16 %v534
    %v918 = vunpack.c.h.b16 %v534
    %v919 = vunpack.c.l.b16 %v535
    %v920 = vunpack.c.h.b16 %v535
    %v921 = vunpack.c.l.b16 %v536
    %v922 = vunpack.c.h.b16 %v536
    %v923 = vunpack.c.l.b16 %v537
    %v924 = vunpack.c.h.b16 %v537
    %v925 = vunpack.c.l.b16 %v538
    %v926 = vunpack.c.h.b16 %v538
    %v927 = vunpack.c.l.b16 %v539
    %v928 = vunpack.c.h.b16 %v539
    %v929 = vunpack.c.l.b16 %v540
    %v930 = vunpack.c.h.b16 %v540
    %v931 = vunpack.c.l.b16 %v541
    %v932 = vunpack.c.h.b16 %v541
    %v933 = vunpack.c.l.b16 %v542
    %v934 = vunpack.c.h.b16 %v542
    %v935 = vunpack.c.l.b16 %v543
    %v936 = vunpack.c.h.b16 %v543
    %v937 = vunpack.c.l.b16 %v544
    %v938 = vunpack.c.h.b16 %v544
    %v939 = vunpack.c.l.b16 %v545
    %v940 = vunpack.c.h.b16 %v545
    %v941 = vunpack.c.l.b16 %v546
    %v942 = vunpack.c.h.b16 %v546
    %v943 = vunpack.c.l.b16 %v547
    %v944 = vunpack.c.h.b16 %v547
    %v945 = vunpack.c.l.b16 %v548
    %v946 = vunpack.c.h.b16 %v548
    %v947 = vunpack.c.l.b16 %v549
    %v948 = vunpack.c.h.b16 %v549
    %v949 = vunpack.c.l.b16 %v550
    %v950 = vunpack.c.h.b16 %v550
    %v951 = vunpack.c.l.b16 %v551
    %v952 = vunpack.c.h.b16 %v551
    %v953 = vunpack.c.l.b16 %v552
    %v954 = vunpack.c.h.b16 %v552
    %v955 = vunpack.c.l.b16 %v553
    %v956 = vunpack.c.h.b16 %v553
    %v957 = vunpack.c.l.b16 %v554
    %v958 = vunpack.c.h.b16 %v554
    %v959 = vunpack.c.l.b16 %v555
    %v960 = vunpack.c.h.b16 %v555
    %v961 = vunpack.c.l.b16 %v556
    %v962 = vunpack.c.h.b16 %v556
    %v963 = vunpack.c.l.b16 %v557
    %v964 = vunpack.c.h.b16 %v557
    %v965 = vunpack.c.l.b16 %v558
    %v966 = vunpack.c.h.b16 %v558
    %v967 = vunpack.c.l.b16 %v559
    %v968 = vunpack.c.h.b16 %v559
    %v969 = vunpack.c.l.b16 %v560
    %v970 = vunpack.c.h.b16 %v560
    %v971 = vunpack.c.l.b16 %v561
    %v972 = vunpack.c.h.b16 %v561
    %v973 = vunpack.c.l.b16 %v562
    %v974 = vunpack.c.h.b16 %v562
    %v975 = vunpack.c.l.b16 %v563
    %v976 = vunpack.c.h.b16 %v563
    %v977 = vunpack.c.l.b16 %v564
    %v978 = vunpack.c.h.b16 %v564
    %v979 = vunpack.c.l.b16 %v565
    %v980 = vunpack.c.h.b16 %v565
    %v981 = vunpack.c.l.b16 %v566
    %v982 = vunpack.c.h.b16 %v566
    %v983 = vunpack.c.l.b16 %v567
    %v984 = vunpack.c.h.b16 %v567
    %v985 = vunpack.c.l.b16 %v568
    %v986 = vunpack.c.h.b16 %v568
    %v987 = vunpack.c.l.b16 %v569
    %v988 = vunpack.c.h.b16 %v569
    %v989 = vunpack.c.l.b16 %v570
    %v990 = vunpack.c.h.b16 %v570
    %v991 = vunpack.c.l.b16 %v571
    %v992 = vunpack.c.h.b16 %v571
    %v993 = vunpack.c.l.b16 %v572
    %v994 = vunpack.c.h.b16 %v572
    %v995 = vunpack.c.l.b16 %v573
    %v996 = vunpack.c.h.b16 %v573
    %v997 = vunpack.c.l.b16 %v574
    %v998 = vunpack.c.h.b16 %v574
    %v999 = vunpack.c.l.b16 %v575
    %v1000 = vunpack.c.h.b16 %v575
    %v1001 = vunpack.c.l.b16 %v576
    %v1002 = vunpack.c.h.b16 %v576
    %v1003 = vunpack.c.l.b16 %v577
    %v1004 = vunpack.c.h.b16 %v577
    %v1005 = vunpack.c.l.b16 %v578
    %v1006 = vunpack.c.h.b16 %v578
    %v1007 = vunpack.c.l.b16 %v579
    %v1008 = vunpack.c.h.b16 %v579
    %v1009 = vunpack.c.l.b16 %v580
    %v1010 = vunpack.c.h.b16 %v580
    %v1011 = vunpack.c.l.b16 %v581
    %v1012 = vunpack.c.h.b16 %v581
    %v1013 = vunpack.c.l.b16 %v582
    %v1014 = vunpack.c.h.b16 %v582
    %v1015 = vunpack.c.l.b16 %v583
    %v1016 = vunpack.c.h.b16 %v583
    %v1017 = vunpack.c.l.b16 %v584
    %v1018 = vunpack.c.h.b16 %v584
    %v1019 = vunpack.c.l.b16 %v585
    %v1020 = vunpack.c.h.b16 %v585
    %v1021 = vunpack.c.l.b16 %v586
    %v1022 = vunpack.c.h.b16 %v586
    %v1023 = vunpack.c.l.b16 %v587
    %v1024 = vunpack.c.h.b16 %v587
    %v1025 = vunpack.c.l.b16 %v588
    %v1026 = vunpack.c.h.b16 %v588
    %v1027 = vunpack.c.l.b16 %v589
    %v1028 = vunpack.c.h.b16 %v589
    %v1029 = vunpack.c.l.b16 %v590
    %v1030 = vunpack.c.h.b16 %v590
    %v1031 = vunpack.c.l.b16 %v591
    %v1032 = vunpack.c.h.b16 %v591
    %v1033 = vunpack.c.l.b16 %v592
    %v1034 = vunpack.c.h.b16 %v592
    %v1035 = vunpack.c.l.b16 %v593
    %v1036 = vunpack.c.h.b16 %v593
    %v1037 = vunpack.c.l.b16 %v594
    %v1038 = vunpack.c.h.b16 %v594
    %v1039 = vunpack.c.l.b16 %v595
    %v1040 = vunpack.c.h.b16 %v595
    %v1041 = vunpack.c.l.b16 %v596
    %v1042 = vunpack.c.h.b16 %v596
    %v1043 = vpack.c.b16 %v761, %v755
    %v1044 = vpack.c.b16 %v762, %v756
    %v1045 = vpack.c.b16 %v763, %v757
    %v1046 = vpack.c.b16 %v764, %v758
    %v1047 = vpack.c.b16 %v765, %v759
    %v1048 = vpack.c.b16 %v766, %v760
    %v1049 = vpack.c.b16 %v773, %v767
    %v1050 = vpack.c.b16 %v774, %v768
    %v1051 = vpack.c.b16 %v775, %v769
    %v1052 = vpack.c.b16 %v776, %v770
    %v1053 = vpack.c.b16 %v777, %v771
    %v1054 = vpack.c.b16 %v778, %v772
    %v1055 = vpack.c.b16 %v785, %v779
    %v1056 = vpack.c.b16 %v786, %v780
    %v1057 = vpack.c.b16 %v787, %v781
    %v1058 = vpack.c.b16 %v788, %v782
    %v1059 = vpack.c.b16 %v789, %v783
    %v1060 = vpack.c.b16 %v790, %v784
    %v1061 = vpack.c.b16 %v797, %v791
    %v1062 = vpack.c.b16 %v798, %v792
    %v1063 = vpack.c.b16 %v799, %v793
    %v1064 = vpack.c.b16 %v800, %v794
    %v1065 = vpack.c.b16 %v801, %v795
    %v1066 = vpack.c.b16 %v802, %v796
    %v1067 = vpack.c.b16 %v809, %v803
    %v1068 = vpack.c.b16 %v810, %v804
    %v1069 = vpack.c.b16 %v811, %v805
    %v1070 = vpack.c.b16 %v812, %v806
    %v1071 = vpack.c.b16 %v813, %v807
    %v1072 = vpack.c.b16 %v814, %v808
    %v1073 = vpack.c.b16 %v821, %v815
    %v1074 = vpack.c.b16 %v822, %v816
    %v1075 = vpack.c.b16 %v823, %v817
    %v1076 = vpack.c.b16 %v824, %v818
    %v1077 = vpack.c.b16 %v825, %v819
    %v1078 = vpack.c.b16 %v826, %v820
    %v1079 = vpack.c.b16 %v833, %v827
    %v1080 = vpack.c.b16 %v834, %v828
    %v1081 = vpack.c.b16 %v835, %v829
    %v1082 = vpack.c.b16 %v836, %v830
    %v1083 = vpack.c.b16 %v837, %v831
    %v1084 = vpack.c.b16 %v838, %v832
    %v1085 = vpack.c.b16 %v845, %v839
    %v1086 = vpack.c.b16 %v846, %v840
    %v1087 = vpack.c.b16 %v847, %v841
    %v1088 = vpack.c.b16 %v848, %v842
    %v1089 = vpack.c.b16 %v849, %v843
    %v1090 = vpack.c.b16 %v850, %v844
    %v1091 = vpack.c.b16 %v857, %v851
    %v1092 = vpack.c.b16 %v858, %v852
    %v1093 = vpack.c.b16 %v859, %v853
    %v1094 = vpack.c.b16 %v860, %v854
    %v1095 = vpack.c.b16 %v861, %v855
    %v1096 = vpack.c.b16 %v862, %v856
    %v1097 = vpack.c.b16 %v869, %v863
    %v1098 = vpack.c.b16 %v870, %v864
    %v1099 = vpack.c.b16 %v871, %v865
    %v1100 = vpack.c.b16 %v872, %v866
    %v1101 = vpack.c.b16 %v873, %v867
    %v1102 = vpack.c.b16 %v874, %v868
    %v1103 = vpack.c.b16 %v881, %v875
    %v1104 = vpack.c.b16 %v882, %v876
    %v1105 = vpack.c.b16 %v883, %v877
    %v1106 = vpack.c.b16 %v884, %v878
    %v1107 = vpack.c.b16 %v885, %v879
    %v1108 = vpack.c.b16 %v886, %v880
    %v1109 = vpack.c.b16 %v893, %v887
    %v1110 = vpack.c.b16 %v894, %v888
    %v1111 = vpack.c.b16 %v895, %v889
    %v1112 = vpack.c.b16 %v896, %v890
    %v1113 = vpack.c.b16 %v897, %v891
    %v1114 = vpack.c.b16 %v898, %v892
    %v1115 = vpack.c.b16 %v905, %v899
    %v1116 = vpack.c.b16 %v906, %v900
    %v1117 = vpack.c.b16 %v907, %v901
    %v1118 = vpack.c.b16 %v908, %v902
    %v1119 = vpack.c.b16 %v909, %v903
    %v1120 = vpack.c.b16 %v910, %v904
    %v1121 = vpack.c.b16 %v917, %v911
    %v1122 = vpack.c.b16 %v918, %v912
    %v1123 = vpack.c.b16 %v919, %v913
    %v1124 = vpack.c.b16 %v920, %v914
    %v1125 = vpack.c.b16 %v921, %v915
    %v1126 = vpack.c.b16 %v922, %v916
    %v1127 = vpack.c.b16 %v929, %v923
    %v1128 = vpack.c.b16 %v930, %v924
    %v1129 = vpack.c.b16 %v931, %v925
    %v1130 = vpack.c.b16 %v932, %v926
    %v1131 = vpack.c.b16 %v933, %v927
    %v1132 = vpack.c.b16 %v934, %v928
    %v1133 = vpack.c.b16 %v941, %v935
    %v1134 = vpack.c.b16 %v942, %v936
    %v1135 = vpack.c.b16 %v943, %v937
    %v1136 = vpack.c.b16 %v944, %v938
    %v1137 = vpack.c.b16 %v945, %v939
    %v1138 = vpack.c.b16 %v946, %v940
    %v1139 = vpack.c.b16 %v953, %v947
    %v1140 = vpack.c.b16 %v954, %v948
    %v1141 = vpack.c.b16 %v955, %v949
    %v1142 = vpack.c.b16 %v956, %v950
    %v1143 = vpack.c.b16 %v957, %v951
    %v1144 = vpack.c.b16 %v958, %v952
    %v1145 = vpack.c.b16 %v965, %v959
    %v1146 = vpack.c.b16 %v966, %v960
    %v1147 = vpack.c.b16 %v967, %v961
    %v1148 = vpack.c.b16 %v968, %v962
    %v1149 = vpack.c.b16 %v969, %v963
    %v1150 = vpack.c.b16 %v970, %v964
    %v1151 = vpack.c.b16 %v977, %v971
    %v1152 = vpack.c.b16 %v978, %v972
    %v1153 = vpack.c.b16 %v979, %v973
    %v1154 = vpack.c.b16 %v980, %v974
    %v1155 = vpack.c.b16 %v981, %v975
    %v1156 = vpack.c.b16 %v982, %v976
    %v1157 = vpack.c.b16 %v989, %v983
    %v1158 = vpack.c.b16 %v990, %v984
    %v1159 = vpack.c.b16 %v991, %v985
    %v1160 = vpack.c.b16 %v992, %v986
    %v1161 = vpack.c.b16 %v993, %v987
    %v1162 = vpack.c.b16 %v994, %v988
    %v1163 = vpack.c.b16 %v1001, %v995
    %v1164 = vpack.c.b16 %v1002, %v996
    %v1165 = vpack.c.b16 %v1003, %v997
    %v1166 = vpack.c.b16 %v1004, %v998
    %v1167 = vpack.c.b16 %v1005, %v999
    %v1168 = vpack.c.b16 %v1006, %v1000
    %v1169 = vpack.c.b16 %v1013, %v1007
    %v1170 = vpack.c.b16 %v1014, %v1008
    %v1171 = vpack.c.b16 %v1015, %v1009
    %v1172 = vpack.c.b16 %v1016, %v1010
    %v1173 = vpack.c.b16 %v1017, %v1011
    %v1174 = vpack.c.b16 %v1018, %v1012
    %v1175 = vpack.c.b16 %v1025, %v1019
    %v1176 = vpack.c.b16 %v1026, %v1020
    %v1177 = vpack.c.b16 %v1027, %v1021
    %v1178 = vpack.c.b16 %v1028, %v1022
    %v1179 = vpack.c.b16 %v1029, %v1023
    %v1180 = vpack.c.b16 %v1030, %v1024
    %v1181 = vpack.c.b16 %v1037, %v1031
    %v1182 = vpack.c.b16 %v1038, %v1032
    %v1183 = vpack.c.b16 %v1039, %v1033
    %v1184 = vpack.c.b16 %v1040, %v1034
    %v1185 = vpack.c.b16 %v1041, %v1035
    %v1186 = vpack.c.b16 %v1042, %v1036
    %1331 = vmatpush.bf16.msra.mxu0 %v1085
    %1332 = vmatpush.bf16.msra.mxu0 %v1079
    %1333 = vmatpush.bf16.msra.mxu0 %v1073
    %1334 = vmatpush.bf16.msra.mxu0 %v1067
    %1335 = vmatpush.bf16.msra.mxu0 %v1061
    %1336 = vmatpush.bf16.msra.mxu0 %v1055
    %1337 = vmatpush.bf16.msra.mxu0 %v1049
    %1338 = vmatpush.bf16.msra.mxu0 %v1043
    %1339 = vmatmul.bf16.gmra.mxu0 %v450
    %v1340 = vpop.f32.mrf.mxu0
    %v1341 = vadd.f32 %v599, %v1340
    %v1342 = vpop.f32.mrf.mxu0
    %1343 = vdwg.mxu0
    %1344 = vmatpush.bf16.msra.mxu0 %v1133
    %1345 = vmatpush.bf16.msra.mxu0 %v1127
    %1346 = vmatpush.bf16.msra.mxu0 %v1121
    %1347 = vmatpush.bf16.msra.mxu0 %v1115
    %1348 = vmatpush.bf16.msra.mxu0 %v1109
    %1349 = vmatpush.bf16.msra.mxu0 %v1103
    %1350 = vmatpush.bf16.msra.mxu0 %v1097
    %1351 = vmatpush.bf16.msra.mxu0 %v1091
    %1352 = vmatmul.bf16.gmra.mxu0 %v451
    %v1353 = vpop.f32.mrf.mxu0
    %v1354 = vadd.f32 %v1341, %v1353
    %v1355 = vpop.f32.mrf.mxu0
    %1356 = vdwg.mxu0
    %1357 = vmatpush.bf16.msra.mxu0 %v1181
    %1358 = vmatpush.bf16.msra.mxu0 %v1175
    %1359 = vmatpush.bf16.msra.mxu0 %v1169
    %1360 = vmatpush.bf16.msra.mxu0 %v1163
    %1361 = vmatpush.bf16.msra.mxu0 %v1157
    %1362 = vmatpush.bf16.msra.mxu0 %v1151
    %1363 = vmatpush.bf16.msra.mxu0 %v1145
    %1364 = vmatpush.bf16.msra.mxu0 %v1139
    %1365 = vmatmul.bf16.gmra.mxu0 %v452
    %v1366 = vpop.f32.mrf.mxu0
    %v1367 = vadd.f32 %v1354, %v1366
    %v1368 = vpop.f32.mrf.mxu0
    %1369 = vdwg.mxu0
    %1370 = vmatpush.bf16.msra.mxu0 %v1086
    %1371 = vmatpush.bf16.msra.mxu0 %v1080
    %1372 = vmatpush.bf16.msra.mxu0 %v1074
    %1373 = vmatpush.bf16.msra.mxu0 %v1068
    %1374 = vmatpush.bf16.msra.mxu0 %v1062
    %1375 = vmatpush.bf16.msra.mxu0 %v1056
    %1376 = vmatpush.bf16.msra.mxu0 %v1050
    %1377 = vmatpush.bf16.msra.mxu0 %v1044
    %1378 = vmatmul.bf16.gmra.mxu0 %v450
    %v1379 = vpop.f32.mrf.mxu0
    %v1380 = vadd.f32 %v600, %v1379
    %v1381 = vpop.f32.mrf.mxu0
    %1382 = vdwg.mxu0
    %1383 = vmatpush.bf16.msra.mxu0 %v1134
    %1384 = vmatpush.bf16.msra.mxu0 %v1128
    %1385 = vmatpush.bf16.msra.mxu0 %v1122
    %1386 = vmatpush.bf16.msra.mxu0 %v1116
    %1387 = vmatpush.bf16.msra.mxu0 %v1110
    %1388 = vmatpush.bf16.msra.mxu0 %v1104
    %1389 = vmatpush.bf16.msra.mxu0 %v1098
    %1390 = vmatpush.bf16.msra.mxu0 %v1092
    %1391 = vmatmul.bf16.gmra.mxu0 %v451
    %v1392 = vpop.f32.mrf.mxu0
    %v1393 = vadd.f32 %v1380, %v1392
    %v1394 = vpop.f32.mrf.mxu0
    %1395 = vdwg.mxu0
    %1396 = vmatpush.bf16.msra.mxu0 %v1182
    %1397 = vmatpush.bf16.msra.mxu0 %v1176
    %1398 = vmatpush.bf16.msra.mxu0 %v1170
    %1399 = vmatpush.bf16.msra.mxu0 %v1164
    %1400 = vmatpush.bf16.msra.mxu0 %v1158
    %1401 = vmatpush.bf16.msra.mxu0 %v1152
    %1402 = vmatpush.bf16.msra.mxu0 %v1146
    %1403 = vmatpush.bf16.msra.mxu0 %v1140
    %1404 = vmatmul.bf16.gmra.mxu0 %v452
    %v1405 = vpop.f32.mrf.mxu0
    %v1406 = vadd.f32 %v1393, %v1405
    %v1407 = vpop.f32.mrf.mxu0
    %1408 = vdwg.mxu0
    %1409 = vmatpush.bf16.msra.mxu0 %v1087
    %1410 = vmatpush.bf16.msra.mxu0 %v1081
    %1411 = vmatpush.bf16.msra.mxu0 %v1075
    %1412 = vmatpush.bf16.msra.mxu0 %v1069
    %1413 = vmatpush.bf16.msra.mxu0 %v1063
    %1414 = vmatpush.bf16.msra.mxu0 %v1057
    %1415 = vmatpush.bf16.msra.mxu0 %v1051
    %1416 = vmatpush.bf16.msra.mxu0 %v1045
    %1417 = vmatmul.bf16.gmra.mxu0 %v450
    %v1418 = vpop.f32.mrf.mxu0
    %v1419 = vadd.f32 %v601, %v1418
    %v1420 = vpop.f32.mrf.mxu0
    %1421 = vdwg.mxu0
    %1422 = vmatpush.bf16.msra.mxu0 %v1135
    %1423 = vmatpush.bf16.msra.mxu0 %v1129
    %1424 = vmatpush.bf16.msra.mxu0 %v1123
    %1425 = vmatpush.bf16.msra.mxu0 %v1117
    %1426 = vmatpush.bf16.msra.mxu0 %v1111
    %1427 = vmatpush.bf16.msra.mxu0 %v1105
    %1428 = vmatpush.bf16.msra.mxu0 %v1099
    %1429 = vmatpush.bf16.msra.mxu0 %v1093
    %1430 = vmatmul.bf16.gmra.mxu0 %v451
    %v1431 = vpop.f32.mrf.mxu0
    %v1432 = vadd.f32 %v1419, %v1431
    %v1433 = vpop.f32.mrf.mxu0
    %1434 = vdwg.mxu0
    %1435 = vmatpush.bf16.msra.mxu0 %v1183
    %1436 = vmatpush.bf16.msra.mxu0 %v1177
    %1437 = vmatpush.bf16.msra.mxu0 %v1171
    %1438 = vmatpush.bf16.msra.mxu0 %v1165
    %1439 = vmatpush.bf16.msra.mxu0 %v1159
    %1440 = vmatpush.bf16.msra.mxu0 %v1153
    %1441 = vmatpush.bf16.msra.mxu0 %v1147
    %1442 = vmatpush.bf16.msra.mxu0 %v1141
    %1443 = vmatmul.bf16.gmra.mxu0 %v452
    %v1444 = vpop.f32.mrf.mxu0
    %v1445 = vadd.f32 %v1432, %v1444
    %v1446 = vpop.f32.mrf.mxu0
    %1447 = vdwg.mxu0
    %1448 = vmatpush.bf16.msra.mxu0 %v1088
    %1449 = vmatpush.bf16.msra.mxu0 %v1082
    %1450 = vmatpush.bf16.msra.mxu0 %v1076
    %1451 = vmatpush.bf16.msra.mxu0 %v1070
    %1452 = vmatpush.bf16.msra.mxu0 %v1064
    %1453 = vmatpush.bf16.msra.mxu0 %v1058
    %1454 = vmatpush.bf16.msra.mxu0 %v1052
    %1455 = vmatpush.bf16.msra.mxu0 %v1046
    %1456 = vmatmul.bf16.gmra.mxu0 %v450
    %v1457 = vpop.f32.mrf.mxu0
    %v1458 = vadd.f32 %v602, %v1457
    %v1459 = vpop.f32.mrf.mxu0
    %1460 = vdwg.mxu0
    %1461 = vmatpush.bf16.msra.mxu0 %v1136
    %1462 = vmatpush.bf16.msra.mxu0 %v1130
    %1463 = vmatpush.bf16.msra.mxu0 %v1124
    %1464 = vmatpush.bf16.msra.mxu0 %v1118
    %1465 = vmatpush.bf16.msra.mxu0 %v1112
    %1466 = vmatpush.bf16.msra.mxu0 %v1106
    %1467 = vmatpush.bf16.msra.mxu0 %v1100
    %1468 = vmatpush.bf16.msra.mxu0 %v1094
    %1469 = vmatmul.bf16.gmra.mxu0 %v451
    %v1470 = vpop.f32.mrf.mxu0
    %v1471 = vadd.f32 %v1458, %v1470
    %v1472 = vpop.f32.mrf.mxu0
    %1473 = vdwg.mxu0
    %1474 = vmatpush.bf16.msra.mxu0 %v1184
    %1475 = vmatpush.bf16.msra.mxu0 %v1178
    %1476 = vmatpush.bf16.msra.mxu0 %v1172
    %1477 = vmatpush.bf16.msra.mxu0 %v1166
    %1478 = vmatpush.bf16.msra.mxu0 %v1160
    %1479 = vmatpush.bf16.msra.mxu0 %v1154
    %1480 = vmatpush.bf16.msra.mxu0 %v1148
    %1481 = vmatpush.bf16.msra.mxu0 %v1142
    %1482 = vmatmul.bf16.gmra.mxu0 %v452
    %v1483 = vpop.f32.mrf.mxu0
    %v1484 = vadd.f32 %v1471, %v1483
    %v1485 = vpop.f32.mrf.mxu0
    %1486 = vdwg.mxu0
    %1487 = vmatpush.bf16.msra.mxu0 %v1089
    %1488 = vmatpush.bf16.msra.mxu0 %v1083
    %1489 = vmatpush.bf16.msra.mxu0 %v1077
    %1490 = vmatpush.bf16.msra.mxu0 %v1071
    %1491 = vmatpush.bf16.msra.mxu0 %v1065
    %1492 = vmatpush.bf16.msra.mxu0 %v1059
    %1493 = vmatpush.bf16.msra.mxu0 %v1053
    %1494 = vmatpush.bf16.msra.mxu0 %v1047
    %1495 = vmatmul.bf16.gmra.mxu0 %v450
    %v1496 = vpop.f32.mrf.mxu0
    %v1497 = vadd.f32 %v603, %v1496
    %v1498 = vpop.f32.mrf.mxu0
    %1499 = vdwg.mxu0
    %1500 = vmatpush.bf16.msra.mxu0 %v1137
    %1501 = vmatpush.bf16.msra.mxu0 %v1131
    %1502 = vmatpush.bf16.msra.mxu0 %v1125
    %1503 = vmatpush.bf16.msra.mxu0 %v1119
    %1504 = vmatpush.bf16.msra.mxu0 %v1113
    %1505 = vmatpush.bf16.msra.mxu0 %v1107
    %1506 = vmatpush.bf16.msra.mxu0 %v1101
    %1507 = vmatpush.bf16.msra.mxu0 %v1095
    %1508 = vmatmul.bf16.gmra.mxu0 %v451
    %v1509 = vpop.f32.mrf.mxu0
    %v1510 = vadd.f32 %v1497, %v1509
    %v1511 = vpop.f32.mrf.mxu0
    %1512 = vdwg.mxu0
    %1513 = vmatpush.bf16.msra.mxu0 %v1185
    %1514 = vmatpush.bf16.msra.mxu0 %v1179
    %1515 = vmatpush.bf16.msra.mxu0 %v1173
    %1516 = vmatpush.bf16.msra.mxu0 %v1167
    %1517 = vmatpush.bf16.msra.mxu0 %v1161
    %1518 = vmatpush.bf16.msra.mxu0 %v1155
    %1519 = vmatpush.bf16.msra.mxu0 %v1149
    %1520 = vmatpush.bf16.msra.mxu0 %v1143
    %1521 = vmatmul.bf16.gmra.mxu0 %v452
    %v1522 = vpop.f32.mrf.mxu0
    %v1523 = vadd.f32 %v1510, %v1522
    %v1524 = vpop.f32.mrf.mxu0
    %1525 = vdwg.mxu0
    %1526 = vmatpush.bf16.msra.mxu0 %v1090
    %1527 = vmatpush.bf16.msra.mxu0 %v1084
    %1528 = vmatpush.bf16.msra.mxu0 %v1078
    %1529 = vmatpush.bf16.msra.mxu0 %v1072
    %1530 = vmatpush.bf16.msra.mxu0 %v1066
    %1531 = vmatpush.bf16.msra.mxu0 %v1060
    %1532 = vmatpush.bf16.msra.mxu0 %v1054
    %1533 = vmatpush.bf16.msra.mxu0 %v1048
    %1534 = vmatmul.bf16.gmra.mxu0 %v450
    %v1535 = vpop.f32.mrf.mxu0
    %v1536 = vadd.f32 %v604, %v1535
    %v1537 = vpop.f32.mrf.mxu0
    %1538 = vdwg.mxu0
    %1539 = vmatpush.bf16.msra.mxu0 %v1138
    %1540 = vmatpush.bf16.msra.mxu0 %v1132
    %1541 = vmatpush.bf16.msra.mxu0 %v1126
    %1542 = vmatpush.bf16.msra.mxu0 %v1120
    %1543 = vmatpush.bf16.msra.mxu0 %v1114
    %1544 = vmatpush.bf16.msra.mxu0 %v1108
    %1545 = vmatpush.bf16.msra.mxu0 %v1102
    %1546 = vmatpush.bf16.msra.mxu0 %v1096
    %1547 = vmatmul.bf16.gmra.mxu0 %v451
    %v1548 = vpop.f32.mrf.mxu0
    %v1549 = vadd.f32 %v1536, %v1548
    %v1550 = vpop.f32.mrf.mxu0
    %1551 = vdwg.mxu0
    %1552 = vmatpush.bf16.msra.mxu0 %v1186
    %1553 = vmatpush.bf16.msra.mxu0 %v1180
    %1554 = vmatpush.bf16.msra.mxu0 %v1174
    %1555 = vmatpush.bf16.msra.mxu0 %v1168
    %1556 = vmatpush.bf16.msra.mxu0 %v1162
    %1557 = vmatpush.bf16.msra.mxu0 %v1156
    %1558 = vmatpush.bf16.msra.mxu0 %v1150
    %1559 = vmatpush.bf16.msra.mxu0 %v1144
    %1560 = vmatmul.bf16.gmra.mxu0 %v452
    %v1561 = vpop.f32.mrf.mxu0
    %v1562 = vadd.f32 %v1549, %v1561
    %v1563 = vpop.f32.mrf.mxu0
    %1564 = vdwg.mxu0
    %v1565 = vpack.c.bf16 %v1406, %v1367
    %v1566 = vpack.c.bf16 %v1484, %v1445
    %v1567 = vpack.c.bf16 %v1562, %v1523
    %1568 = vst [vmem:[#allocation20] sm:$0xff] %v1565
    %1569 = vst [vmem:[#allocation20 + $0x8] sm:$0xff] %v1566
    %1570 = vst [vmem:[#allocation20 + $0x10] sm:$0xff] %v1567
    %v1571 = vld [vmem:[#allocation11] sm:$0xff]
    %v1572 = vld [vmem:[#allocation11 + $0x8] sm:$0xf]
    %v1573 = vld [vmem:[#allocation11 + $0xc] sm:$0xff]
    %v1574 = vld [vmem:[#allocation11 + $0x14] sm:$0xf]
    %v1575 = vld [vmem:[#allocation11 + $0x18] sm:$0xff]
    %v1576 = vld [vmem:[#allocation11 + $0x20] sm:$0xf]
    %v1577 = vld [vmem:[#allocation11 + $0x24] sm:$0xff]
    %v1578 = vld [vmem:[#allocation11 + $0x2c] sm:$0xf]
    %v1579 = vld [vmem:[#allocation11 + $0x30] sm:$0xff]
    %v1580 = vld [vmem:[#allocation11 + $0x38] sm:$0xf]
    %v1581 = vld [vmem:[#allocation11 + $0x3c] sm:$0xff]
    %v1582 = vld [vmem:[#allocation11 + $0x44] sm:$0xf]
    %v1583 = vld [vmem:[#allocation11 + $0x48] sm:$0xff]
    %v1584 = vld [vmem:[#allocation11 + $0x50] sm:$0xf]
    %v1585 = vld [vmem:[#allocation11 + $0x54] sm:$0xff]
    %v1586 = vld [vmem:[#allocation11 + $0x5c] sm:$0xf]
    %v1587 = vld [vmem:[#allocation11 + $0x60] sm:$0xff]
    %v1588 = vld [vmem:[#allocation11 + $0x68] sm:$0xf]
    %v1589 = vld [vmem:[#allocation11 + $0x6c] sm:$0xff]
    %v1590 = vld [vmem:[#allocation11 + $0x74] sm:$0xf]
    %v1591 = vld [vmem:[#allocation11 + $0x78] sm:$0xff]
    %v1592 = vld [vmem:[#allocation11 + $0x80] sm:$0xf]
    %v1593 = vld [vmem:[#allocation11 + $0x84] sm:$0xff]
    %v1594 = vld [vmem:[#allocation11 + $0x8c] sm:$0xf]
    %v1595 = vld [vmem:[#allocation11 + $0x90] sm:$0xff]
    %v1596 = vld [vmem:[#allocation11 + $0x98] sm:$0xf]
    %v1597 = vld [vmem:[#allocation11 + $0x9c] sm:$0xff]
    %v1598 = vld [vmem:[#allocation11 + $0xa4] sm:$0xf]
    %v1599 = vld [vmem:[#allocation11 + $0xa8] sm:$0xff]
    %v1600 = vld [vmem:[#allocation11 + $0xb0] sm:$0xf]
    %v1601 = vld [vmem:[#allocation11 + $0xb4] sm:$0xff]
    %v1602 = vld [vmem:[#allocation11 + $0xbc] sm:$0xf]
    %v1603 = vld [vmem:[#allocation11 + $0xc0] sm:$0xff]
    %v1604 = vld [vmem:[#allocation11 + $0xc8] sm:$0xf]
    %v1605 = vld [vmem:[#allocation11 + $0xcc] sm:$0xff]
    %v1606 = vld [vmem:[#allocation11 + $0xd4] sm:$0xf]
    %v1607 = vld [vmem:[#allocation11 + $0xd8] sm:$0xff]
    %v1608 = vld [vmem:[#allocation11 + $0xe0] sm:$0xf]
    %v1609 = vld [vmem:[#allocation11 + $0xe4] sm:$0xff]
    %v1610 = vld [vmem:[#allocation11 + $0xec] sm:$0xf]
    %v1611 = vld [vmem:[#allocation11 + $0xf0] sm:$0xff]
    %v1612 = vld [vmem:[#allocation11 + $0xf8] sm:$0xf]
    %v1613 = vld [vmem:[#allocation11 + $0xfc] sm:$0xff]
    %v1614 = vld [vmem:[#allocation11 + $0x104] sm:$0xf]
    %v1615 = vld [vmem:[#allocation11 + $0x108] sm:$0xff]
    %v1616 = vld [vmem:[#allocation11 + $0x110] sm:$0xf]
    %v1617 = vld [vmem:[#allocation11 + $0x114] sm:$0xff]
    %v1618 = vld [vmem:[#allocation11 + $0x11c] sm:$0xf]
    %v1619 = vld [vmem:[#allocation11 + $0x120] sm:$0xff]
    %v1620 = vld [vmem:[#allocation11 + $0x128] sm:$0xf]
    %v1621 = vld [vmem:[#allocation11 + $0x12c] sm:$0xff]
    %v1622 = vld [vmem:[#allocation11 + $0x134] sm:$0xf]
    %v1623 = vld [vmem:[#allocation11 + $0x138] sm:$0xff]
    %v1624 = vld [vmem:[#allocation11 + $0x140] sm:$0xf]
    %v1625 = vld [vmem:[#allocation11 + $0x144] sm:$0xff]
    %v1626 = vld [vmem:[#allocation11 + $0x14c] sm:$0xf]
    %v1627 = vld [vmem:[#allocation11 + $0x150] sm:$0xff]
    %v1628 = vld [vmem:[#allocation11 + $0x158] sm:$0xf]
    %v1629 = vld [vmem:[#allocation11 + $0x15c] sm:$0xff]
    %v1630 = vld [vmem:[#allocation11 + $0x164] sm:$0xf]
    %v1631 = vld [vmem:[#allocation11 + $0x168] sm:$0xff]
    %v1632 = vld [vmem:[#allocation11 + $0x170] sm:$0xf]
    %v1633 = vld [vmem:[#allocation11 + $0x174] sm:$0xff]
    %v1634 = vld [vmem:[#allocation11 + $0x17c] sm:$0xf]
    %v1635 = vld [vmem:[#allocation11 + $0x180] sm:$0xff]
    %v1636 = vld [vmem:[#allocation11 + $0x188] sm:$0xf]
    %v1637 = vld [vmem:[#allocation11 + $0x18c] sm:$0xff]
    %v1638 = vld [vmem:[#allocation11 + $0x194] sm:$0xf]
    %v1639 = vld [vmem:[#allocation11 + $0x198] sm:$0xff]
    %v1640 = vld [vmem:[#allocation11 + $0x1a0] sm:$0xf]
    %v1641 = vld [vmem:[#allocation11 + $0x1a4] sm:$0xff]
    %v1642 = vld [vmem:[#allocation11 + $0x1ac] sm:$0xf]
    %v1643 = vld [vmem:[#allocation11 + $0x1b0] sm:$0xff]
    %v1644 = vld [vmem:[#allocation11 + $0x1b8] sm:$0xf]
    %v1645 = vld [vmem:[#allocation11 + $0x1bc] sm:$0xff]
    %v1646 = vld [vmem:[#allocation11 + $0x1c4] sm:$0xf]
    %v1647 = vld [vmem:[#allocation11 + $0x1c8] sm:$0xff]
    %v1648 = vld [vmem:[#allocation11 + $0x1d0] sm:$0xf]
    %v1649 = vld [vmem:[#allocation11 + $0x1d4] sm:$0xff]
    %v1650 = vld [vmem:[#allocation11 + $0x1dc] sm:$0xf]
    %v1651 = vld [vmem:[#allocation11 + $0x1e0] sm:$0xff]
    %v1652 = vld [vmem:[#allocation11 + $0x1e8] sm:$0xf]
    %v1653 = vld [vmem:[#allocation11 + $0x1ec] sm:$0xff]
    %v1654 = vld [vmem:[#allocation11 + $0x1f4] sm:$0xf]
    %v1655 = vld [vmem:[#allocation11 + $0x1f8] sm:$0xff]
    %v1656 = vld [vmem:[#allocation11 + $0x200] sm:$0xf]
    %v1657 = vld [vmem:[#allocation11 + $0x204] sm:$0xff]
    %v1658 = vld [vmem:[#allocation11 + $0x20c] sm:$0xf]
    %v1659 = vld [vmem:[#allocation11 + $0x210] sm:$0xff]
    %v1660 = vld [vmem:[#allocation11 + $0x218] sm:$0xf]
    %v1661 = vld [vmem:[#allocation11 + $0x21c] sm:$0xff]
    %v1662 = vld [vmem:[#allocation11 + $0x224] sm:$0xf]
    %v1663 = vld [vmem:[#allocation11 + $0x228] sm:$0xff]
    %v1664 = vld [vmem:[#allocation11 + $0x230] sm:$0xf]
    %v1665 = vld [vmem:[#allocation11 + $0x234] sm:$0xff]
    %v1666 = vld [vmem:[#allocation11 + $0x23c] sm:$0xf]
    %v1667 = vld [vmem:[#allocation11 + $0x240] sm:$0xff]
    %v1668 = vld [vmem:[#allocation11 + $0x248] sm:$0xf]
    %v1669 = vld [vmem:[#allocation11 + $0x24c] sm:$0xff]
    %v1670 = vld [vmem:[#allocation11 + $0x254] sm:$0xf]
    %v1671 = vld [vmem:[#allocation11 + $0x258] sm:$0xff]
    %v1672 = vld [vmem:[#allocation11 + $0x260] sm:$0xf]
    %v1673 = vld [vmem:[#allocation11 + $0x264] sm:$0xff]
    %v1674 = vld [vmem:[#allocation11 + $0x26c] sm:$0xf]
    %v1675 = vld [vmem:[#allocation11 + $0x270] sm:$0xff]
    %v1676 = vld [vmem:[#allocation11 + $0x278] sm:$0xf]
    %v1677 = vld [vmem:[#allocation11 + $0x27c] sm:$0xff]
    %v1678 = vld [vmem:[#allocation11 + $0x284] sm:$0xf]
    %v1679 = vld [vmem:[#allocation11 + $0x288] sm:$0xff]
    %v1680 = vld [vmem:[#allocation11 + $0x290] sm:$0xf]
    %v1681 = vld [vmem:[#allocation11 + $0x294] sm:$0xff]
    %v1682 = vld [vmem:[#allocation11 + $0x29c] sm:$0xf]
    %v1683 = vld [vmem:[#allocation11 + $0x2a0] sm:$0xff]
    %v1684 = vld [vmem:[#allocation11 + $0x2a8] sm:$0xf]
    %v1685 = vld [vmem:[#allocation11 + $0x2ac] sm:$0xff]
    %v1686 = vld [vmem:[#allocation11 + $0x2b4] sm:$0xf]
    %v1687 = vld [vmem:[#allocation11 + $0x2b8] sm:$0xff]
    %v1688 = vld [vmem:[#allocation11 + $0x2c0] sm:$0xf]
    %v1689 = vld [vmem:[#allocation11 + $0x2c4] sm:$0xff]
    %v1690 = vld [vmem:[#allocation11 + $0x2cc] sm:$0xf]
    %v1691 = vld [vmem:[#allocation11 + $0x2d0] sm:$0xff]
    %v1692 = vld [vmem:[#allocation11 + $0x2d8] sm:$0xf]
    %v1693 = vld [vmem:[#allocation11 + $0x2dc] sm:$0xff]
    %v1694 = vld [vmem:[#allocation11 + $0x2e4] sm:$0xf]
    %v1695 = vld [vmem:[#allocation11 + $0x2e8] sm:$0xff]
    %v1696 = vld [vmem:[#allocation11 + $0x2f0] sm:$0xf]
    %v1697 = vld [vmem:[#allocation11 + $0x2f4] sm:$0xff]
    %v1698 = vld [vmem:[#allocation11 + $0x2fc] sm:$0xf]
    %v1699 = vld [vmem:[#allocation11 + $0x300] sm:$0xff]
    %v1700 = vld [vmem:[#allocation11 + $0x308] sm:$0xf]
    %v1701 = vld [vmem:[#allocation11 + $0x30c] sm:$0xff]
    %v1702 = vld [vmem:[#allocation11 + $0x314] sm:$0xf]
    %v1703 = vld [vmem:[#allocation11 + $0x318] sm:$0xff]
    %v1704 = vld [vmem:[#allocation11 + $0x320] sm:$0xf]
    %v1705 = vld [vmem:[#allocation11 + $0x324] sm:$0xff]
    %v1706 = vld [vmem:[#allocation11 + $0x32c] sm:$0xf]
    %v1707 = vld [vmem:[#allocation11 + $0x330] sm:$0xff]
    %v1708 = vld [vmem:[#allocation11 + $0x338] sm:$0xf]
    %v1709 = vld [vmem:[#allocation11 + $0x33c] sm:$0xff]
    %v1710 = vld [vmem:[#allocation11 + $0x344] sm:$0xf]
    %v1711 = vld [vmem:[#allocation11 + $0x348] sm:$0xff]
    %v1712 = vld [vmem:[#allocation11 + $0x350] sm:$0xf]
    %v1713 = vld [vmem:[#allocation11 + $0x354] sm:$0xff]
    %v1714 = vld [vmem:[#allocation11 + $0x35c] sm:$0xf]
    %v1715 = vld [vmem:[#allocation11 + $0x360] sm:$0xff]
    %v1716 = vld [vmem:[#allocation11 + $0x368] sm:$0xf]
    %v1717 = vld [vmem:[#allocation11 + $0x36c] sm:$0xff]
    %v1718 = vld [vmem:[#allocation11 + $0x374] sm:$0xf]
    %v1719 = vld [vmem:[#allocation11 + $0x378] sm:$0xff]
    %v1720 = vld [vmem:[#allocation11 + $0x380] sm:$0xf]
    %v1721 = vld [vmem:[#allocation11 + $0x384] sm:$0xff]
    %v1722 = vld [vmem:[#allocation11 + $0x38c] sm:$0xf]
    %v1723 = vld [vmem:[#allocation11 + $0x390] sm:$0xff]
    %v1724 = vld [vmem:[#allocation11 + $0x398] sm:$0xf]
    %v1725 = vld [vmem:[#allocation11 + $0x39c] sm:$0xff]
    %v1726 = vld [vmem:[#allocation11 + $0x3a4] sm:$0xf]
    %v1727 = vld [vmem:[#allocation11 + $0x3a8] sm:$0xff]
    %v1728 = vld [vmem:[#allocation11 + $0x3b0] sm:$0xf]
    %v1729 = vld [vmem:[#allocation11 + $0x3b4] sm:$0xff]
    %v1730 = vld [vmem:[#allocation11 + $0x3bc] sm:$0xf]
    %v1731 = vld [vmem:[#allocation11 + $0x3c0] sm:$0xff]
    %v1732 = vld [vmem:[#allocation11 + $0x3c8] sm:$0xf]
    %v1733 = vld [vmem:[#allocation11 + $0x3cc] sm:$0xff]
    %v1734 = vld [vmem:[#allocation11 + $0x3d4] sm:$0xf]
    %v1735 = vld [vmem:[#allocation11 + $0x3d8] sm:$0xff]
    %v1736 = vld [vmem:[#allocation11 + $0x3e0] sm:$0xf]
    %v1737 = vld [vmem:[#allocation11 + $0x3e4] sm:$0xff]
    %v1738 = vld [vmem:[#allocation11 + $0x3ec] sm:$0xf]
    %v1739 = vld [vmem:[#allocation11 + $0x3f0] sm:$0xff]
    %v1740 = vld [vmem:[#allocation11 + $0x3f8] sm:$0xf]
    %v1741 = vld [vmem:[#allocation11 + $0x3fc] sm:$0xff]
    %v1742 = vld [vmem:[#allocation11 + $0x404] sm:$0xf]
    %v1743 = vld [vmem:[#allocation11 + $0x408] sm:$0xff]
    %v1744 = vld [vmem:[#allocation11 + $0x410] sm:$0xf]
    %v1745 = vld [vmem:[#allocation11 + $0x414] sm:$0xff]
    %v1746 = vld [vmem:[#allocation11 + $0x41c] sm:$0xf]
    %v1747 = vld [vmem:[#allocation11 + $0x420] sm:$0xff]
    %v1748 = vld [vmem:[#allocation11 + $0x428] sm:$0xf]
    %v1749 = vld [vmem:[#allocation11 + $0x42c] sm:$0xff]
    %v1750 = vld [vmem:[#allocation11 + $0x434] sm:$0xf]
    %v1751 = vld [vmem:[#allocation11 + $0x438] sm:$0xff]
    %v1752 = vld [vmem:[#allocation11 + $0x440] sm:$0xf]
    %v1753 = vld [vmem:[#allocation11 + $0x444] sm:$0xff]
    %v1754 = vld [vmem:[#allocation11 + $0x44c] sm:$0xf]
    %v1755 = vld [vmem:[#allocation11 + $0x450] sm:$0xff]
    %v1756 = vld [vmem:[#allocation11 + $0x458] sm:$0xf]
    %v1757 = vld [vmem:[#allocation11 + $0x45c] sm:$0xff]
    %v1758 = vld [vmem:[#allocation11 + $0x464] sm:$0xf]
    %v1759 = vld [vmem:[#allocation11 + $0x468] sm:$0xff]
    %v1760 = vld [vmem:[#allocation11 + $0x470] sm:$0xf]
    %v1761 = vld [vmem:[#allocation11 + $0x474] sm:$0xff]
    %v1762 = vld [vmem:[#allocation11 + $0x47c] sm:$0xf]
    %v1763 = vld [vmem:[#allocation13] sm:$0x7]
    %v1765 = vperm.slane %v1763, 0
    %v1766 = vperm.slane %v1763, 1
    %v1767 = vperm.slane %v1763, 2
    %v1774 = vunpack.c.l.b16 %v1565
    %v1775 = vunpack.c.h.b16 %v1565
    %v1776 = vunpack.c.l.b16 %v1566
    %v1777 = vunpack.c.h.b16 %v1566
    %v1778 = vunpack.c.l.b16 %v1567
    %v1779 = vunpack.c.h.b16 %v1567
    %v1780 = vpack.c.b16 %v1774, %v1774
    %v1781 = vpack.c.b16 %v1775, %v1775
    %v1782 = vpack.c.b16 %v1776, %v1776
    %v1783 = vpack.c.b16 %v1777, %v1777
    %v1784 = vpack.c.b16 %v1778, %v1778
    %v1785 = vpack.c.b16 %v1779, %v1779
    %v1984 = vunpack.c.l.b16 %v1571
    %v1985 = vunpack.c.h.b16 %v1571
    %v1986 = vunpack.c.l.b16 %v1572
    %v1987 = vunpack.c.l.b16 %v1573
    %v1988 = vunpack.c.h.b16 %v1573
    %v1989 = vunpack.c.l.b16 %v1574
    %v1990 = vunpack.c.l.b16 %v1575
    %v1991 = vunpack.c.h.b16 %v1575
    %v1992 = vunpack.c.l.b16 %v1576
    %v1993 = vunpack.c.l.b16 %v1577
    %v1994 = vunpack.c.h.b16 %v1577
    %v1995 = vunpack.c.l.b16 %v1578
    %v1996 = vunpack.c.l.b16 %v1579
    %v1997 = vunpack.c.h.b16 %v1579
    %v1998 = vunpack.c.l.b16 %v1580
    %v1999 = vunpack.c.l.b16 %v1581
    %v2000 = vunpack.c.h.b16 %v1581
    %v2001 = vunpack.c.l.b16 %v1582
    %v2002 = vunpack.c.l.b16 %v1583
    %v2003 = vunpack.c.h.b16 %v1583
    %v2004 = vunpack.c.l.b16 %v1584
    %v2005 = vunpack.c.l.b16 %v1585
    %v2006 = vunpack.c.h.b16 %v1585
    %v2007 = vunpack.c.l.b16 %v1586
    %v2008 = vunpack.c.l.b16 %v1587
    %v2009 = vunpack.c.h.b16 %v1587
    %v2010 = vunpack.c.l.b16 %v1588
    %v2011 = vunpack.c.l.b16 %v1589
    %v2012 = vunpack.c.h.b16 %v1589
    %v2013 = vunpack.c.l.b16 %v1590
    %v2014 = vunpack.c.l.b16 %v1591
    %v2015 = vunpack.c.h.b16 %v1591
    %v2016 = vunpack.c.l.b16 %v1592
    %v2017 = vunpack.c.l.b16 %v1593
    %v2018 = vunpack.c.h.b16 %v1593
    %v2019 = vunpack.c.l.b16 %v1594
    %v2020 = vunpack.c.l.b16 %v1595
    %v2021 = vunpack.c.h.b16 %v1595
    %v2022 = vunpack.c.l.b16 %v1596
    %v2023 = vunpack.c.l.b16 %v1597
    %v2024 = vunpack.c.h.b16 %v1597
    %v2025 = vunpack.c.l.b16 %v1598
    %v2026 = vunpack.c.l.b16 %v1599
    %v2027 = vunpack.c.h.b16 %v1599
    %v2028 = vunpack.c.l.b16 %v1600
    %v2029 = vunpack.c.l.b16 %v1601
    %v2030 = vunpack.c.h.b16 %v1601
    %v2031 = vunpack.c.l.b16 %v1602
    %v2032 = vunpack.c.l.b16 %v1603
    %v2033 = vunpack.c.h.b16 %v1603
    %v2034 = vunpack.c.l.b16 %v1604
    %v2035 = vunpack.c.l.b16 %v1605
    %v2036 = vunpack.c.h.b16 %v1605
    %v2037 = vunpack.c.l.b16 %v1606
    %v2038 = vunpack.c.l.b16 %v1607
    %v2039 = vunpack.c.h.b16 %v1607
    %v2040 = vunpack.c.l.b16 %v1608
    %v2041 = vunpack.c.l.b16 %v1609
    %v2042 = vunpack.c.h.b16 %v1609
    %v2043 = vunpack.c.l.b16 %v1610
    %v2044 = vunpack.c.l.b16 %v1611
    %v2045 = vunpack.c.h.b16 %v1611
    %v2046 = vunpack.c.l.b16 %v1612
    %v2047 = vunpack.c.l.b16 %v1613
    %v2048 = vunpack.c.h.b16 %v1613
    %v2049 = vunpack.c.l.b16 %v1614
    %v2050 = vunpack.c.l.b16 %v1615
    %v2051 = vunpack.c.h.b16 %v1615
    %v2052 = vunpack.c.l.b16 %v1616
    %v2053 = vunpack.c.l.b16 %v1617
    %v2054 = vunpack.c.h.b16 %v1617
    %v2055 = vunpack.c.l.b16 %v1618
    %v2056 = vunpack.c.l.b16 %v1619
    %v2057 = vunpack.c.h.b16 %v1619
    %v2058 = vunpack.c.l.b16 %v1620
    %v2059 = vunpack.c.l.b16 %v1621
    %v2060 = vunpack.c.h.b16 %v1621
    %v2061 = vunpack.c.l.b16 %v1622
    %v2062 = vunpack.c.l.b16 %v1623
    %v2063 = vunpack.c.h.b16 %v1623
    %v2064 = vunpack.c.l.b16 %v1624
    %v2065 = vunpack.c.l.b16 %v1625
    %v2066 = vunpack.c.h.b16 %v1625
    %v2067 = vunpack.c.l.b16 %v1626
    %v2068 = vunpack.c.l.b16 %v1627
    %v2069 = vunpack.c.h.b16 %v1627
    %v2070 = vunpack.c.l.b16 %v1628
    %v2071 = vunpack.c.l.b16 %v1629
    %v2072 = vunpack.c.h.b16 %v1629
    %v2073 = vunpack.c.l.b16 %v1630
    %v2074 = vunpack.c.l.b16 %v1631
    %v2075 = vunpack.c.h.b16 %v1631
    %v2076 = vunpack.c.l.b16 %v1632
    %v2077 = vunpack.c.l.b16 %v1633
    %v2078 = vunpack.c.h.b16 %v1633
    %v2079 = vunpack.c.l.b16 %v1634
    %v2080 = vunpack.c.l.b16 %v1635
    %v2081 = vunpack.c.h.b16 %v1635
    %v2082 = vunpack.c.l.b16 %v1636
    %v2083 = vunpack.c.l.b16 %v1637
    %v2084 = vunpack.c.h.b16 %v1637
    %v2085 = vunpack.c.l.b16 %v1638
    %v2086 = vunpack.c.l.b16 %v1639
    %v2087 = vunpack.c.h.b16 %v1639
    %v2088 = vunpack.c.l.b16 %v1640
    %v2089 = vunpack.c.l.b16 %v1641
    %v2090 = vunpack.c.h.b16 %v1641
    %v2091 = vunpack.c.l.b16 %v1642
    %v2092 = vunpack.c.l.b16 %v1643
    %v2093 = vunpack.c.h.b16 %v1643
    %v2094 = vunpack.c.l.b16 %v1644
    %v2095 = vunpack.c.l.b16 %v1645
    %v2096 = vunpack.c.h.b16 %v1645
    %v2097 = vunpack.c.l.b16 %v1646
    %v2098 = vunpack.c.l.b16 %v1647
    %v2099 = vunpack.c.h.b16 %v1647
    %v2100 = vunpack.c.l.b16 %v1648
    %v2101 = vunpack.c.l.b16 %v1649
    %v2102 = vunpack.c.h.b16 %v1649
    %v2103 = vunpack.c.l.b16 %v1650
    %v2104 = vunpack.c.l.b16 %v1651
    %v2105 = vunpack.c.h.b16 %v1651
    %v2106 = vunpack.c.l.b16 %v1652
    %v2107 = vunpack.c.l.b16 %v1653
    %v2108 = vunpack.c.h.b16 %v1653
    %v2109 = vunpack.c.l.b16 %v1654
    %v2110 = vunpack.c.l.b16 %v1655
    %v2111 = vunpack.c.h.b16 %v1655
    %v2112 = vunpack.c.l.b16 %v1656
    %v2113 = vunpack.c.l.b16 %v1657
    %v2114 = vunpack.c.h.b16 %v1657
    %v2115 = vunpack.c.l.b16 %v1658
    %v2116 = vunpack.c.l.b16 %v1659
    %v2117 = vunpack.c.h.b16 %v1659
    %v2118 = vunpack.c.l.b16 %v1660
    %v2119 = vunpack.c.l.b16 %v1661
    %v2120 = vunpack.c.h.b16 %v1661
    %v2121 = vunpack.c.l.b16 %v1662
    %v2122 = vunpack.c.l.b16 %v1663
    %v2123 = vunpack.c.h.b16 %v1663
    %v2124 = vunpack.c.l.b16 %v1664
    %v2125 = vunpack.c.l.b16 %v1665
    %v2126 = vunpack.c.h.b16 %v1665
    %v2127 = vunpack.c.l.b16 %v1666
    %v2128 = vunpack.c.l.b16 %v1667
    %v2129 = vunpack.c.h.b16 %v1667
    %v2130 = vunpack.c.l.b16 %v1668
    %v2131 = vunpack.c.l.b16 %v1669
    %v2132 = vunpack.c.h.b16 %v1669
    %v2133 = vunpack.c.l.b16 %v1670
    %v2134 = vunpack.c.l.b16 %v1671
    %v2135 = vunpack.c.h.b16 %v1671
    %v2136 = vunpack.c.l.b16 %v1672
    %v2137 = vunpack.c.l.b16 %v1673
    %v2138 = vunpack.c.h.b16 %v1673
    %v2139 = vunpack.c.l.b16 %v1674
    %v2140 = vunpack.c.l.b16 %v1675
    %v2141 = vunpack.c.h.b16 %v1675
    %v2142 = vunpack.c.l.b16 %v1676
    %v2143 = vunpack.c.l.b16 %v1677
    %v2144 = vunpack.c.h.b16 %v1677
    %v2145 = vunpack.c.l.b16 %v1678
    %v2146 = vunpack.c.l.b16 %v1679
    %v2147 = vunpack.c.h.b16 %v1679
    %v2148 = vunpack.c.l.b16 %v1680
    %v2149 = vunpack.c.l.b16 %v1681
    %v2150 = vunpack.c.h.b16 %v1681
    %v2151 = vunpack.c.l.b16 %v1682
    %v2152 = vunpack.c.l.b16 %v1683
    %v2153 = vunpack.c.h.b16 %v1683
    %v2154 = vunpack.c.l.b16 %v1684
    %v2155 = vunpack.c.l.b16 %v1685
    %v2156 = vunpack.c.h.b16 %v1685
    %v2157 = vunpack.c.l.b16 %v1686
    %v2158 = vunpack.c.l.b16 %v1687
    %v2159 = vunpack.c.h.b16 %v1687
    %v2160 = vunpack.c.l.b16 %v1688
    %v2161 = vunpack.c.l.b16 %v1689
    %v2162 = vunpack.c.h.b16 %v1689
    %v2163 = vunpack.c.l.b16 %v1690
    %v2164 = vunpack.c.l.b16 %v1691
    %v2165 = vunpack.c.h.b16 %v1691
    %v2166 = vunpack.c.l.b16 %v1692
    %v2167 = vunpack.c.l.b16 %v1693
    %v2168 = vunpack.c.h.b16 %v1693
    %v2169 = vunpack.c.l.b16 %v1694
    %v2170 = vunpack.c.l.b16 %v1695
    %v2171 = vunpack.c.h.b16 %v1695
    %v2172 = vunpack.c.l.b16 %v1696
    %v2173 = vunpack.c.l.b16 %v1697
    %v2174 = vunpack.c.h.b16 %v1697
    %v2175 = vunpack.c.l.b16 %v1698
    %v2176 = vunpack.c.l.b16 %v1699
    %v2177 = vunpack.c.h.b16 %v1699
    %v2178 = vunpack.c.l.b16 %v1700
    %v2179 = vunpack.c.l.b16 %v1701
    %v2180 = vunpack.c.h.b16 %v1701
    %v2181 = vunpack.c.l.b16 %v1702
    %v2182 = vunpack.c.l.b16 %v1703
    %v2183 = vunpack.c.h.b16 %v1703
    %v2184 = vunpack.c.l.b16 %v1704
    %v2185 = vunpack.c.l.b16 %v1705
    %v2186 = vunpack.c.h.b16 %v1705
    %v2187 = vunpack.c.l.b16 %v1706
    %v2188 = vunpack.c.l.b16 %v1707
    %v2189 = vunpack.c.h.b16 %v1707
    %v2190 = vunpack.c.l.b16 %v1708
    %v2191 = vunpack.c.l.b16 %v1709
    %v2192 = vunpack.c.h.b16 %v1709
    %v2193 = vunpack.c.l.b16 %v1710
    %v2194 = vunpack.c.l.b16 %v1711
    %v2195 = vunpack.c.h.b16 %v1711
    %v2196 = vunpack.c.l.b16 %v1712
    %v2197 = vunpack.c.l.b16 %v1713
    %v2198 = vunpack.c.h.b16 %v1713
    %v2199 = vunpack.c.l.b16 %v1714
    %v2200 = vunpack.c.l.b16 %v1715
    %v2201 = vunpack.c.h.b16 %v1715
    %v2202 = vunpack.c.l.b16 %v1716
    %v2203 = vunpack.c.l.b16 %v1717
    %v2204 = vunpack.c.h.b16 %v1717
    %v2205 = vunpack.c.l.b16 %v1718
    %v2206 = vunpack.c.l.b16 %v1719
    %v2207 = vunpack.c.h.b16 %v1719
    %v2208 = vunpack.c.l.b16 %v1720
    %v2209 = vunpack.c.l.b16 %v1721
    %v2210 = vunpack.c.h.b16 %v1721
    %v2211 = vunpack.c.l.b16 %v1722
    %v2212 = vunpack.c.l.b16 %v1723
    %v2213 = vunpack.c.h.b16 %v1723
    %v2214 = vunpack.c.l.b16 %v1724
    %v2215 = vunpack.c.l.b16 %v1725
    %v2216 = vunpack.c.h.b16 %v1725
    %v2217 = vunpack.c.l.b16 %v1726
    %v2218 = vunpack.c.l.b16 %v1727
    %v2219 = vunpack.c.h.b16 %v1727
    %v2220 = vunpack.c.l.b16 %v1728
    %v2221 = vunpack.c.l.b16 %v1729
    %v2222 = vunpack.c.h.b16 %v1729
    %v2223 = vunpack.c.l.b16 %v1730
    %v2224 = vunpack.c.l.b16 %v1731
    %v2225 = vunpack.c.h.b16 %v1731
    %v2226 = vunpack.c.l.b16 %v1732
    %v2227 = vunpack.c.l.b16 %v1733
    %v2228 = vunpack.c.h.b16 %v1733
    %v2229 = vunpack.c.l.b16 %v1734
    %v2230 = vunpack.c.l.b16 %v1735
    %v2231 = vunpack.c.h.b16 %v1735
    %v2232 = vunpack.c.l.b16 %v1736
    %v2233 = vunpack.c.l.b16 %v1737
    %v2234 = vunpack.c.h.b16 %v1737
    %v2235 = vunpack.c.l.b16 %v1738
    %v2236 = vunpack.c.l.b16 %v1739
    %v2237 = vunpack.c.h.b16 %v1739
    %v2238 = vunpack.c.l.b16 %v1740
    %v2239 = vunpack.c.l.b16 %v1741
    %v2240 = vunpack.c.h.b16 %v1741
    %v2241 = vunpack.c.l.b16 %v1742
    %v2242 = vunpack.c.l.b16 %v1743
    %v2243 = vunpack.c.h.b16 %v1743
    %v2244 = vunpack.c.l.b16 %v1744
    %v2245 = vunpack.c.l.b16 %v1745
    %v2246 = vunpack.c.h.b16 %v1745
    %v2247 = vunpack.c.l.b16 %v1746
    %v2248 = vunpack.c.l.b16 %v1747
    %v2249 = vunpack.c.h.b16 %v1747
    %v2250 = vunpack.c.l.b16 %v1748
    %v2251 = vunpack.c.l.b16 %v1749
    %v2252 = vunpack.c.h.b16 %v1749
    %v2253 = vunpack.c.l.b16 %v1750
    %v2254 = vunpack.c.l.b16 %v1751
    %v2255 = vunpack.c.h.b16 %v1751
    %v2256 = vunpack.c.l.b16 %v1752
    %v2257 = vunpack.c.l.b16 %v1753
    %v2258 = vunpack.c.h.b16 %v1753
    %v2259 = vunpack.c.l.b16 %v1754
    %v2260 = vunpack.c.l.b16 %v1755
    %v2261 = vunpack.c.h.b16 %v1755
    %v2262 = vunpack.c.l.b16 %v1756
    %v2263 = vunpack.c.l.b16 %v1757
    %v2264 = vunpack.c.h.b16 %v1757
    %v2265 = vunpack.c.l.b16 %v1758
    %v2266 = vunpack.c.l.b16 %v1759
    %v2267 = vunpack.c.h.b16 %v1759
    %v2268 = vunpack.c.l.b16 %v1760
    %v2269 = vunpack.c.l.b16 %v1761
    %v2270 = vunpack.c.h.b16 %v1761
    %v2271 = vunpack.c.l.b16 %v1762
    %v2272 = vpack.c.b16 %v1987, %v1984
    %v2273 = vpack.c.b16 %v1988, %v1985
    %v2274 = vpack.c.b16 %v1989, %v1986
    %v2275 = vpack.c.b16 %v1993, %v1990
    %v2276 = vpack.c.b16 %v1994, %v1991
    %v2277 = vpack.c.b16 %v1995, %v1992
    %v2278 = vpack.c.b16 %v1999, %v1996
    %v2279 = vpack.c.b16 %v2000, %v1997
    %v2280 = vpack.c.b16 %v2001, %v1998
    %v2281 = vpack.c.b16 %v2005, %v2002
    %v2282 = vpack.c.b16 %v2006, %v2003
    %v2283 = vpack.c.b16 %v2007, %v2004
    %v2284 = vpack.c.b16 %v2011, %v2008
    %v2285 = vpack.c.b16 %v2012, %v2009
    %v2286 = vpack.c.b16 %v2013, %v2010
    %v2287 = vpack.c.b16 %v2017, %v2014
    %v2288 = vpack.c.b16 %v2018, %v2015
    %v2289 = vpack.c.b16 %v2019, %v2016
    %v2290 = vpack.c.b16 %v2023, %v2020
    %v2291 = vpack.c.b16 %v2024, %v2021
    %v2292 = vpack.c.b16 %v2025, %v2022
    %v2293 = vpack.c.b16 %v2029, %v2026
    %v2294 = vpack.c.b16 %v2030, %v2027
    %v2295 = vpack.c.b16 %v2031, %v2028
    %v2296 = vpack.c.b16 %v2035, %v2032
    %v2297 = vpack.c.b16 %v2036, %v2033
    %v2298 = vpack.c.b16 %v2037, %v2034
    %v2299 = vpack.c.b16 %v2041, %v2038
    %v2300 = vpack.c.b16 %v2042, %v2039
    %v2301 = vpack.c.b16 %v2043, %v2040
    %v2302 = vpack.c.b16 %v2047, %v2044
    %v2303 = vpack.c.b16 %v2048, %v2045
    %v2304 = vpack.c.b16 %v2049, %v2046
    %v2305 = vpack.c.b16 %v2053, %v2050
    %v2306 = vpack.c.b16 %v2054, %v2051
    %v2307 = vpack.c.b16 %v2055, %v2052
    %v2308 = vpack.c.b16 %v2059, %v2056
    %v2309 = vpack.c.b16 %v2060, %v2057
    %v2310 = vpack.c.b16 %v2061, %v2058
    %v2311 = vpack.c.b16 %v2065, %v2062
    %v2312 = vpack.c.b16 %v2066, %v2063
    %v2313 = vpack.c.b16 %v2067, %v2064
    %v2314 = vpack.c.b16 %v2071, %v2068
    %v2315 = vpack.c.b16 %v2072, %v2069
    %v2316 = vpack.c.b16 %v2073, %v2070
    %v2317 = vpack.c.b16 %v2077, %v2074
    %v2318 = vpack.c.b16 %v2078, %v2075
    %v2319 = vpack.c.b16 %v2079, %v2076
    %v2320 = vpack.c.b16 %v2083, %v2080
    %v2321 = vpack.c.b16 %v2084, %v2081
    %v2322 = vpack.c.b16 %v2085, %v2082
    %v2323 = vpack.c.b16 %v2089, %v2086
    %v2324 = vpack.c.b16 %v2090, %v2087
    %v2325 = vpack.c.b16 %v2091, %v2088
    %v2326 = vpack.c.b16 %v2095, %v2092
    %v2327 = vpack.c.b16 %v2096, %v2093
    %v2328 = vpack.c.b16 %v2097, %v2094
    %v2329 = vpack.c.b16 %v2101, %v2098
    %v2330 = vpack.c.b16 %v2102, %v2099
    %v2331 = vpack.c.b16 %v2103, %v2100
    %v2332 = vpack.c.b16 %v2107, %v2104
    %v2333 = vpack.c.b16 %v2108, %v2105
    %v2334 = vpack.c.b16 %v2109, %v2106
    %v2335 = vpack.c.b16 %v2113, %v2110
    %v2336 = vpack.c.b16 %v2114, %v2111
    %v2337 = vpack.c.b16 %v2115, %v2112
    %v2338 = vpack.c.b16 %v2119, %v2116
    %v2339 = vpack.c.b16 %v2120, %v2117
    %v2340 = vpack.c.b16 %v2121, %v2118
    %v2341 = vpack.c.b16 %v2125, %v2122
    %v2342 = vpack.c.b16 %v2126, %v2123
    %v2343 = vpack.c.b16 %v2127, %v2124
    %v2344 = vpack.c.b16 %v2131, %v2128
    %v2345 = vpack.c.b16 %v2132, %v2129
    %v2346 = vpack.c.b16 %v2133, %v2130
    %v2347 = vpack.c.b16 %v2137, %v2134
    %v2348 = vpack.c.b16 %v2138, %v2135
    %v2349 = vpack.c.b16 %v2139, %v2136
    %v2350 = vpack.c.b16 %v2143, %v2140
    %v2351 = vpack.c.b16 %v2144, %v2141
    %v2352 = vpack.c.b16 %v2145, %v2142
    %v2353 = vpack.c.b16 %v2149, %v2146
    %v2354 = vpack.c.b16 %v2150, %v2147
    %v2355 = vpack.c.b16 %v2151, %v2148
    %v2356 = vpack.c.b16 %v2155, %v2152
    %v2357 = vpack.c.b16 %v2156, %v2153
    %v2358 = vpack.c.b16 %v2157, %v2154
    %v2359 = vpack.c.b16 %v2161, %v2158
    %v2360 = vpack.c.b16 %v2162, %v2159
    %v2361 = vpack.c.b16 %v2163, %v2160
    %v2362 = vpack.c.b16 %v2167, %v2164
    %v2363 = vpack.c.b16 %v2168, %v2165
    %v2364 = vpack.c.b16 %v2169, %v2166
    %v2365 = vpack.c.b16 %v2173, %v2170
    %v2366 = vpack.c.b16 %v2174, %v2171
    %v2367 = vpack.c.b16 %v2175, %v2172
    %v2368 = vpack.c.b16 %v2179, %v2176
    %v2369 = vpack.c.b16 %v2180, %v2177
    %v2370 = vpack.c.b16 %v2181, %v2178
    %v2371 = vpack.c.b16 %v2185, %v2182
    %v2372 = vpack.c.b16 %v2186, %v2183
    %v2373 = vpack.c.b16 %v2187, %v2184
    %v2374 = vpack.c.b16 %v2191, %v2188
    %v2375 = vpack.c.b16 %v2192, %v2189
    %v2376 = vpack.c.b16 %v2193, %v2190
    %v2377 = vpack.c.b16 %v2197, %v2194
    %v2378 = vpack.c.b16 %v2198, %v2195
    %v2379 = vpack.c.b16 %v2199, %v2196
    %v2380 = vpack.c.b16 %v2203, %v2200
    %v2381 = vpack.c.b16 %v2204, %v2201
    %v2382 = vpack.c.b16 %v2205, %v2202
    %v2383 = vpack.c.b16 %v2209, %v2206
    %v2384 = vpack.c.b16 %v2210, %v2207
    %v2385 = vpack.c.b16 %v2211, %v2208
    %v2386 = vpack.c.b16 %v2215, %v2212
    %v2387 = vpack.c.b16 %v2216, %v2213
    %v2388 = vpack.c.b16 %v2217, %v2214
    %v2389 = vpack.c.b16 %v2221, %v2218
    %v2390 = vpack.c.b16 %v2222, %v2219
    %v2391 = vpack.c.b16 %v2223, %v2220
    %v2392 = vpack.c.b16 %v2227, %v2224
    %v2393 = vpack.c.b16 %v2228, %v2225
    %v2394 = vpack.c.b16 %v2229, %v2226
    %v2395 = vpack.c.b16 %v2233, %v2230
    %v2396 = vpack.c.b16 %v2234, %v2231
    %v2397 = vpack.c.b16 %v2235, %v2232
    %v2398 = vpack.c.b16 %v2239, %v2236
    %v2399 = vpack.c.b16 %v2240, %v2237
    %v2400 = vpack.c.b16 %v2241, %v2238
    %v2401 = vpack.c.b16 %v2245, %v2242
    %v2402 = vpack.c.b16 %v2246, %v2243
    %v2403 = vpack.c.b16 %v2247, %v2244
    %v2404 = vpack.c.b16 %v2251, %v2248
    %v2405 = vpack.c.b16 %v2252, %v2249
    %v2406 = vpack.c.b16 %v2253, %v2250
    %v2407 = vpack.c.b16 %v2257, %v2254
    %v2408 = vpack.c.b16 %v2258, %v2255
    %v2409 = vpack.c.b16 %v2259, %v2256
    %v2410 = vpack.c.b16 %v2263, %v2260
    %v2411 = vpack.c.b16 %v2264, %v2261
    %v2412 = vpack.c.b16 %v2265, %v2262
    %v2413 = vpack.c.b16 %v2269, %v2266
    %v2414 = vpack.c.b16 %v2270, %v2267
    %v2415 = vpack.c.b16 %v2271, %v2268
    %2560 = vmatpush.bf16.msra.mxu0 %v2293
    %2561 = vmatpush.bf16.msra.mxu0 %v2290
    %2562 = vmatpush.bf16.msra.mxu0 %v2287
    %2563 = vmatpush.bf16.msra.mxu0 %v2284
    %2564 = vmatpush.bf16.msra.mxu0 %v2281
    %2565 = vmatpush.bf16.msra.mxu0 %v2278
    %2566 = vmatpush.bf16.msra.mxu0 %v2275
    %2567 = vmatpush.bf16.msra.mxu0 %v2272
    %2568 = vmatmul.bf16.gmra.mxu0 %v1780
    %v2569 = vpop.f32.mrf.mxu0
    %v2570 = vadd.f32 %v1765, %v2569
    %v2571 = vpop.f32.mrf.mxu0
    %2572 = vdwg.mxu0
    %2573 = vmatpush.bf16.msra.mxu0 %v2317
    %2574 = vmatpush.bf16.msra.mxu0 %v2314
    %2575 = vmatpush.bf16.msra.mxu0 %v2311
    %2576 = vmatpush.bf16.msra.mxu0 %v2308
    %2577 = vmatpush.bf16.msra.mxu0 %v2305
    %2578 = vmatpush.bf16.msra.mxu0 %v2302
    %2579 = vmatpush.bf16.msra.mxu0 %v2299
    %2580 = vmatpush.bf16.msra.mxu0 %v2296
    %2581 = vmatmul.bf16.gmra.mxu0 %v1781
    %v2582 = vpop.f32.mrf.mxu0
    %v2583 = vadd.f32 %v2570, %v2582
    %v2584 = vpop.f32.mrf.mxu0
    %2585 = vdwg.mxu0
    %2586 = vmatpush.bf16.msra.mxu0 %v2341
    %2587 = vmatpush.bf16.msra.mxu0 %v2338
    %2588 = vmatpush.bf16.msra.mxu0 %v2335
    %2589 = vmatpush.bf16.msra.mxu0 %v2332
    %2590 = vmatpush.bf16.msra.mxu0 %v2329
    %2591 = vmatpush.bf16.msra.mxu0 %v2326
    %2592 = vmatpush.bf16.msra.mxu0 %v2323
    %2593 = vmatpush.bf16.msra.mxu0 %v2320
    %2594 = vmatmul.bf16.gmra.mxu0 %v1782
    %v2595 = vpop.f32.mrf.mxu0
    %v2596 = vadd.f32 %v2583, %v2595
    %v2597 = vpop.f32.mrf.mxu0
    %2598 = vdwg.mxu0
    %2599 = vmatpush.bf16.msra.mxu0 %v2365
    %2600 = vmatpush.bf16.msra.mxu0 %v2362
    %2601 = vmatpush.bf16.msra.mxu0 %v2359
    %2602 = vmatpush.bf16.msra.mxu0 %v2356
    %2603 = vmatpush.bf16.msra.mxu0 %v2353
    %2604 = vmatpush.bf16.msra.mxu0 %v2350
    %2605 = vmatpush.bf16.msra.mxu0 %v2347
    %2606 = vmatpush.bf16.msra.mxu0 %v2344
    %2607 = vmatmul.bf16.gmra.mxu0 %v1783
    %v2608 = vpop.f32.mrf.mxu0
    %v2609 = vadd.f32 %v2596, %v2608
    %v2610 = vpop.f32.mrf.mxu0
    %2611 = vdwg.mxu0
    %2612 = vmatpush.bf16.msra.mxu0 %v2389
    %2613 = vmatpush.bf16.msra.mxu0 %v2386
    %2614 = vmatpush.bf16.msra.mxu0 %v2383
    %2615 = vmatpush.bf16.msra.mxu0 %v2380
    %2616 = vmatpush.bf16.msra.mxu0 %v2377
    %2617 = vmatpush.bf16.msra.mxu0 %v2374
    %2618 = vmatpush.bf16.msra.mxu0 %v2371
    %2619 = vmatpush.bf16.msra.mxu0 %v2368
    %2620 = vmatmul.bf16.gmra.mxu0 %v1784
    %v2621 = vpop.f32.mrf.mxu0
    %v2622 = vadd.f32 %v2609, %v2621
    %v2623 = vpop.f32.mrf.mxu0
    %2624 = vdwg.mxu0
    %2625 = vmatpush.bf16.msra.mxu0 %v2413
    %2626 = vmatpush.bf16.msra.mxu0 %v2410
    %2627 = vmatpush.bf16.msra.mxu0 %v2407
    %2628 = vmatpush.bf16.msra.mxu0 %v2404
    %2629 = vmatpush.bf16.msra.mxu0 %v2401
    %2630 = vmatpush.bf16.msra.mxu0 %v2398
    %2631 = vmatpush.bf16.msra.mxu0 %v2395
    %2632 = vmatpush.bf16.msra.mxu0 %v2392
    %2633 = vmatmul.bf16.gmra.mxu0 %v1785
    %v2634 = vpop.f32.mrf.mxu0
    %v2635 = vadd.f32 %v2622, %v2634
    %v2636 = vpop.f32.mrf.mxu0
    %2637 = vdwg.mxu0
    %2638 = vmatpush.bf16.msra.mxu0 %v2294
    %2639 = vmatpush.bf16.msra.mxu0 %v2291
    %2640 = vmatpush.bf16.msra.mxu0 %v2288
    %2641 = vmatpush.bf16.msra.mxu0 %v2285
    %2642 = vmatpush.bf16.msra.mxu0 %v2282
    %2643 = vmatpush.bf16.msra.mxu0 %v2279
    %2644 = vmatpush.bf16.msra.mxu0 %v2276
    %2645 = vmatpush.bf16.msra.mxu0 %v2273
    %2646 = vmatmul.bf16.gmra.mxu0 %v1780
    %v2647 = vpop.f32.mrf.mxu0
    %v2648 = vadd.f32 %v1766, %v2647
    %v2649 = vpop.f32.mrf.mxu0
    %2650 = vdwg.mxu0
    %2651 = vmatpush.bf16.msra.mxu0 %v2318
    %2652 = vmatpush.bf16.msra.mxu0 %v2315
    %2653 = vmatpush.bf16.msra.mxu0 %v2312
    %2654 = vmatpush.bf16.msra.mxu0 %v2309
    %2655 = vmatpush.bf16.msra.mxu0 %v2306
    %2656 = vmatpush.bf16.msra.mxu0 %v2303
    %2657 = vmatpush.bf16.msra.mxu0 %v2300
    %2658 = vmatpush.bf16.msra.mxu0 %v2297
    %2659 = vmatmul.bf16.gmra.mxu0 %v1781
    %v2660 = vpop.f32.mrf.mxu0
    %v2661 = vadd.f32 %v2648, %v2660
    %v2662 = vpop.f32.mrf.mxu0
    %2663 = vdwg.mxu0
    %2664 = vmatpush.bf16.msra.mxu0 %v2342
    %2665 = vmatpush.bf16.msra.mxu0 %v2339
    %2666 = vmatpush.bf16.msra.mxu0 %v2336
    %2667 = vmatpush.bf16.msra.mxu0 %v2333
    %2668 = vmatpush.bf16.msra.mxu0 %v2330
    %2669 = vmatpush.bf16.msra.mxu0 %v2327
    %2670 = vmatpush.bf16.msra.mxu0 %v2324
    %2671 = vmatpush.bf16.msra.mxu0 %v2321
    %2672 = vmatmul.bf16.gmra.mxu0 %v1782
    %v2673 = vpop.f32.mrf.mxu0
    %v2674 = vadd.f32 %v2661, %v2673
    %v2675 = vpop.f32.mrf.mxu0
    %2676 = vdwg.mxu0
    %2677 = vmatpush.bf16.msra.mxu0 %v2366
    %2678 = vmatpush.bf16.msra.mxu0 %v2363
    %2679 = vmatpush.bf16.msra.mxu0 %v2360
    %2680 = vmatpush.bf16.msra.mxu0 %v2357
    %2681 = vmatpush.bf16.msra.mxu0 %v2354
    %2682 = vmatpush.bf16.msra.mxu0 %v2351
    %2683 = vmatpush.bf16.msra.mxu0 %v2348
    %2684 = vmatpush.bf16.msra.mxu0 %v2345
    %2685 = vmatmul.bf16.gmra.mxu0 %v1783
    %v2686 = vpop.f32.mrf.mxu0
    %v2687 = vadd.f32 %v2674, %v2686
    %v2688 = vpop.f32.mrf.mxu0
    %2689 = vdwg.mxu0
    %2690 = vmatpush.bf16.msra.mxu0 %v2390
    %2691 = vmatpush.bf16.msra.mxu0 %v2387
    %2692 = vmatpush.bf16.msra.mxu0 %v2384
    %2693 = vmatpush.bf16.msra.mxu0 %v2381
    %2694 = vmatpush.bf16.msra.mxu0 %v2378
    %2695 = vmatpush.bf16.msra.mxu0 %v2375
    %2696 = vmatpush.bf16.msra.mxu0 %v2372
    %2697 = vmatpush.bf16.msra.mxu0 %v2369
    %2698 = vmatmul.bf16.gmra.mxu0 %v1784
    %v2699 = vpop.f32.mrf.mxu0
    %v2700 = vadd.f32 %v2687, %v2699
    %v2701 = vpop.f32.mrf.mxu0
    %2702 = vdwg.mxu0
    %2703 = vmatpush.bf16.msra.mxu0 %v2414
    %2704 = vmatpush.bf16.msra.mxu0 %v2411
    %2705 = vmatpush.bf16.msra.mxu0 %v2408
    %2706 = vmatpush.bf16.msra.mxu0 %v2405
    %2707 = vmatpush.bf16.msra.mxu0 %v2402
    %2708 = vmatpush.bf16.msra.mxu0 %v2399
    %2709 = vmatpush.bf16.msra.mxu0 %v2396
    %2710 = vmatpush.bf16.msra.mxu0 %v2393
    %2711 = vmatmul.bf16.gmra.mxu0 %v1785
    %v2712 = vpop.f32.mrf.mxu0
    %v2713 = vadd.f32 %v2700, %v2712
    %v2714 = vpop.f32.mrf.mxu0
    %2715 = vdwg.mxu0
    %2716 = vmatpush.bf16.msra.mxu0 %v2295
    %2717 = vmatpush.bf16.msra.mxu0 %v2292
    %2718 = vmatpush.bf16.msra.mxu0 %v2289
    %2719 = vmatpush.bf16.msra.mxu0 %v2286
    %2720 = vmatpush.bf16.msra.mxu0 %v2283
    %2721 = vmatpush.bf16.msra.mxu0 %v2280
    %2722 = vmatpush.bf16.msra.mxu0 %v2277
    %2723 = vmatpush.bf16.msra.mxu0 %v2274
    %2724 = vmatmul.bf16.gmra.mxu0 %v1780
    %v2725 = vpop.f32.mrf.mxu0
    %v2726 = vadd.f32 %v1767, %v2725
    %v2727 = vpop.f32.mrf.mxu0
    %2728 = vdwg.mxu0
    %2729 = vmatpush.bf16.msra.mxu0 %v2319
    %2730 = vmatpush.bf16.msra.mxu0 %v2316
    %2731 = vmatpush.bf16.msra.mxu0 %v2313
    %2732 = vmatpush.bf16.msra.mxu0 %v2310
    %2733 = vmatpush.bf16.msra.mxu0 %v2307
    %2734 = vmatpush.bf16.msra.mxu0 %v2304
    %2735 = vmatpush.bf16.msra.mxu0 %v2301
    %2736 = vmatpush.bf16.msra.mxu0 %v2298
    %2737 = vmatmul.bf16.gmra.mxu0 %v1781
    %v2738 = vpop.f32.mrf.mxu0
    %v2739 = vadd.f32 %v2726, %v2738
    %v2740 = vpop.f32.mrf.mxu0
    %2741 = vdwg.mxu0
    %2742 = vmatpush.bf16.msra.mxu0 %v2343
    %2743 = vmatpush.bf16.msra.mxu0 %v2340
    %2744 = vmatpush.bf16.msra.mxu0 %v2337
    %2745 = vmatpush.bf16.msra.mxu0 %v2334
    %2746 = vmatpush.bf16.msra.mxu0 %v2331
    %2747 = vmatpush.bf16.msra.mxu0 %v2328
    %2748 = vmatpush.bf16.msra.mxu0 %v2325
    %2749 = vmatpush.bf16.msra.mxu0 %v2322
    %2750 = vmatmul.bf16.gmra.mxu0 %v1782
    %v2751 = vpop.f32.mrf.mxu0
    %v2752 = vadd.f32 %v2739, %v2751
    %v2753 = vpop.f32.mrf.mxu0
    %2754 = vdwg.mxu0
    %2755 = vmatpush.bf16.msra.mxu0 %v2367
    %2756 = vmatpush.bf16.msra.mxu0 %v2364
    %2757 = vmatpush.bf16.msra.mxu0 %v2361
    %2758 = vmatpush.bf16.msra.mxu0 %v2358
    %2759 = vmatpush.bf16.msra.mxu0 %v2355
    %2760 = vmatpush.bf16.msra.mxu0 %v2352
    %2761 = vmatpush.bf16.msra.mxu0 %v2349
    %2762 = vmatpush.bf16.msra.mxu0 %v2346
    %2763 = vmatmul.bf16.gmra.mxu0 %v1783
    %v2764 = vpop.f32.mrf.mxu0
    %v2765 = vadd.f32 %v2752, %v2764
    %v2766 = vpop.f32.mrf.mxu0
    %2767 = vdwg.mxu0
    %2768 = vmatpush.bf16.msra.mxu0 %v2391
    %2769 = vmatpush.bf16.msra.mxu0 %v2388
    %2770 = vmatpush.bf16.msra.mxu0 %v2385
    %2771 = vmatpush.bf16.msra.mxu0 %v2382
    %2772 = vmatpush.bf16.msra.mxu0 %v2379
    %2773 = vmatpush.bf16.msra.mxu0 %v2376
    %2774 = vmatpush.bf16.msra.mxu0 %v2373
    %2775 = vmatpush.bf16.msra.mxu0 %v2370
    %2776 = vmatmul.bf16.gmra.mxu0 %v1784
    %v2777 = vpop.f32.mrf.mxu0
    %v2778 = vadd.f32 %v2765, %v2777
    %v2779 = vpop.f32.mrf.mxu0
    %2780 = vdwg.mxu0
    %2781 = vmatpush.bf16.msra.mxu0 %v2415
    %2782 = vmatpush.bf16.msra.mxu0 %v2412
    %2783 = vmatpush.bf16.msra.mxu0 %v2409
    %2784 = vmatpush.bf16.msra.mxu0 %v2406
    %2785 = vmatpush.bf16.msra.mxu0 %v2403
    %2786 = vmatpush.bf16.msra.mxu0 %v2400
    %2787 = vmatpush.bf16.msra.mxu0 %v2397
    %2788 = vmatpush.bf16.msra.mxu0 %v2394
    %2789 = vmatmul.bf16.gmra.mxu0 %v1785
    %v2790 = vpop.f32.mrf.mxu0
    %v2791 = vadd.f32 %v2778, %v2790
    %v2792 = vpop.f32.mrf.mxu0
    %2793 = vdwg.mxu0
    %v2794 = vmax.f32 %v2635, 0.0
    %v2795 = vmax.f32 %v2713, 0.0
    %v2796 = vmax.f32 %v2791, 0.0
    %v2797 = vpack.c.bf16 %v2794, %v2794
    %v2798 = vpack.c.bf16 %v2795, %v2795
    %v2799 = vpack.c.bf16 %v2796, %v2796
    %v2800 = vld [vmem:[#allocation14] sm:$0xf]
    %v2801 = vld [vmem:[#allocation14 + $0x4] sm:$0xf]
    %v2802 = vld [vmem:[#allocation14 + $0x8] sm:$0xf]
    %v2803 = vld [vmem:[#allocation14 + $0xc] sm:$0xf]
    %v2804 = vld [vmem:[#allocation14 + $0x10] sm:$0xf]
    %v2805 = vld [vmem:[#allocation14 + $0x14] sm:$0xf]
    %v2806 = vld [vmem:[#allocation14 + $0x18] sm:$0xf]
    %v2807 = vld [vmem:[#allocation14 + $0x1c] sm:$0xf]
    %v2808 = vld [vmem:[#allocation14 + $0x20] sm:$0xf]
    %v2809 = vld [vmem:[#allocation14 + $0x24] sm:$0xf]
    %v2810 = vld [vmem:[#allocation14 + $0x28] sm:$0xf]
    %v2811 = vld [vmem:[#allocation14 + $0x2c] sm:$0xf]
    %v2812 = vld [vmem:[#allocation14 + $0x30] sm:$0xf]
    %v2813 = vld [vmem:[#allocation14 + $0x34] sm:$0xf]
    %v2814 = vld [vmem:[#allocation14 + $0x38] sm:$0xf]
    %v2815 = vld [vmem:[#allocation14 + $0x3c] sm:$0xf]
    %v2816 = vld [vmem:[#allocation14 + $0x40] sm:$0xf]
    %v2817 = vld [vmem:[#allocation14 + $0x44] sm:$0xf]
    %v2818 = vld [vmem:[#allocation14 + $0x48] sm:$0xf]
    %v2819 = vld [vmem:[#allocation14 + $0x4c] sm:$0xf]
    %v2820 = vld [vmem:[#allocation14 + $0x50] sm:$0xf]
    %v2821 = vld [vmem:[#allocation14 + $0x54] sm:$0xf]
    %v2822 = vld [vmem:[#allocation14 + $0x58] sm:$0xf]
    %v2823 = vld [vmem:[#allocation14 + $0x5c] sm:$0xf]
    %v2824 = vld [vmem:[#allocation14 + $0x60] sm:$0xf]
    %v2825 = vld [vmem:[#allocation14 + $0x64] sm:$0xf]
    %v2826 = vld [vmem:[#allocation14 + $0x68] sm:$0xf]
    %v2827 = vld [vmem:[#allocation14 + $0x6c] sm:$0xf]
    %v2828 = vld [vmem:[#allocation14 + $0x70] sm:$0xf]
    %v2829 = vld [vmem:[#allocation14 + $0x74] sm:$0xf]
    %v2830 = vld [vmem:[#allocation14 + $0x78] sm:$0xf]
    %v2831 = vld [vmem:[#allocation14 + $0x7c] sm:$0xf]
    %v2832 = vld [vmem:[#allocation14 + $0x80] sm:$0xf]
    %v2833 = vld [vmem:[#allocation14 + $0x84] sm:$0xf]
    %v2834 = vld [vmem:[#allocation14 + $0x88] sm:$0xf]
    %v2835 = vld [vmem:[#allocation14 + $0x8c] sm:$0xf]
    %v2836 = vld [vmem:[#allocation14 + $0x90] sm:$0xf]
    %v2837 = vld [vmem:[#allocation14 + $0x94] sm:$0xf]
    %v2838 = vld [vmem:[#allocation14 + $0x98] sm:$0xf]
    %v2839 = vld [vmem:[#allocation14 + $0x9c] sm:$0xf]
    %v2840 = vld [vmem:[#allocation14 + $0xa0] sm:$0xf]
    %v2841 = vld [vmem:[#allocation14 + $0xa4] sm:$0xf]
    %v2842 = vld [vmem:[#allocation14 + $0xa8] sm:$0xf]
    %v2843 = vld [vmem:[#allocation14 + $0xac] sm:$0xf]
    %v2844 = vld [vmem:[#allocation14 + $0xb0] sm:$0xf]
    %v2845 = vld [vmem:[#allocation14 + $0xb4] sm:$0xf]
    %v2846 = vld [vmem:[#allocation14 + $0xb8] sm:$0xf]
    %v2847 = vld [vmem:[#allocation14 + $0xbc] sm:$0xf]
    %v2848 = vld [vmem:[#allocation16] sm:$0x1]
    %v2850 = vperm.slane %v2848, 0
    %v2900 = vunpack.c.l.b16 %v2800
    %v2901 = vunpack.c.l.b16 %v2801
    %v2902 = vunpack.c.l.b16 %v2802
    %v2903 = vunpack.c.l.b16 %v2803
    %v2904 = vunpack.c.l.b16 %v2804
    %v2905 = vunpack.c.l.b16 %v2805
    %v2906 = vunpack.c.l.b16 %v2806
    %v2907 = vunpack.c.l.b16 %v2807
    %v2908 = vunpack.c.l.b16 %v2808
    %v2909 = vunpack.c.l.b16 %v2809
    %v2910 = vunpack.c.l.b16 %v2810
    %v2911 = vunpack.c.l.b16 %v2811
    %v2912 = vunpack.c.l.b16 %v2812
    %v2913 = vunpack.c.l.b16 %v2813
    %v2914 = vunpack.c.l.b16 %v2814
    %v2915 = vunpack.c.l.b16 %v2815
    %v2916 = vunpack.c.l.b16 %v2816
    %v2917 = vunpack.c.l.b16 %v2817
    %v2918 = vunpack.c.l.b16 %v2818
    %v2919 = vunpack.c.l.b16 %v2819
    %v2920 = vunpack.c.l.b16 %v2820
    %v2921 = vunpack.c.l.b16 %v2821
    %v2922 = vunpack.c.l.b16 %v2822
    %v2923 = vunpack.c.l.b16 %v2823
    %v2924 = vunpack.c.l.b16 %v2824
    %v2925 = vunpack.c.l.b16 %v2825
    %v2926 = vunpack.c.l.b16 %v2826
    %v2927 = vunpack.c.l.b16 %v2827
    %v2928 = vunpack.c.l.b16 %v2828
    %v2929 = vunpack.c.l.b16 %v2829
    %v2930 = vunpack.c.l.b16 %v2830
    %v2931 = vunpack.c.l.b16 %v2831
    %v2932 = vunpack.c.l.b16 %v2832
    %v2933 = vunpack.c.l.b16 %v2833
    %v2934 = vunpack.c.l.b16 %v2834
    %v2935 = vunpack.c.l.b16 %v2835
    %v2936 = vunpack.c.l.b16 %v2836
    %v2937 = vunpack.c.l.b16 %v2837
    %v2938 = vunpack.c.l.b16 %v2838
    %v2939 = vunpack.c.l.b16 %v2839
    %v2940 = vunpack.c.l.b16 %v2840
    %v2941 = vunpack.c.l.b16 %v2841
    %v2942 = vunpack.c.l.b16 %v2842
    %v2943 = vunpack.c.l.b16 %v2843
    %v2944 = vunpack.c.l.b16 %v2844
    %v2945 = vunpack.c.l.b16 %v2845
    %v2946 = vunpack.c.l.b16 %v2846
    %v2947 = vunpack.c.l.b16 %v2847
    %v2948 = vpack.c.b16 %v2901, %v2900
    %v2949 = vpack.c.b16 %v2903, %v2902
    %v2950 = vpack.c.b16 %v2905, %v2904
    %v2951 = vpack.c.b16 %v2907, %v2906
    %v2952 = vpack.c.b16 %v2909, %v2908
    %v2953 = vpack.c.b16 %v2911, %v2910
    %v2954 = vpack.c.b16 %v2913, %v2912
    %v2955 = vpack.c.b16 %v2915, %v2914
    %v2956 = vpack.c.b16 %v2917, %v2916
    %v2957 = vpack.c.b16 %v2919, %v2918
    %v2958 = vpack.c.b16 %v2921, %v2920
    %v2959 = vpack.c.b16 %v2923, %v2922
    %v2960 = vpack.c.b16 %v2925, %v2924
    %v2961 = vpack.c.b16 %v2927, %v2926
    %v2962 = vpack.c.b16 %v2929, %v2928
    %v2963 = vpack.c.b16 %v2931, %v2930
    %v2964 = vpack.c.b16 %v2933, %v2932
    %v2965 = vpack.c.b16 %v2935, %v2934
    %v2966 = vpack.c.b16 %v2937, %v2936
    %v2967 = vpack.c.b16 %v2939, %v2938
    %v2968 = vpack.c.b16 %v2941, %v2940
    %v2969 = vpack.c.b16 %v2943, %v2942
    %v2970 = vpack.c.b16 %v2945, %v2944
    %v2971 = vpack.c.b16 %v2947, %v2946
    %2996 = vmatpush.bf16.msra.mxu0 %v2955
    %2997 = vmatpush.bf16.msra.mxu0 %v2954
    %2998 = vmatpush.bf16.msra.mxu0 %v2953
    %2999 = vmatpush.bf16.msra.mxu0 %v2952
    %3000 = vmatpush.bf16.msra.mxu0 %v2951
    %3001 = vmatpush.bf16.msra.mxu0 %v2950
    %3002 = vmatpush.bf16.msra.mxu0 %v2949
    %3003 = vmatpush.bf16.msra.mxu0 %v2948
    %3004 = vmatmul.bf16.gmra.mxu0 %v2797
    %v3005 = vpop.f32.mrf.mxu0
    %v3006 = vadd.f32 %v2850, %v3005
    %v3007 = vpop.f32.mrf.mxu0
    %3008 = vdwg.mxu0
    %3009 = vmatpush.bf16.msra.mxu0 %v2963
    %3010 = vmatpush.bf16.msra.mxu0 %v2962
    %3011 = vmatpush.bf16.msra.mxu0 %v2961
    %3012 = vmatpush.bf16.msra.mxu0 %v2960
    %3013 = vmatpush.bf16.msra.mxu0 %v2959
    %3014 = vmatpush.bf16.msra.mxu0 %v2958
    %3015 = vmatpush.bf16.msra.mxu0 %v2957
    %3016 = vmatpush.bf16.msra.mxu0 %v2956
    %3017 = vmatmul.bf16.gmra.mxu0 %v2798
    %v3018 = vpop.f32.mrf.mxu0
    %v3019 = vadd.f32 %v3006, %v3018
    %v3020 = vpop.f32.mrf.mxu0
    %3021 = vdwg.mxu0
    %3022 = vmatpush.bf16.msra.mxu0 %v2971
    %3023 = vmatpush.bf16.msra.mxu0 %v2970
    %3024 = vmatpush.bf16.msra.mxu0 %v2969
    %3025 = vmatpush.bf16.msra.mxu0 %v2968
    %3026 = vmatpush.bf16.msra.mxu0 %v2967
    %3027 = vmatpush.bf16.msra.mxu0 %v2966
    %3028 = vmatpush.bf16.msra.mxu0 %v2965
    %3029 = vmatpush.bf16.msra.mxu0 %v2964
    %3030 = vmatmul.bf16.gmra.mxu0 %v2799
    %v3031 = vpop.f32.mrf.mxu0
    %v3032 = vadd.f32 %v3019, %v3031
    %v3033 = vpop.f32.mrf.mxu0
    %3034 = vdwg.mxu0
    %v3035 = vmax.f32 %v3032, 0.0
    %v3036 = vpack.c.bf16 %v3035, %v3035
    %v3037 = vld [vmem:[#allocation17] sm:$0xff]
    %v3038 = vld [vmem:[#allocation17 + $0x8] sm:$0xff]
    %v3039 = vld [vmem:[#allocation17 + $0x10] sm:$0xff]
    %v3040 = vld [vmem:[#allocation17 + $0x18] sm:$0xff]
    %v3041 = vld [vmem:[#allocation17 + $0x20] sm:$0xff]
    %v3042 = vld [vmem:[#allocation17 + $0x28] sm:$0xff]
    %v3043 = vld [vmem:[#allocation17 + $0x30] sm:$0xff]
    %v3044 = vld [vmem:[#allocation17 + $0x38] sm:$0xff]
    %v3045 = vld [vmem:[#allocation17 + $0x40] sm:$0xff]
    %v3046 = vld [vmem:[#allocation17 + $0x48] sm:$0xff]
    %v3047 = vld [vmem:[#allocation17 + $0x50] sm:$0xff]
    %v3048 = vld [vmem:[#allocation17 + $0x58] sm:$0xff]
    %v3049 = vld [vmem:[#allocation17 + $0x60] sm:$0xff]
    %v3050 = vld [vmem:[#allocation17 + $0x68] sm:$0xff]
    %v3051 = vld [vmem:[#allocation17 + $0x70] sm:$0xff]
    %v3052 = vld [vmem:[#allocation17 + $0x78] sm:$0xff]
    %v3053 = vld [vmem:[#allocation19] sm:$0x3]
    %v3055 = vperm.slane %v3053, 0
    %v3056 = vperm.slane %v3053, 1
    %v3075 = vunpack.c.l.b16 %v3037
    %v3076 = vunpack.c.h.b16 %v3037
    %v3077 = vunpack.c.l.b16 %v3038
    %v3078 = vunpack.c.h.b16 %v3038
    %v3079 = vunpack.c.l.b16 %v3039
    %v3080 = vunpack.c.h.b16 %v3039
    %v3081 = vunpack.c.l.b16 %v3040
    %v3082 = vunpack.c.h.b16 %v3040
    %v3083 = vunpack.c.l.b16 %v3041
    %v3084 = vunpack.c.h.b16 %v3041
    %v3085 = vunpack.c.l.b16 %v3042
    %v3086 = vunpack.c.h.b16 %v3042
    %v3087 = vunpack.c.l.b16 %v3043
    %v3088 = vunpack.c.h.b16 %v3043
    %v3089 = vunpack.c.l.b16 %v3044
    %v3090 = vunpack.c.h.b16 %v3044
    %v3091 = vunpack.c.l.b16 %v3045
    %v3092 = vunpack.c.h.b16 %v3045
    %v3093 = vunpack.c.l.b16 %v3046
    %v3094 = vunpack.c.h.b16 %v3046
    %v3095 = vunpack.c.l.b16 %v3047
    %v3096 = vunpack.c.h.b16 %v3047
    %v3097 = vunpack.c.l.b16 %v3048
    %v3098 = vunpack.c.h.b16 %v3048
    %v3099 = vunpack.c.l.b16 %v3049
    %v3100 = vunpack.c.h.b16 %v3049
    %v3101 = vunpack.c.l.b16 %v3050
    %v3102 = vunpack.c.h.b16 %v3050
    %v3103 = vunpack.c.l.b16 %v3051
    %v3104 = vunpack.c.h.b16 %v3051
    %v3105 = vunpack.c.l.b16 %v3052
    %v3106 = vunpack.c.h.b16 %v3052
    %v3107 = vpack.c.b16 %v3077, %v3075
    %v3108 = vpack.c.b16 %v3078, %v3076
    %v3109 = vpack.c.b16 %v3081, %v3079
    %v3110 = vpack.c.b16 %v3082, %v3080
    %v3111 = vpack.c.b16 %v3085, %v3083
    %v3112 = vpack.c.b16 %v3086, %v3084
    %v3113 = vpack.c.b16 %v3089, %v3087
    %v3114 = vpack.c.b16 %v3090, %v3088
    %v3115 = vpack.c.b16 %v3093, %v3091
    %v3116 = vpack.c.b16 %v3094, %v3092
    %v3117 = vpack.c.b16 %v3097, %v3095
    %v3118 = vpack.c.b16 %v3098, %v3096
    %v3119 = vpack.c.b16 %v3101, %v3099
    %v3120 = vpack.c.b16 %v3102, %v3100
    %v3121 = vpack.c.b16 %v3105, %v3103
    %v3122 = vpack.c.b16 %v3106, %v3104
    %3139 = vmatpush.bf16.msra.mxu0 %v3121
    %3140 = vmatpush.bf16.msra.mxu0 %v3119
    %3141 = vmatpush.bf16.msra.mxu0 %v3117
    %3142 = vmatpush.bf16.msra.mxu0 %v3115
    %3143 = vmatpush.bf16.msra.mxu0 %v3113
    %3144 = vmatpush.bf16.msra.mxu0 %v3111
    %3145 = vmatpush.bf16.msra.mxu0 %v3109
    %3146 = vmatpush.bf16.msra.mxu0 %v3107
    %3147 = vmatmul.bf16.gmra.mxu0 %v3036
    %v3148 = vpop.f32.mrf.mxu0
    %v3149 = vadd.f32 %v3055, %v3148
    %v3150 = vpop.f32.mrf.mxu0
    %3151 = vdwg.mxu0
    %3152 = vmatpush.bf16.msra.mxu0 %v3122
    %3153 = vmatpush.bf16.msra.mxu0 %v3120
    %3154 = vmatpush.bf16.msra.mxu0 %v3118
    %3155 = vmatpush.bf16.msra.mxu0 %v3116
    %3156 = vmatpush.bf16.msra.mxu0 %v3114
    %3157 = vmatpush.bf16.msra.mxu0 %v3112
    %3158 = vmatpush.bf16.msra.mxu0 %v3110
    %3159 = vmatpush.bf16.msra.mxu0 %v3108
    %3160 = vmatmul.bf16.gmra.mxu0 %v3036
    %v3161 = vpop.f32.mrf.mxu0
    %v3162 = vadd.f32 %v3056, %v3161
    %v3163 = vpop.f32.mrf.mxu0
    %3164 = vdwg.mxu0
    %3165 = vst [vmem:[#allocation21] sm:$0xff] %v3149
    %3166 = vst [vmem:[#allocation21 + $0x8] sm:$0xff] %v3162
    // Predicated region
    $region98: #{_autoencoder_call.1} parent=1 // pred_check
      _
    $region99: #{_autoencoder_call.1} parent=1 // pred_check_branch
      %3168 = sbr.rel (0) target = $region101
    $region100: #{_autoencoder_call.1} parent=1 // pred_region
      %3170 = vsyncadd [#allocation4], 0
      %s3172 = sshll.u32 [#allocation20], 4
      %s3173 = int_to_ptr.vmem [resolvable:$true] %s3172
      %s3174 = sshll.u32 %s13, 4
      %s3175 = int_to_ptr.hbm [resolvable:$true] %s3174
      %3177 = dma.vmem_to_hbm [thread:$0]  %s3173, 384, %s3175, [#allocation4]
    $region101: #{_autoencoder_call.1} parent=1 // pred_fallthru
      _
    // Predicated region
    $region102: #{_autoencoder_call.1} parent=1 // pred_check
      _
    $region103: #{_autoencoder_call.1} parent=1 // pred_check_branch
      %3179 = sbr.rel (0) target = $region105
    $region104: #{_autoencoder_call.1} parent=1 // pred_region
      %3181 = vsyncadd [#allocation22], 0
      %s3183 = sshll.u32 [#allocation21], 4
      %s3184 = int_to_ptr.vmem [resolvable:$true] %s3183
      %s3185 = sshll.u32 %s14, 4
      %s3186 = int_to_ptr.hbm [resolvable:$true] %s3185
      %3188 = dma.vmem_to_hbm [thread:$0]  %s3184, 256, %s3186, [#allocation22]
    $region105: #{_autoencoder_call.1} parent=1 // pred_fallthru
      _
    // Predicated region
    $region106: #{_autoencoder_call.1} parent=1 // pred_check
      _
    $region107: #{_autoencoder_call.1} parent=1 // pred_check_branch
      %3190 = sbr.rel (0) target = $region109
    $region108: #{_autoencoder_call.1} parent=1 // pred_region
      %3192 = dma.done [#allocation4], 384
    $region109: #{_autoencoder_call.1} parent=1 // pred_fallthru
      _
    // Predicated region
    $region110: #{_autoencoder_call.1} parent=1 // pred_check
      _
    $region111: #{_autoencoder_call.1} parent=1 // pred_check_branch
      %3194 = sbr.rel (0) target = $region113
    $region112: #{_autoencoder_call.1} parent=1 // pred_region
      %3196 = dma.done [#allocation22], 256
    $region113: #{_autoencoder_call.1} parent=1 // pred_fallthru
      _
    %3197 = vsyncpa [#allocation3], 1
    %3198 = vsyncpa [#allocation6], 1
    %3199 = vsyncpa [#allocation9], 1
    %3200 = vsyncpa [#allocation12], 1
    %3201 = vsyncpa [#allocation15], 1
    %3202 = vsyncpa [#allocation18], 1
    %3203 = vsyncpa [#allocation4], 1
    %3204 = vsyncpa [#allocation22], 1

</llo_original>
